<compile_context>
chip_gen: v7x
topology: tpu7x:2x2x1
jax: 0.10.0
libtpu: 0.0.40
codegen_flags: <defaults>
</compile_context>

<pallas_src>
import jax
import jax.numpy as jnp
from jax.experimental import pallas as pl
from jax.experimental.pallas import tpu as pltpu

BN_EPS = 1e-5


def _full_spec(shape):
    nd = len(shape)
    return pl.BlockSpec(shape, lambda *_: (0,) * nd)


# ---------------------------------------------------------------------------
# Fused kernel: all GIN layers + JK('cat') + mean-pool + MLP head + log_softmax
# ---------------------------------------------------------------------------
def fused_gin_jk_kernel(eps_ref,          # (L,)            f32, SMEM
                        a_ref,            # (N, N)          bf16
                        x_ref,            # (N, F_in)       f32
                        p_ref,            # (G, N)          f32 (mean-pool matrix)
                        w1_first_ref,     # (F_in, H)       bf16
                        w1_rest_ref,      # (L-1, H, H)     bf16
                        w2_ref,           # (L, H, H)       bf16  (BN1 folded in)
                        vec_ref,          # (L, 4, H)       f32   rows: b1, b2', s2, t2
                        lin1_w_ref,       # (L*H, H)        bf16
                        lin1_b_ref,       # (1, H)          f32
                        lin2_w_ref,       # (H, C)          bf16
                        lin2_b_ref,       # (1, C)          f32
                        o_ref):           # (G, C)          f32
    L, _, H = w2_ref.shape
    G = p_ref.shape[0]

    a = a_ref[...]                                   # bf16, resident for all layers
    p = p_ref[...].astype(jnp.bfloat16)              # bf16 pooling matrix
    h = x_ref[...]                                   # f32 running activation

    acc = jnp.zeros((G, H), jnp.float32)             # accumulates pooled @ lin1 blocks

    for li in range(L):                              # static unroll (L = 8)
        # --- GINConv 'add' aggregation:  (1 + eps) * h + A @ h -------------
        agg = jnp.dot(a, h.astype(jnp.bfloat16),
                      preferred_element_type=jnp.float32)
        z = (1.0 + eps_ref[li]) * h + agg

        # --- MLP: Linear -> ReLU -> [BN1 folded] -> Linear -> ReLU -> BN2 --
        w1 = w1_first_ref[...] if li == 0 else w1_rest_ref[li - 1]
        w2 = w2_ref[li]
        v = vec_ref[li]                              # (4, H)
        b1, b2, s2, t2 = v[0:1, :], v[1:2, :], v[2:3, :], v[3:4, :]

        h1 = jnp.dot(z.astype(jnp.bfloat16), w1,
                     preferred_element_type=jnp.float32) + b1
        h1 = jnp.maximum(h1, 0.0)
        h2 = jnp.dot(h1.astype(jnp.bfloat16), w2,
                     preferred_element_type=jnp.float32) + b2
        h2 = jnp.maximum(h2, 0.0)
        h = h2 * s2 + t2                             # BN2 (eval) scale/shift

        # --- JK 'cat' + global_mean_pool + lin1, fused block-wise -----------
        pooled = jnp.dot(p, h.astype(jnp.bfloat16),
                         preferred_element_type=jnp.float32)          # (G, H)
        acc = acc + jnp.dot(pooled.astype(jnp.bfloat16),
                            lin1_w_ref[li * H:(li + 1) * H, :],
                            preferred_element_type=jnp.float32)

    hid = jnp.maximum(acc + lin1_b_ref[...], 0.0)
    # TODO(synk): F.dropout(p=0.5) is identity in eval mode; not applied here.
    logits = jnp.dot(hid.astype(jnp.bfloat16), lin2_w_ref[...],
                     preferred_element_type=jnp.float32) + lin2_b_ref[...]
    m = jnp.max(logits, axis=-1, keepdims=True)
    zc = logits - m
    lse = jnp.log(jnp.sum(jnp.exp(zc), axis=-1, keepdims=True))
    o_ref[...] = zc - lse


def gin_with_jk_forward(a, pmat, x_nodes, kp):
    """a: (N,N) f32 dense adjacency, pmat: (G,N) f32 mean-pool, x_nodes: (N,F_in) f32."""
    G = pmat.shape[0]
    C = kp["lin2_w"].shape[1]

    args = (kp["eps"],
            a.astype(jnp.bfloat16),
            x_nodes,
            pmat,
            kp["w1_first"], kp["w1_rest"], kp["w2"], kp["vec"],
            kp["lin1_w"], kp["lin1_b"], kp["lin2_w"], kp["lin2_b"])

    in_specs = ([pl.BlockSpec(memory_space=pltpu.MemorySpace.SMEM)] +
                [_full_spec(v.shape) for v in args[1:]])

    return pl.pallas_call(
        fused_gin_jk_kernel,
        out_shape=jax.ShapeDtypeStruct((G, C), jnp.float32),
        grid=(1,),
        in_specs=in_specs,
        out_specs=_full_spec((G, C)),
        compiler_params=pltpu.CompilerParams(
            dimension_semantics=("arbitrary",)),
    )(*args)


# ---------------------------------------------------------------------------
# Parameter construction (shapes per GINWithJK.__init__) and packing/folding.
# ---------------------------------------------------------------------------
def make_raw_params(key, hidden=64, num_layers=8, num_classes=3, f_in_pad=128):
    def nrm(k, shape, scale=0.1):
        return scale * jax.random.normal(k, shape, dtype=jnp.float32)

    layers = []
    for li in range(num_layers):
        key, k1, k2, k3, k4, k5, k6, k7, k8 = jax.random.split(key, 9)
        f_in = f_in_pad if li == 0 else hidden
        w1 = nrm(k1, (f_in, hidden))
        if li == 0:
            # original input dim is 1; zero the padded rows so padding is inert
            w1 = w1.at[1:, :].set(0.0)
        layers.append(dict(
            eps=jnp.float32(0.0),                    # GINConv train_eps=True, init 0
            w1=w1, b1=nrm(k2, (1, hidden)),
            w2=nrm(k3, (hidden, hidden)), b2=nrm(k4, (1, hidden)),
            g1=1.0 + nrm(k5, (1, hidden)), be1=nrm(k6, (1, hidden)),
            g2=1.0 + nrm(k7, (1, hidden)), be2=nrm(k8, (1, hidden)),
        ))
    key, k1, k2, k3, k4 = jax.random.split(key, 5)
    head = dict(lin1_w=nrm(k1, (num_layers * hidden, hidden)),
                lin1_b=nrm(k2, (1, hidden)),
                lin2_w=nrm(k3, (hidden, num_classes)),
                lin2_b=nrm(k4, (1, num_classes)))
    return layers, head


def pack_params(layers, head, bn_eps=BN_EPS):
    eps_all = jnp.array([l["eps"] for l in layers], jnp.float32)
    w1_first = layers[0]["w1"].astype(jnp.bfloat16)
    w1_rest = jnp.stack([l["w1"] for l in layers[1:]]).astype(jnp.bfloat16)

    w2_list, vec_list = [], []
    for l in layers:
        # eval-mode BatchNorm1d with running_mean=0, running_var=1 (fresh module)
        s1 = l["g1"] / jnp.sqrt(1.0 + bn_eps)
        t1 = l["be1"]
        s2 = l["g2"] / jnp.sqrt(1.0 + bn_eps)
        t2 = l["be2"]
        w2_fold = l["w2"] * s1.reshape(-1, 1)        # BN1 scale folded into W2 rows
        b2_fold = l["b2"] + t1 @ l["w2"]             # BN1 shift folded into b2
        w2_list.append(w2_fold.astype(jnp.bfloat16))
        vec_list.append(jnp.concatenate([l["b1"], b2_fold, s2, t2], axis=0))  # (4, H)

    return dict(eps=eps_all,
                w1_first=w1_first, w1_rest=w1_rest,
                w2=jnp.stack(w2_list),               # (L, H, H) bf16
                vec=jnp.stack(vec_list),             # (L, 4, H) f32
                lin1_w=head["lin1_w"].astype(jnp.bfloat16),
                lin1_b=head["lin1_b"],
                lin2_w=head["lin2_w"].astype(jnp.bfloat16),
                lin2_b=head["lin2_b"])


# ---------------------------------------------------------------------------
# Pure-JAX f32 reference (unfolded BN) for correctness checking.
# ---------------------------------------------------------------------------
def reference_forward(a, pmat, x, layers, head, bn_eps=BN_EPS):
    h = x
    xs = []
    for l in layers:
        s1 = l["g1"] / jnp.sqrt(1.0 + bn_eps); t1 = l["be1"]
        s2 = l["g2"] / jnp.sqrt(1.0 + bn_eps); t2 = l["be2"]
        z = (1.0 + l["eps"]) * h + a @ h
        h1 = jnp.maximum(z @ l["w1"] + l["b1"], 0.0) * s1 + t1
        h2 = jnp.maximum(h1 @ l["w2"] + l["b2"], 0.0) * s2 + t2
        h = h2
        xs.append(h)
    x_cat = jnp.concatenate(xs, axis=-1)             # JumpingKnowledge 'cat'
    pooled = pmat @ x_cat                            # global_mean_pool
    hid = jnp.maximum(pooled @ head["lin1_w"] + head["lin1_b"], 0.0)
    logits = hid @ head["lin2_w"] + head["lin2_b"]
    return jax.nn.log_softmax(logits, axis=-1)


if __name__ == "__main__":
    HIDDEN, NUM_LAYERS, NUM_CLASSES = 64, 8, 3
    N, E, G, F_IN_PAD = 64, 256, 4, 128   # raw node feature dim is 1 -> padded to 128 lanes

    key = jax.random.PRNGKey(0)
    key, kx, ke1, ke2 = jax.random.split(key, 4)

    # node features: original shape [N, 1]; zero-padded to [N, 128]
    x_raw = jax.random.normal(kx, (N, 1), dtype=jnp.float32)
    x_nodes = jnp.zeros((N, F_IN_PAD), jnp.float32).at[:, :1].set(x_raw)

    # random edge_index [2, E] and graph-assignment vector batch [N]
    src = jax.random.randint(ke1, (E,), 0, N)
    dst = jax.random.randint(ke2, (E,), 0, N)
    batch = jnp.arange(N, dtype=jnp.int32) // (N // G)

    # Graph-structure matrices built ONCE, outside the kernel hot path.
    # A[dst, src] = #edges src->dst  (matches GINConv 'add' aggregation)
    a_f32 = jnp.zeros((N, N), jnp.float32).at[dst, src].add(1.0)
    onehot = (batch[None, :] == jnp.arange(G)[:, None]).astype(jnp.float32)
    pmat = onehot / jnp.maximum(onehot.sum(axis=1, keepdims=True), 1.0)

    layers, head_p = make_raw_params(key, HIDDEN, NUM_LAYERS, NUM_CLASSES, F_IN_PAD)
    kp = pack_params(layers, head_p)

    fwd = jax.jit(gin_with_jk_forward)
    out = fwd(a_f32, pmat, x_nodes, kp)
    out = jax.block_until_ready(out)

    ref = reference_forward(a_f32, pmat, x_nodes, layers, head_p)

    assert out.shape == (G, NUM_CLASSES)
    assert bool(jnp.all(jnp.isfinite(out)))
    # rows of log_softmax must sum to ~1 in prob space
    assert bool(jnp.allclose(jnp.sum(jnp.exp(out), axis=-1), 1.0, atol=1e-4))
    # matches the f32 reference up to bf16 matmul rounding
    assert bool(jnp.allclose(out, ref, atol=2e-1)), \
        f"max abs diff {float(jnp.max(jnp.abs(out - ref)))}"
    print("KERNEL_OK")
</pallas_src>

<mosaic_0001>
module attributes {stable_mosaic.version = 11 : i64} {
  func.func @fused_gin_jk_kernel(%arg0: i32, %arg1: memref<8xf32, #tpu.memory_space<smem>>, %arg2: memref<64x64xbf16, #tpu.memory_space<vmem>>, %arg3: memref<64x128xf32, #tpu.memory_space<vmem>>, %arg4: memref<4x64xf32, #tpu.memory_space<vmem>>, %arg5: memref<128x64xbf16, #tpu.memory_space<vmem>>, %arg6: memref<7x64x64xbf16, #tpu.memory_space<vmem>>, %arg7: memref<8x64x64xbf16, #tpu.memory_space<vmem>>, %arg8: memref<8x4x64xf32, #tpu.memory_space<vmem>>, %arg9: memref<512x64xbf16, #tpu.memory_space<vmem>>, %arg10: memref<1x64xf32, #tpu.memory_space<vmem>>, %arg11: memref<64x3xbf16, #tpu.memory_space<vmem>>, %arg12: memref<1x3xf32, #tpu.memory_space<vmem>>, %arg13: memref<4x3xf32, #tpu.memory_space<vmem>>) attributes {dimension_semantics = [#tpu.dimension_semantics<arbitrary>], iteration_bounds = array<i64: 1>, scalar_prefetch = 0 : i64, scratch_operands = 0 : i64, tpu.core_type = #tpu.core_type<tc>, window_params = [{transform_indices = @transform_0, window_bounds = array<i64: 8>}, {pipeline_mode = #tpu.pipeline_mode<synchronous>, transform_indices = @transform_1, window_bounds = array<i64: 64, 64>}, {pipeline_mode = #tpu.pipeline_mode<synchronous>, transform_indices = @transform_2, window_bounds = array<i64: 64, 128>}, {pipeline_mode = #tpu.pipeline_mode<synchronous>, transform_indices = @transform_3, window_bounds = array<i64: 4, 64>}, {pipeline_mode = #tpu.pipeline_mode<synchronous>, transform_indices = @transform_4, window_bounds = array<i64: 128, 64>}, {pipeline_mode = #tpu.pipeline_mode<synchronous>, transform_indices = @transform_5, window_bounds = array<i64: 7, 64, 64>}, {pipeline_mode = #tpu.pipeline_mode<synchronous>, transform_indices = @transform_6, window_bounds = array<i64: 8, 64, 64>}, {pipeline_mode = #tpu.pipeline_mode<synchronous>, transform_indices = @transform_7, window_bounds = array<i64: 8, 4, 64>}, {pipeline_mode = #tpu.pipeline_mode<synchronous>, transform_indices = @transform_8, window_bounds = array<i64: 512, 64>}, {pipeline_mode = #tpu.pipeline_mode<synchronous>, transform_indices = @transform_9, window_bounds = array<i64: 1, 64>}, {pipeline_mode = #tpu.pipeline_mode<synchronous>, transform_indices = @transform_10, window_bounds = array<i64: 64, 3>}, {pipeline_mode = #tpu.pipeline_mode<synchronous>, transform_indices = @transform_11, window_bounds = array<i64: 1, 3>}, {pipeline_mode = #tpu.pipeline_mode<synchronous>, transform_indices = @transform_12, window_bounds = array<i64: 4, 3>}]} {
    %c0 = arith.constant 0 : index
    %c0_0 = arith.constant 0 : index
    %0 = vector.load %arg2[%c0, %c0_0] : memref<64x64xbf16, #tpu.memory_space<vmem>>, vector<64x64xbf16>
    %c0_1 = arith.constant 0 : index
    %c0_2 = arith.constant 0 : index
    %1 = vector.load %arg4[%c0_1, %c0_2] : memref<4x64xf32, #tpu.memory_space<vmem>>, vector<4x64xf32>
    %2 = arith.truncf %1 : vector<4x64xf32> to vector<4x64xbf16>
    %c0_3 = arith.constant 0 : index
    %c0_4 = arith.constant 0 : index
    %3 = vector.load %arg3[%c0_3, %c0_4] : memref<64x128xf32, #tpu.memory_space<vmem>>, vector<64x128xf32>
    %cst = arith.constant 0.000000e+00 : f32
    %4 = vector.broadcast %cst : f32 to vector<4x64xf32>
    %5 = arith.truncf %3 : vector<64x128xf32> to vector<64x128xbf16>
    %cst_5 = arith.constant dense<0.000000e+00> : vector<64x128xf32>
    %6 = tpu.matmul %0, %5, %cst_5 {dimension_numbers = #tpu.dot_dimension_numbers<[1], [0], [0], [1], [0, 0, 1, 1], [], []>} : vector<64x64xbf16>, vector<64x128xbf16>, vector<64x128xf32> -> vector<64x128xf32>
    %c0_6 = arith.constant 0 : index
    %7 = memref.load %arg1[%c0_6] : memref<8xf32, #tpu.memory_space<smem>>
    %cst_7 = arith.constant 1.000000e+00 : f32
    %8 = arith.addf %cst_7, %7 : f32
    %9 = vector.broadcast %8 : f32 to vector<64x128xf32>
    %10 = arith.mulf %9, %3 : vector<64x128xf32>
    %11 = arith.addf %10, %6 : vector<64x128xf32>
    %c0_8 = arith.constant 0 : index
    %c0_9 = arith.constant 0 : index
    %12 = vector.load %arg5[%c0_8, %c0_9] : memref<128x64xbf16, #tpu.memory_space<vmem>>, vector<128x64xbf16>
    %c0_10 = arith.constant 0 : index
    %c0_11 = arith.constant 0 : index
    %c0_12 = arith.constant 0 : index
    %13 = vector.load %arg7[%c0_10, %c0_11, %c0_12] : memref<8x64x64xbf16, #tpu.memory_space<vmem>>, vector<1x64x64xbf16>
    %14 = vector.shape_cast %13 : vector<1x64x64xbf16> to vector<64x64xbf16>
    %c0_13 = arith.constant 0 : index
    %c0_14 = arith.constant 0 : index
    %c0_15 = arith.constant 0 : index
    %15 = vector.load %arg8[%c0_13, %c0_14, %c0_15] : memref<8x4x64xf32, #tpu.memory_space<vmem>>, vector<1x4x64xf32>
    %16 = vector.shape_cast %15 : vector<1x4x64xf32> to vector<4x64xf32>
    %17 = vector.extract_strided_slice %16 {offsets = [0, 0], sizes = [1, 64], strides = [1, 1]} : vector<4x64xf32> to vector<1x64xf32>
    %18 = vector.extract_strided_slice %16 {offsets = [1, 0], sizes = [1, 64], strides = [1, 1]} : vector<4x64xf32> to vector<1x64xf32>
    %19 = vector.extract_strided_slice %16 {offsets = [2, 0], sizes = [1, 64], strides = [1, 1]} : vector<4x64xf32> to vector<1x64xf32>
    %20 = vector.extract_strided_slice %16 {offsets = [3, 0], sizes = [1, 64], strides = [1, 1]} : vector<4x64xf32> to vector<1x64xf32>
    %21 = arith.truncf %11 : vector<64x128xf32> to vector<64x128xbf16>
    %cst_16 = arith.constant dense<0.000000e+00> : vector<64x64xf32>
    %22 = tpu.matmul %21, %12, %cst_16 {dimension_numbers = #tpu.dot_dimension_numbers<[1], [0], [0], [1], [0, 0, 1, 1], [], []>} : vector<64x128xbf16>, vector<128x64xbf16>, vector<64x64xf32> -> vector<64x64xf32>
    %23 = vector.broadcast %17 : vector<1x64xf32> to vector<64x64xf32>
    %24 = arith.addf %22, %23 : vector<64x64xf32>
    %cst_17 = arith.constant 0.000000e+00 : f32
    %25 = vector.broadcast %cst_17 : f32 to vector<64x64xf32>
    %26 = arith.maximumf %24, %25 : vector<64x64xf32>
    %27 = arith.truncf %26 : vector<64x64xf32> to vector<64x64xbf16>
    %cst_18 = arith.constant dense<0.000000e+00> : vector<64x64xf32>
    %28 = tpu.matmul %27, %14, %cst_18 {dimension_numbers = #tpu.dot_dimension_numbers<[1], [0], [0], [1], [0, 0, 1, 1], [], []>} : vector<64x64xbf16>, vector<64x64xbf16>, vector<64x64xf32> -> vector<64x64xf32>
    %29 = vector.broadcast %18 : vector<1x64xf32> to vector<64x64xf32>
    %30 = arith.addf %28, %29 : vector<64x64xf32>
    %cst_19 = arith.constant 0.000000e+00 : f32
    %31 = vector.broadcast %cst_19 : f32 to vector<64x64xf32>
    %32 = arith.maximumf %30, %31 : vector<64x64xf32>
    %33 = vector.broadcast %19 : vector<1x64xf32> to vector<64x64xf32>
    %34 = arith.mulf %32, %33 : vector<64x64xf32>
    %35 = vector.broadcast %20 : vector<1x64xf32> to vector<64x64xf32>
    %36 = arith.addf %34, %35 : vector<64x64xf32>
    %37 = arith.truncf %36 : vector<64x64xf32> to vector<64x64xbf16>
    %cst_20 = arith.constant dense<0.000000e+00> : vector<4x64xf32>
    %38 = tpu.matmul %2, %37, %cst_20 {dimension_numbers = #tpu.dot_dimension_numbers<[1], [0], [0], [1], [0, 0, 1, 1], [], []>} : vector<4x64xbf16>, vector<64x64xbf16>, vector<4x64xf32> -> vector<4x64xf32>
    %39 = arith.truncf %38 : vector<4x64xf32> to vector<4x64xbf16>
    %c0_21 = arith.constant 0 : index
    %c0_22 = arith.constant 0 : index
    %40 = vector.load %arg9[%c0_21, %c0_22] : memref<512x64xbf16, #tpu.memory_space<vmem>>, vector<64x64xbf16>
    %cst_23 = arith.constant dense<0.000000e+00> : vector<4x64xf32>
    %41 = tpu.matmul %39, %40, %cst_23 {dimension_numbers = #tpu.dot_dimension_numbers<[1], [0], [0], [1], [0, 0, 1, 1], [], []>} : vector<4x64xbf16>, vector<64x64xbf16>, vector<4x64xf32> -> vector<4x64xf32>
    %42 = arith.addf %4, %41 : vector<4x64xf32>
    %43 = arith.truncf %36 : vector<64x64xf32> to vector<64x64xbf16>
    %cst_24 = arith.constant dense<0.000000e+00> : vector<64x64xf32>
    %44 = tpu.matmul %0, %43, %cst_24 {dimension_numbers = #tpu.dot_dimension_numbers<[1], [0], [0], [1], [0, 0, 1, 1], [], []>} : vector<64x64xbf16>, vector<64x64xbf16>, vector<64x64xf32> -> vector<64x64xf32>
    %c1 = arith.constant 1 : index
    %45 = memref.load %arg1[%c1] : memref<8xf32, #tpu.memory_space<smem>>
    %cst_25 = arith.constant 1.000000e+00 : f32
    %46 = arith.addf %cst_25, %45 : f32
    %47 = vector.broadcast %46 : f32 to vector<64x64xf32>
    %48 = arith.mulf %47, %36 : vector<64x64xf32>
    %49 = arith.addf %48, %44 : vector<64x64xf32>
    %c0_26 = arith.constant 0 : index
    %c0_27 = arith.constant 0 : index
    %c0_28 = arith.constant 0 : index
    %50 = vector.load %arg6[%c0_26, %c0_27, %c0_28] : memref<7x64x64xbf16, #tpu.memory_space<vmem>>, vector<1x64x64xbf16>
    %51 = vector.shape_cast %50 : vector<1x64x64xbf16> to vector<64x64xbf16>
    %c1_29 = arith.constant 1 : index
    %c0_30 = arith.constant 0 : index
    %c0_31 = arith.constant 0 : index
    %52 = vector.load %arg7[%c1_29, %c0_30, %c0_31] : memref<8x64x64xbf16, #tpu.memory_space<vmem>>, vector<1x64x64xbf16>
    %53 = vector.shape_cast %52 : vector<1x64x64xbf16> to vector<64x64xbf16>
    %c1_32 = arith.constant 1 : index
    %c0_33 = arith.constant 0 : index
    %c0_34 = arith.constant 0 : index
    %54 = vector.load %arg8[%c1_32, %c0_33, %c0_34] : memref<8x4x64xf32, #tpu.memory_space<vmem>>, vector<1x4x64xf32>
    %55 = vector.shape_cast %54 : vector<1x4x64xf32> to vector<4x64xf32>
    %56 = vector.extract_strided_slice %55 {offsets = [0, 0], sizes = [1, 64], strides = [1, 1]} : vector<4x64xf32> to vector<1x64xf32>
    %57 = vector.extract_strided_slice %55 {offsets = [1, 0], sizes = [1, 64], strides = [1, 1]} : vector<4x64xf32> to vector<1x64xf32>
    %58 = vector.extract_strided_slice %55 {offsets = [2, 0], sizes = [1, 64], strides = [1, 1]} : vector<4x64xf32> to vector<1x64xf32>
    %59 = vector.extract_strided_slice %55 {offsets = [3, 0], sizes = [1, 64], strides = [1, 1]} : vector<4x64xf32> to vector<1x64xf32>
    %60 = arith.truncf %49 : vector<64x64xf32> to vector<64x64xbf16>
    %cst_35 = arith.constant dense<0.000000e+00> : vector<64x64xf32>
    %61 = tpu.matmul %60, %51, %cst_35 {dimension_numbers = #tpu.dot_dimension_numbers<[1], [0], [0], [1], [0, 0, 1, 1], [], []>} : vector<64x64xbf16>, vector<64x64xbf16>, vector<64x64xf32> -> vector<64x64xf32>
    %62 = vector.broadcast %56 : vector<1x64xf32> to vector<64x64xf32>
    %63 = arith.addf %61, %62 : vector<64x64xf32>
    %cst_36 = arith.constant 0.000000e+00 : f32
    %64 = vector.broadcast %cst_36 : f32 to vector<64x64xf32>
    %65 = arith.maximumf %63, %64 : vector<64x64xf32>
    %66 = arith.truncf %65 : vector<64x64xf32> to vector<64x64xbf16>
    %cst_37 = arith.constant dense<0.000000e+00> : vector<64x64xf32>
    %67 = tpu.matmul %66, %53, %cst_37 {dimension_numbers = #tpu.dot_dimension_numbers<[1], [0], [0], [1], [0, 0, 1, 1], [], []>} : vector<64x64xbf16>, vector<64x64xbf16>, vector<64x64xf32> -> vector<64x64xf32>
    %68 = vector.broadcast %57 : vector<1x64xf32> to vector<64x64xf32>
    %69 = arith.addf %67, %68 : vector<64x64xf32>
    %cst_38 = arith.constant 0.000000e+00 : f32
    %70 = vector.broadcast %cst_38 : f32 to vector<64x64xf32>
    %71 = arith.maximumf %69, %70 : vector<64x64xf32>
    %72 = vector.broadcast %58 : vector<1x64xf32> to vector<64x64xf32>
    %73 = arith.mulf %71, %72 : vector<64x64xf32>
    %74 = vector.broadcast %59 : vector<1x64xf32> to vector<64x64xf32>
    %75 = arith.addf %73, %74 : vector<64x64xf32>
    %76 = arith.truncf %75 : vector<64x64xf32> to vector<64x64xbf16>
    %cst_39 = arith.constant dense<0.000000e+00> : vector<4x64xf32>
    %77 = tpu.matmul %2, %76, %cst_39 {dimension_numbers = #tpu.dot_dimension_numbers<[1], [0], [0], [1], [0, 0, 1, 1], [], []>} : vector<4x64xbf16>, vector<64x64xbf16>, vector<4x64xf32> -> vector<4x64xf32>
    %78 = arith.truncf %77 : vector<4x64xf32> to vector<4x64xbf16>
    %c64 = arith.constant 64 : index
    %c0_40 = arith.constant 0 : index
    %79 = vector.load %arg9[%c64, %c0_40] : memref<512x64xbf16, #tpu.memory_space<vmem>>, vector<64x64xbf16>
    %cst_41 = arith.constant dense<0.000000e+00> : vector<4x64xf32>
    %80 = tpu.matmul %78, %79, %cst_41 {dimension_numbers = #tpu.dot_dimension_numbers<[1], [0], [0], [1], [0, 0, 1, 1], [], []>} : vector<4x64xbf16>, vector<64x64xbf16>, vector<4x64xf32> -> vector<4x64xf32>
    %81 = arith.addf %42, %80 : vector<4x64xf32>
    %82 = arith.truncf %75 : vector<64x64xf32> to vector<64x64xbf16>
    %cst_42 = arith.constant dense<0.000000e+00> : vector<64x64xf32>
    %83 = tpu.matmul %0, %82, %cst_42 {dimension_numbers = #tpu.dot_dimension_numbers<[1], [0], [0], [1], [0, 0, 1, 1], [], []>} : vector<64x64xbf16>, vector<64x64xbf16>, vector<64x64xf32> -> vector<64x64xf32>
    %c2 = arith.constant 2 : index
    %84 = memref.load %arg1[%c2] : memref<8xf32, #tpu.memory_space<smem>>
    %cst_43 = arith.constant 1.000000e+00 : f32
    %85 = arith.addf %cst_43, %84 : f32
    %86 = vector.broadcast %85 : f32 to vector<64x64xf32>
    %87 = arith.mulf %86, %75 : vector<64x64xf32>
    %88 = arith.addf %87, %83 : vector<64x64xf32>
    %c1_44 = arith.constant 1 : index
    %c0_45 = arith.constant 0 : index
    %c0_46 = arith.constant 0 : index
    %89 = vector.load %arg6[%c1_44, %c0_45, %c0_46] : memref<7x64x64xbf16, #tpu.memory_space<vmem>>, vector<1x64x64xbf16>
    %90 = vector.shape_cast %89 : vector<1x64x64xbf16> to vector<64x64xbf16>
    %c2_47 = arith.constant 2 : index
    %c0_48 = arith.constant 0 : index
    %c0_49 = arith.constant 0 : index
    %91 = vector.load %arg7[%c2_47, %c0_48, %c0_49] : memref<8x64x64xbf16, #tpu.memory_space<vmem>>, vector<1x64x64xbf16>
    %92 = vector.shape_cast %91 : vector<1x64x64xbf16> to vector<64x64xbf16>
    %c2_50 = arith.constant 2 : index
    %c0_51 = arith.constant 0 : index
    %c0_52 = arith.constant 0 : index
    %93 = vector.load %arg8[%c2_50, %c0_51, %c0_52] : memref<8x4x64xf32, #tpu.memory_space<vmem>>, vector<1x4x64xf32>
    %94 = vector.shape_cast %93 : vector<1x4x64xf32> to vector<4x64xf32>
    %95 = vector.extract_strided_slice %94 {offsets = [0, 0], sizes = [1, 64], strides = [1, 1]} : vector<4x64xf32> to vector<1x64xf32>
    %96 = vector.extract_strided_slice %94 {offsets = [1, 0], sizes = [1, 64], strides = [1, 1]} : vector<4x64xf32> to vector<1x64xf32>
    %97 = vector.extract_strided_slice %94 {offsets = [2, 0], sizes = [1, 64], strides = [1, 1]} : vector<4x64xf32> to vector<1x64xf32>
    %98 = vector.extract_strided_slice %94 {offsets = [3, 0], sizes = [1, 64], strides = [1, 1]} : vector<4x64xf32> to vector<1x64xf32>
    %99 = arith.truncf %88 : vector<64x64xf32> to vector<64x64xbf16>
    %cst_53 = arith.constant dense<0.000000e+00> : vector<64x64xf32>
    %100 = tpu.matmul %99, %90, %cst_53 {dimension_numbers = #tpu.dot_dimension_numbers<[1], [0], [0], [1], [0, 0, 1, 1], [], []>} : vector<64x64xbf16>, vector<64x64xbf16>, vector<64x64xf32> -> vector<64x64xf32>
    %101 = vector.broadcast %95 : vector<1x64xf32> to vector<64x64xf32>
    %102 = arith.addf %100, %101 : vector<64x64xf32>
    %cst_54 = arith.constant 0.000000e+00 : f32
    %103 = vector.broadcast %cst_54 : f32 to vector<64x64xf32>
    %104 = arith.maximumf %102, %103 : vector<64x64xf32>
    %105 = arith.truncf %104 : vector<64x64xf32> to vector<64x64xbf16>
    %cst_55 = arith.constant dense<0.000000e+00> : vector<64x64xf32>
    %106 = tpu.matmul %105, %92, %cst_55 {dimension_numbers = #tpu.dot_dimension_numbers<[1], [0], [0], [1], [0, 0, 1, 1], [], []>} : vector<64x64xbf16>, vector<64x64xbf16>, vector<64x64xf32> -> vector<64x64xf32>
    %107 = vector.broadcast %96 : vector<1x64xf32> to vector<64x64xf32>
    %108 = arith.addf %106, %107 : vector<64x64xf32>
    %cst_56 = arith.constant 0.000000e+00 : f32
    %109 = vector.broadcast %cst_56 : f32 to vector<64x64xf32>
    %110 = arith.maximumf %108, %109 : vector<64x64xf32>
    %111 = vector.broadcast %97 : vector<1x64xf32> to vector<64x64xf32>
    %112 = arith.mulf %110, %111 : vector<64x64xf32>
    %113 = vector.broadcast %98 : vector<1x64xf32> to vector<64x64xf32>
    %114 = arith.addf %112, %113 : vector<64x64xf32>
    %115 = arith.truncf %114 : vector<64x64xf32> to vector<64x64xbf16>
    %cst_57 = arith.constant dense<0.000000e+00> : vector<4x64xf32>
    %116 = tpu.matmul %2, %115, %cst_57 {dimension_numbers = #tpu.dot_dimension_numbers<[1], [0], [0], [1], [0, 0, 1, 1], [], []>} : vector<4x64xbf16>, vector<64x64xbf16>, vector<4x64xf32> -> vector<4x64xf32>
    %117 = arith.truncf %116 : vector<4x64xf32> to vector<4x64xbf16>
    %c128 = arith.constant 128 : index
    %c0_58 = arith.constant 0 : index
    %118 = vector.load %arg9[%c128, %c0_58] : memref<512x64xbf16, #tpu.memory_space<vmem>>, vector<64x64xbf16>
    %cst_59 = arith.constant dense<0.000000e+00> : vector<4x64xf32>
    %119 = tpu.matmul %117, %118, %cst_59 {dimension_numbers = #tpu.dot_dimension_numbers<[1], [0], [0], [1], [0, 0, 1, 1], [], []>} : vector<4x64xbf16>, vector<64x64xbf16>, vector<4x64xf32> -> vector<4x64xf32>
    %120 = arith.addf %81, %119 : vector<4x64xf32>
    %121 = arith.truncf %114 : vector<64x64xf32> to vector<64x64xbf16>
    %cst_60 = arith.constant dense<0.000000e+00> : vector<64x64xf32>
    %122 = tpu.matmul %0, %121, %cst_60 {dimension_numbers = #tpu.dot_dimension_numbers<[1], [0], [0], [1], [0, 0, 1, 1], [], []>} : vector<64x64xbf16>, vector<64x64xbf16>, vector<64x64xf32> -> vector<64x64xf32>
    %c3 = arith.constant 3 : index
    %123 = memref.load %arg1[%c3] : memref<8xf32, #tpu.memory_space<smem>>
    %cst_61 = arith.constant 1.000000e+00 : f32
    %124 = arith.addf %cst_61, %123 : f32
    %125 = vector.broadcast %124 : f32 to vector<64x64xf32>
    %126 = arith.mulf %125, %114 : vector<64x64xf32>
    %127 = arith.addf %126, %122 : vector<64x64xf32>
    %c2_62 = arith.constant 2 : index
    %c0_63 = arith.constant 0 : index
    %c0_64 = arith.constant 0 : index
    %128 = vector.load %arg6[%c2_62, %c0_63, %c0_64] : memref<7x64x64xbf16, #tpu.memory_space<vmem>>, vector<1x64x64xbf16>
    %129 = vector.shape_cast %128 : vector<1x64x64xbf16> to vector<64x64xbf16>
    %c3_65 = arith.constant 3 : index
    %c0_66 = arith.constant 0 : index
    %c0_67 = arith.constant 0 : index
    %130 = vector.load %arg7[%c3_65, %c0_66, %c0_67] : memref<8x64x64xbf16, #tpu.memory_space<vmem>>, vector<1x64x64xbf16>
    %131 = vector.shape_cast %130 : vector<1x64x64xbf16> to vector<64x64xbf16>
    %c3_68 = arith.constant 3 : index
    %c0_69 = arith.constant 0 : index
    %c0_70 = arith.constant 0 : index
    %132 = vector.load %arg8[%c3_68, %c0_69, %c0_70] : memref<8x4x64xf32, #tpu.memory_space<vmem>>, vector<1x4x64xf32>
    %133 = vector.shape_cast %132 : vector<1x4x64xf32> to vector<4x64xf32>
    %134 = vector.extract_strided_slice %133 {offsets = [0, 0], sizes = [1, 64], strides = [1, 1]} : vector<4x64xf32> to vector<1x64xf32>
    %135 = vector.extract_strided_slice %133 {offsets = [1, 0], sizes = [1, 64], strides = [1, 1]} : vector<4x64xf32> to vector<1x64xf32>
    %136 = vector.extract_strided_slice %133 {offsets = [2, 0], sizes = [1, 64], strides = [1, 1]} : vector<4x64xf32> to vector<1x64xf32>
    %137 = vector.extract_strided_slice %133 {offsets = [3, 0], sizes = [1, 64], strides = [1, 1]} : vector<4x64xf32> to vector<1x64xf32>
    %138 = arith.truncf %127 : vector<64x64xf32> to vector<64x64xbf16>
    %cst_71 = arith.constant dense<0.000000e+00> : vector<64x64xf32>
    %139 = tpu.matmul %138, %129, %cst_71 {dimension_numbers = #tpu.dot_dimension_numbers<[1], [0], [0], [1], [0, 0, 1, 1], [], []>} : vector<64x64xbf16>, vector<64x64xbf16>, vector<64x64xf32> -> vector<64x64xf32>
    %140 = vector.broadcast %134 : vector<1x64xf32> to vector<64x64xf32>
    %141 = arith.addf %139, %140 : vector<64x64xf32>
    %cst_72 = arith.constant 0.000000e+00 : f32
    %142 = vector.broadcast %cst_72 : f32 to vector<64x64xf32>
    %143 = arith.maximumf %141, %142 : vector<64x64xf32>
    %144 = arith.truncf %143 : vector<64x64xf32> to vector<64x64xbf16>
    %cst_73 = arith.constant dense<0.000000e+00> : vector<64x64xf32>
    %145 = tpu.matmul %144, %131, %cst_73 {dimension_numbers = #tpu.dot_dimension_numbers<[1], [0], [0], [1], [0, 0, 1, 1], [], []>} : vector<64x64xbf16>, vector<64x64xbf16>, vector<64x64xf32> -> vector<64x64xf32>
    %146 = vector.broadcast %135 : vector<1x64xf32> to vector<64x64xf32>
    %147 = arith.addf %145, %146 : vector<64x64xf32>
    %cst_74 = arith.constant 0.000000e+00 : f32
    %148 = vector.broadcast %cst_74 : f32 to vector<64x64xf32>
    %149 = arith.maximumf %147, %148 : vector<64x64xf32>
    %150 = vector.broadcast %136 : vector<1x64xf32> to vector<64x64xf32>
    %151 = arith.mulf %149, %150 : vector<64x64xf32>
    %152 = vector.broadcast %137 : vector<1x64xf32> to vector<64x64xf32>
    %153 = arith.addf %151, %152 : vector<64x64xf32>
    %154 = arith.truncf %153 : vector<64x64xf32> to vector<64x64xbf16>
    %cst_75 = arith.constant dense<0.000000e+00> : vector<4x64xf32>
    %155 = tpu.matmul %2, %154, %cst_75 {dimension_numbers = #tpu.dot_dimension_numbers<[1], [0], [0], [1], [0, 0, 1, 1], [], []>} : vector<4x64xbf16>, vector<64x64xbf16>, vector<4x64xf32> -> vector<4x64xf32>
    %156 = arith.truncf %155 : vector<4x64xf32> to vector<4x64xbf16>
    %c192 = arith.constant 192 : index
    %c0_76 = arith.constant 0 : index
    %157 = vector.load %arg9[%c192, %c0_76] : memref<512x64xbf16, #tpu.memory_space<vmem>>, vector<64x64xbf16>
    %cst_77 = arith.constant dense<0.000000e+00> : vector<4x64xf32>
    %158 = tpu.matmul %156, %157, %cst_77 {dimension_numbers = #tpu.dot_dimension_numbers<[1], [0], [0], [1], [0, 0, 1, 1], [], []>} : vector<4x64xbf16>, vector<64x64xbf16>, vector<4x64xf32> -> vector<4x64xf32>
    %159 = arith.addf %120, %158 : vector<4x64xf32>
    %160 = arith.truncf %153 : vector<64x64xf32> to vector<64x64xbf16>
    %cst_78 = arith.constant dense<0.000000e+00> : vector<64x64xf32>
    %161 = tpu.matmul %0, %160, %cst_78 {dimension_numbers = #tpu.dot_dimension_numbers<[1], [0], [0], [1], [0, 0, 1, 1], [], []>} : vector<64x64xbf16>, vector<64x64xbf16>, vector<64x64xf32> -> vector<64x64xf32>
    %c4 = arith.constant 4 : index
    %162 = memref.load %arg1[%c4] : memref<8xf32, #tpu.memory_space<smem>>
    %cst_79 = arith.constant 1.000000e+00 : f32
    %163 = arith.addf %cst_79, %162 : f32
    %164 = vector.broadcast %163 : f32 to vector<64x64xf32>
    %165 = arith.mulf %164, %153 : vector<64x64xf32>
    %166 = arith.addf %165, %161 : vector<64x64xf32>
    %c3_80 = arith.constant 3 : index
    %c0_81 = arith.constant 0 : index
    %c0_82 = arith.constant 0 : index
    %167 = vector.load %arg6[%c3_80, %c0_81, %c0_82] : memref<7x64x64xbf16, #tpu.memory_space<vmem>>, vector<1x64x64xbf16>
    %168 = vector.shape_cast %167 : vector<1x64x64xbf16> to vector<64x64xbf16>
    %c4_83 = arith.constant 4 : index
    %c0_84 = arith.constant 0 : index
    %c0_85 = arith.constant 0 : index
    %169 = vector.load %arg7[%c4_83, %c0_84, %c0_85] : memref<8x64x64xbf16, #tpu.memory_space<vmem>>, vector<1x64x64xbf16>
    %170 = vector.shape_cast %169 : vector<1x64x64xbf16> to vector<64x64xbf16>
    %c4_86 = arith.constant 4 : index
    %c0_87 = arith.constant 0 : index
    %c0_88 = arith.constant 0 : index
    %171 = vector.load %arg8[%c4_86, %c0_87, %c0_88] : memref<8x4x64xf32, #tpu.memory_space<vmem>>, vector<1x4x64xf32>
    %172 = vector.shape_cast %171 : vector<1x4x64xf32> to vector<4x64xf32>
    %173 = vector.extract_strided_slice %172 {offsets = [0, 0], sizes = [1, 64], strides = [1, 1]} : vector<4x64xf32> to vector<1x64xf32>
    %174 = vector.extract_strided_slice %172 {offsets = [1, 0], sizes = [1, 64], strides = [1, 1]} : vector<4x64xf32> to vector<1x64xf32>
    %175 = vector.extract_strided_slice %172 {offsets = [2, 0], sizes = [1, 64], strides = [1, 1]} : vector<4x64xf32> to vector<1x64xf32>
    %176 = vector.extract_strided_slice %172 {offsets = [3, 0], sizes = [1, 64], strides = [1, 1]} : vector<4x64xf32> to vector<1x64xf32>
    %177 = arith.truncf %166 : vector<64x64xf32> to vector<64x64xbf16>
    %cst_89 = arith.constant dense<0.000000e+00> : vector<64x64xf32>
    %178 = tpu.matmul %177, %168, %cst_89 {dimension_numbers = #tpu.dot_dimension_numbers<[1], [0], [0], [1], [0, 0, 1, 1], [], []>} : vector<64x64xbf16>, vector<64x64xbf16>, vector<64x64xf32> -> vector<64x64xf32>
    %179 = vector.broadcast %173 : vector<1x64xf32> to vector<64x64xf32>
    %180 = arith.addf %178, %179 : vector<64x64xf32>
    %cst_90 = arith.constant 0.000000e+00 : f32
    %181 = vector.broadcast %cst_90 : f32 to vector<64x64xf32>
    %182 = arith.maximumf %180, %181 : vector<64x64xf32>
    %183 = arith.truncf %182 : vector<64x64xf32> to vector<64x64xbf16>
    %cst_91 = arith.constant dense<0.000000e+00> : vector<64x64xf32>
    %184 = tpu.matmul %183, %170, %cst_91 {dimension_numbers = #tpu.dot_dimension_numbers<[1], [0], [0], [1], [0, 0, 1, 1], [], []>} : vector<64x64xbf16>, vector<64x64xbf16>, vector<64x64xf32> -> vector<64x64xf32>
    %185 = vector.broadcast %174 : vector<1x64xf32> to vector<64x64xf32>
    %186 = arith.addf %184, %185 : vector<64x64xf32>
    %cst_92 = arith.constant 0.000000e+00 : f32
    %187 = vector.broadcast %cst_92 : f32 to vector<64x64xf32>
    %188 = arith.maximumf %186, %187 : vector<64x64xf32>
    %189 = vector.broadcast %175 : vector<1x64xf32> to vector<64x64xf32>
    %190 = arith.mulf %188, %189 : vector<64x64xf32>
    %191 = vector.broadcast %176 : vector<1x64xf32> to vector<64x64xf32>
    %192 = arith.addf %190, %191 : vector<64x64xf32>
    %193 = arith.truncf %192 : vector<64x64xf32> to vector<64x64xbf16>
    %cst_93 = arith.constant dense<0.000000e+00> : vector<4x64xf32>
    %194 = tpu.matmul %2, %193, %cst_93 {dimension_numbers = #tpu.dot_dimension_numbers<[1], [0], [0], [1], [0, 0, 1, 1], [], []>} : vector<4x64xbf16>, vector<64x64xbf16>, vector<4x64xf32> -> vector<4x64xf32>
    %195 = arith.truncf %194 : vector<4x64xf32> to vector<4x64xbf16>
    %c256 = arith.constant 256 : index
    %c0_94 = arith.constant 0 : index
    %196 = vector.load %arg9[%c256, %c0_94] : memref<512x64xbf16, #tpu.memory_space<vmem>>, vector<64x64xbf16>
    %cst_95 = arith.constant dense<0.000000e+00> : vector<4x64xf32>
    %197 = tpu.matmul %195, %196, %cst_95 {dimension_numbers = #tpu.dot_dimension_numbers<[1], [0], [0], [1], [0, 0, 1, 1], [], []>} : vector<4x64xbf16>, vector<64x64xbf16>, vector<4x64xf32> -> vector<4x64xf32>
    %198 = arith.addf %159, %197 : vector<4x64xf32>
    %199 = arith.truncf %192 : vector<64x64xf32> to vector<64x64xbf16>
    %cst_96 = arith.constant dense<0.000000e+00> : vector<64x64xf32>
    %200 = tpu.matmul %0, %199, %cst_96 {dimension_numbers = #tpu.dot_dimension_numbers<[1], [0], [0], [1], [0, 0, 1, 1], [], []>} : vector<64x64xbf16>, vector<64x64xbf16>, vector<64x64xf32> -> vector<64x64xf32>
    %c5 = arith.constant 5 : index
    %201 = memref.load %arg1[%c5] : memref<8xf32, #tpu.memory_space<smem>>
    %cst_97 = arith.constant 1.000000e+00 : f32
    %202 = arith.addf %cst_97, %201 : f32
    %203 = vector.broadcast %202 : f32 to vector<64x64xf32>
    %204 = arith.mulf %203, %192 : vector<64x64xf32>
    %205 = arith.addf %204, %200 : vector<64x64xf32>
    %c4_98 = arith.constant 4 : index
    %c0_99 = arith.constant 0 : index
    %c0_100 = arith.constant 0 : index
    %206 = vector.load %arg6[%c4_98, %c0_99, %c0_100] : memref<7x64x64xbf16, #tpu.memory_space<vmem>>, vector<1x64x64xbf16>
    %207 = vector.shape_cast %206 : vector<1x64x64xbf16> to vector<64x64xbf16>
    %c5_101 = arith.constant 5 : index
    %c0_102 = arith.constant 0 : index
    %c0_103 = arith.constant 0 : index
    %208 = vector.load %arg7[%c5_101, %c0_102, %c0_103] : memref<8x64x64xbf16, #tpu.memory_space<vmem>>, vector<1x64x64xbf16>
    %209 = vector.shape_cast %208 : vector<1x64x64xbf16> to vector<64x64xbf16>
    %c5_104 = arith.constant 5 : index
    %c0_105 = arith.constant 0 : index
    %c0_106 = arith.constant 0 : index
    %210 = vector.load %arg8[%c5_104, %c0_105, %c0_106] : memref<8x4x64xf32, #tpu.memory_space<vmem>>, vector<1x4x64xf32>
    %211 = vector.shape_cast %210 : vector<1x4x64xf32> to vector<4x64xf32>
    %212 = vector.extract_strided_slice %211 {offsets = [0, 0], sizes = [1, 64], strides = [1, 1]} : vector<4x64xf32> to vector<1x64xf32>
    %213 = vector.extract_strided_slice %211 {offsets = [1, 0], sizes = [1, 64], strides = [1, 1]} : vector<4x64xf32> to vector<1x64xf32>
    %214 = vector.extract_strided_slice %211 {offsets = [2, 0], sizes = [1, 64], strides = [1, 1]} : vector<4x64xf32> to vector<1x64xf32>
    %215 = vector.extract_strided_slice %211 {offsets = [3, 0], sizes = [1, 64], strides = [1, 1]} : vector<4x64xf32> to vector<1x64xf32>
    %216 = arith.truncf %205 : vector<64x64xf32> to vector<64x64xbf16>
    %cst_107 = arith.constant dense<0.000000e+00> : vector<64x64xf32>
    %217 = tpu.matmul %216, %207, %cst_107 {dimension_numbers = #tpu.dot_dimension_numbers<[1], [0], [0], [1], [0, 0, 1, 1], [], []>} : vector<64x64xbf16>, vector<64x64xbf16>, vector<64x64xf32> -> vector<64x64xf32>
    %218 = vector.broadcast %212 : vector<1x64xf32> to vector<64x64xf32>
    %219 = arith.addf %217, %218 : vector<64x64xf32>
    %cst_108 = arith.constant 0.000000e+00 : f32
    %220 = vector.broadcast %cst_108 : f32 to vector<64x64xf32>
    %221 = arith.maximumf %219, %220 : vector<64x64xf32>
    %222 = arith.truncf %221 : vector<64x64xf32> to vector<64x64xbf16>
    %cst_109 = arith.constant dense<0.000000e+00> : vector<64x64xf32>
    %223 = tpu.matmul %222, %209, %cst_109 {dimension_numbers = #tpu.dot_dimension_numbers<[1], [0], [0], [1], [0, 0, 1, 1], [], []>} : vector<64x64xbf16>, vector<64x64xbf16>, vector<64x64xf32> -> vector<64x64xf32>
    %224 = vector.broadcast %213 : vector<1x64xf32> to vector<64x64xf32>
    %225 = arith.addf %223, %224 : vector<64x64xf32>
    %cst_110 = arith.constant 0.000000e+00 : f32
    %226 = vector.broadcast %cst_110 : f32 to vector<64x64xf32>
    %227 = arith.maximumf %225, %226 : vector<64x64xf32>
    %228 = vector.broadcast %214 : vector<1x64xf32> to vector<64x64xf32>
    %229 = arith.mulf %227, %228 : vector<64x64xf32>
    %230 = vector.broadcast %215 : vector<1x64xf32> to vector<64x64xf32>
    %231 = arith.addf %229, %230 : vector<64x64xf32>
    %232 = arith.truncf %231 : vector<64x64xf32> to vector<64x64xbf16>
    %cst_111 = arith.constant dense<0.000000e+00> : vector<4x64xf32>
    %233 = tpu.matmul %2, %232, %cst_111 {dimension_numbers = #tpu.dot_dimension_numbers<[1], [0], [0], [1], [0, 0, 1, 1], [], []>} : vector<4x64xbf16>, vector<64x64xbf16>, vector<4x64xf32> -> vector<4x64xf32>
    %234 = arith.truncf %233 : vector<4x64xf32> to vector<4x64xbf16>
    %c320 = arith.constant 320 : index
    %c0_112 = arith.constant 0 : index
    %235 = vector.load %arg9[%c320, %c0_112] : memref<512x64xbf16, #tpu.memory_space<vmem>>, vector<64x64xbf16>
    %cst_113 = arith.constant dense<0.000000e+00> : vector<4x64xf32>
    %236 = tpu.matmul %234, %235, %cst_113 {dimension_numbers = #tpu.dot_dimension_numbers<[1], [0], [0], [1], [0, 0, 1, 1], [], []>} : vector<4x64xbf16>, vector<64x64xbf16>, vector<4x64xf32> -> vector<4x64xf32>
    %237 = arith.addf %198, %236 : vector<4x64xf32>
    %238 = arith.truncf %231 : vector<64x64xf32> to vector<64x64xbf16>
    %cst_114 = arith.constant dense<0.000000e+00> : vector<64x64xf32>
    %239 = tpu.matmul %0, %238, %cst_114 {dimension_numbers = #tpu.dot_dimension_numbers<[1], [0], [0], [1], [0, 0, 1, 1], [], []>} : vector<64x64xbf16>, vector<64x64xbf16>, vector<64x64xf32> -> vector<64x64xf32>
    %c6 = arith.constant 6 : index
    %240 = memref.load %arg1[%c6] : memref<8xf32, #tpu.memory_space<smem>>
    %cst_115 = arith.constant 1.000000e+00 : f32
    %241 = arith.addf %cst_115, %240 : f32
    %242 = vector.broadcast %241 : f32 to vector<64x64xf32>
    %243 = arith.mulf %242, %231 : vector<64x64xf32>
    %244 = arith.addf %243, %239 : vector<64x64xf32>
    %c5_116 = arith.constant 5 : index
    %c0_117 = arith.constant 0 : index
    %c0_118 = arith.constant 0 : index
    %245 = vector.load %arg6[%c5_116, %c0_117, %c0_118] : memref<7x64x64xbf16, #tpu.memory_space<vmem>>, vector<1x64x64xbf16>
    %246 = vector.shape_cast %245 : vector<1x64x64xbf16> to vector<64x64xbf16>
    %c6_119 = arith.constant 6 : index
    %c0_120 = arith.constant 0 : index
    %c0_121 = arith.constant 0 : index
    %247 = vector.load %arg7[%c6_119, %c0_120, %c0_121] : memref<8x64x64xbf16, #tpu.memory_space<vmem>>, vector<1x64x64xbf16>
    %248 = vector.shape_cast %247 : vector<1x64x64xbf16> to vector<64x64xbf16>
    %c6_122 = arith.constant 6 : index
    %c0_123 = arith.constant 0 : index
    %c0_124 = arith.constant 0 : index
    %249 = vector.load %arg8[%c6_122, %c0_123, %c0_124] : memref<8x4x64xf32, #tpu.memory_space<vmem>>, vector<1x4x64xf32>
    %250 = vector.shape_cast %249 : vector<1x4x64xf32> to vector<4x64xf32>
    %251 = vector.extract_strided_slice %250 {offsets = [0, 0], sizes = [1, 64], strides = [1, 1]} : vector<4x64xf32> to vector<1x64xf32>
    %252 = vector.extract_strided_slice %250 {offsets = [1, 0], sizes = [1, 64], strides = [1, 1]} : vector<4x64xf32> to vector<1x64xf32>
    %253 = vector.extract_strided_slice %250 {offsets = [2, 0], sizes = [1, 64], strides = [1, 1]} : vector<4x64xf32> to vector<1x64xf32>
    %254 = vector.extract_strided_slice %250 {offsets = [3, 0], sizes = [1, 64], strides = [1, 1]} : vector<4x64xf32> to vector<1x64xf32>
    %255 = arith.truncf %244 : vector<64x64xf32> to vector<64x64xbf16>
    %cst_125 = arith.constant dense<0.000000e+00> : vector<64x64xf32>
    %256 = tpu.matmul %255, %246, %cst_125 {dimension_numbers = #tpu.dot_dimension_numbers<[1], [0], [0], [1], [0, 0, 1, 1], [], []>} : vector<64x64xbf16>, vector<64x64xbf16>, vector<64x64xf32> -> vector<64x64xf32>
    %257 = vector.broadcast %251 : vector<1x64xf32> to vector<64x64xf32>
    %258 = arith.addf %256, %257 : vector<64x64xf32>
    %cst_126 = arith.constant 0.000000e+00 : f32
    %259 = vector.broadcast %cst_126 : f32 to vector<64x64xf32>
    %260 = arith.maximumf %258, %259 : vector<64x64xf32>
    %261 = arith.truncf %260 : vector<64x64xf32> to vector<64x64xbf16>
    %cst_127 = arith.constant dense<0.000000e+00> : vector<64x64xf32>
    %262 = tpu.matmul %261, %248, %cst_127 {dimension_numbers = #tpu.dot_dimension_numbers<[1], [0], [0], [1], [0, 0, 1, 1], [], []>} : vector<64x64xbf16>, vector<64x64xbf16>, vector<64x64xf32> -> vector<64x64xf32>
    %263 = vector.broadcast %252 : vector<1x64xf32> to vector<64x64xf32>
    %264 = arith.addf %262, %263 : vector<64x64xf32>
    %cst_128 = arith.constant 0.000000e+00 : f32
    %265 = vector.broadcast %cst_128 : f32 to vector<64x64xf32>
    %266 = arith.maximumf %264, %265 : vector<64x64xf32>
    %267 = vector.broadcast %253 : vector<1x64xf32> to vector<64x64xf32>
    %268 = arith.mulf %266, %267 : vector<64x64xf32>
    %269 = vector.broadcast %254 : vector<1x64xf32> to vector<64x64xf32>
    %270 = arith.addf %268, %269 : vector<64x64xf32>
    %271 = arith.truncf %270 : vector<64x64xf32> to vector<64x64xbf16>
    %cst_129 = arith.constant dense<0.000000e+00> : vector<4x64xf32>
    %272 = tpu.matmul %2, %271, %cst_129 {dimension_numbers = #tpu.dot_dimension_numbers<[1], [0], [0], [1], [0, 0, 1, 1], [], []>} : vector<4x64xbf16>, vector<64x64xbf16>, vector<4x64xf32> -> vector<4x64xf32>
    %273 = arith.truncf %272 : vector<4x64xf32> to vector<4x64xbf16>
    %c384 = arith.constant 384 : index
    %c0_130 = arith.constant 0 : index
    %274 = vector.load %arg9[%c384, %c0_130] : memref<512x64xbf16, #tpu.memory_space<vmem>>, vector<64x64xbf16>
    %cst_131 = arith.constant dense<0.000000e+00> : vector<4x64xf32>
    %275 = tpu.matmul %273, %274, %cst_131 {dimension_numbers = #tpu.dot_dimension_numbers<[1], [0], [0], [1], [0, 0, 1, 1], [], []>} : vector<4x64xbf16>, vector<64x64xbf16>, vector<4x64xf32> -> vector<4x64xf32>
    %276 = arith.addf %237, %275 : vector<4x64xf32>
    %277 = arith.truncf %270 : vector<64x64xf32> to vector<64x64xbf16>
    %cst_132 = arith.constant dense<0.000000e+00> : vector<64x64xf32>
    %278 = tpu.matmul %0, %277, %cst_132 {dimension_numbers = #tpu.dot_dimension_numbers<[1], [0], [0], [1], [0, 0, 1, 1], [], []>} : vector<64x64xbf16>, vector<64x64xbf16>, vector<64x64xf32> -> vector<64x64xf32>
    %c7 = arith.constant 7 : index
    %279 = memref.load %arg1[%c7] : memref<8xf32, #tpu.memory_space<smem>>
    %cst_133 = arith.constant 1.000000e+00 : f32
    %280 = arith.addf %cst_133, %279 : f32
    %281 = vector.broadcast %280 : f32 to vector<64x64xf32>
    %282 = arith.mulf %281, %270 : vector<64x64xf32>
    %283 = arith.addf %282, %278 : vector<64x64xf32>
    %c6_134 = arith.constant 6 : index
    %c0_135 = arith.constant 0 : index
    %c0_136 = arith.constant 0 : index
    %284 = vector.load %arg6[%c6_134, %c0_135, %c0_136] : memref<7x64x64xbf16, #tpu.memory_space<vmem>>, vector<1x64x64xbf16>
    %285 = vector.shape_cast %284 : vector<1x64x64xbf16> to vector<64x64xbf16>
    %c7_137 = arith.constant 7 : index
    %c0_138 = arith.constant 0 : index
    %c0_139 = arith.constant 0 : index
    %286 = vector.load %arg7[%c7_137, %c0_138, %c0_139] : memref<8x64x64xbf16, #tpu.memory_space<vmem>>, vector<1x64x64xbf16>
    %287 = vector.shape_cast %286 : vector<1x64x64xbf16> to vector<64x64xbf16>
    %c7_140 = arith.constant 7 : index
    %c0_141 = arith.constant 0 : index
    %c0_142 = arith.constant 0 : index
    %288 = vector.load %arg8[%c7_140, %c0_141, %c0_142] : memref<8x4x64xf32, #tpu.memory_space<vmem>>, vector<1x4x64xf32>
    %289 = vector.shape_cast %288 : vector<1x4x64xf32> to vector<4x64xf32>
    %290 = vector.extract_strided_slice %289 {offsets = [0, 0], sizes = [1, 64], strides = [1, 1]} : vector<4x64xf32> to vector<1x64xf32>
    %291 = vector.extract_strided_slice %289 {offsets = [1, 0], sizes = [1, 64], strides = [1, 1]} : vector<4x64xf32> to vector<1x64xf32>
    %292 = vector.extract_strided_slice %289 {offsets = [2, 0], sizes = [1, 64], strides = [1, 1]} : vector<4x64xf32> to vector<1x64xf32>
    %293 = vector.extract_strided_slice %289 {offsets = [3, 0], sizes = [1, 64], strides = [1, 1]} : vector<4x64xf32> to vector<1x64xf32>
    %294 = arith.truncf %283 : vector<64x64xf32> to vector<64x64xbf16>
    %cst_143 = arith.constant dense<0.000000e+00> : vector<64x64xf32>
    %295 = tpu.matmul %294, %285, %cst_143 {dimension_numbers = #tpu.dot_dimension_numbers<[1], [0], [0], [1], [0, 0, 1, 1], [], []>} : vector<64x64xbf16>, vector<64x64xbf16>, vector<64x64xf32> -> vector<64x64xf32>
    %296 = vector.broadcast %290 : vector<1x64xf32> to vector<64x64xf32>
    %297 = arith.addf %295, %296 : vector<64x64xf32>
    %cst_144 = arith.constant 0.000000e+00 : f32
    %298 = vector.broadcast %cst_144 : f32 to vector<64x64xf32>
    %299 = arith.maximumf %297, %298 : vector<64x64xf32>
    %300 = arith.truncf %299 : vector<64x64xf32> to vector<64x64xbf16>
    %cst_145 = arith.constant dense<0.000000e+00> : vector<64x64xf32>
    %301 = tpu.matmul %300, %287, %cst_145 {dimension_numbers = #tpu.dot_dimension_numbers<[1], [0], [0], [1], [0, 0, 1, 1], [], []>} : vector<64x64xbf16>, vector<64x64xbf16>, vector<64x64xf32> -> vector<64x64xf32>
    %302 = vector.broadcast %291 : vector<1x64xf32> to vector<64x64xf32>
    %303 = arith.addf %301, %302 : vector<64x64xf32>
    %cst_146 = arith.constant 0.000000e+00 : f32
    %304 = vector.broadcast %cst_146 : f32 to vector<64x64xf32>
    %305 = arith.maximumf %303, %304 : vector<64x64xf32>
    %306 = vector.broadcast %292 : vector<1x64xf32> to vector<64x64xf32>
    %307 = arith.mulf %305, %306 : vector<64x64xf32>
    %308 = vector.broadcast %293 : vector<1x64xf32> to vector<64x64xf32>
    %309 = arith.addf %307, %308 : vector<64x64xf32>
    %310 = arith.truncf %309 : vector<64x64xf32> to vector<64x64xbf16>
    %cst_147 = arith.constant dense<0.000000e+00> : vector<4x64xf32>
    %311 = tpu.matmul %2, %310, %cst_147 {dimension_numbers = #tpu.dot_dimension_numbers<[1], [0], [0], [1], [0, 0, 1, 1], [], []>} : vector<4x64xbf16>, vector<64x64xbf16>, vector<4x64xf32> -> vector<4x64xf32>
    %312 = arith.truncf %311 : vector<4x64xf32> to vector<4x64xbf16>
    %c448 = arith.constant 448 : index
    %c0_148 = arith.constant 0 : index
    %313 = vector.load %arg9[%c448, %c0_148] : memref<512x64xbf16, #tpu.memory_space<vmem>>, vector<64x64xbf16>
    %cst_149 = arith.constant dense<0.000000e+00> : vector<4x64xf32>
    %314 = tpu.matmul %312, %313, %cst_149 {dimension_numbers = #tpu.dot_dimension_numbers<[1], [0], [0], [1], [0, 0, 1, 1], [], []>} : vector<4x64xbf16>, vector<64x64xbf16>, vector<4x64xf32> -> vector<4x64xf32>
    %315 = arith.addf %276, %314 : vector<4x64xf32>
    %c0_150 = arith.constant 0 : index
    %c0_151 = arith.constant 0 : index
    %316 = vector.load %arg10[%c0_150, %c0_151] : memref<1x64xf32, #tpu.memory_space<vmem>>, vector<1x64xf32>
    %317 = vector.broadcast %316 : vector<1x64xf32> to vector<4x64xf32>
    %318 = arith.addf %315, %317 : vector<4x64xf32>
    %cst_152 = arith.constant 0.000000e+00 : f32
    %319 = vector.broadcast %cst_152 : f32 to vector<4x64xf32>
    %320 = arith.maximumf %318, %319 : vector<4x64xf32>
    %321 = arith.truncf %320 : vector<4x64xf32> to vector<4x64xbf16>
    %c0_153 = arith.constant 0 : index
    %c0_154 = arith.constant 0 : index
    %322 = vector.load %arg11[%c0_153, %c0_154] : memref<64x3xbf16, #tpu.memory_space<vmem>>, vector<64x3xbf16>
    %cst_155 = arith.constant dense<0.000000e+00> : vector<4x3xf32>
    %323 = tpu.matmul %321, %322, %cst_155 {dimension_numbers = #tpu.dot_dimension_numbers<[1], [0], [0], [1], [0, 0, 1, 1], [], []>} : vector<4x64xbf16>, vector<64x3xbf16>, vector<4x3xf32> -> vector<4x3xf32>
    %c0_156 = arith.constant 0 : index
    %c0_157 = arith.constant 0 : index
    %324 = vector.load %arg12[%c0_156, %c0_157] : memref<1x3xf32, #tpu.memory_space<vmem>>, vector<1x3xf32>
    %325 = vector.broadcast %324 : vector<1x3xf32> to vector<4x3xf32>
    %326 = arith.addf %323, %325 : vector<4x3xf32>
    %cst_158 = arith.constant dense<0xFF800000> : vector<4xf32>
    %327 = vector.multi_reduction <maximumf>, %326, %cst_158 [1] : vector<4x3xf32> to vector<4xf32>
    %328 = vector.shape_cast %327 : vector<4xf32> to vector<4x1xf32>
    %329 = vector.broadcast %328 : vector<4x1xf32> to vector<4x3xf32>
    %330 = arith.subf %326, %329 : vector<4x3xf32>
    %331 = math.exp %330 : vector<4x3xf32>
    %cst_159 = arith.constant dense<0.000000e+00> : vector<4xf32>
    %332 = vector.multi_reduction <add>, %331, %cst_159 [1] : vector<4x3xf32> to vector<4xf32>
    %333 = vector.shape_cast %332 : vector<4xf32> to vector<4x1xf32>
    %334 = math.log %333 : vector<4x1xf32>
    %335 = vector.broadcast %334 : vector<4x1xf32> to vector<4x3xf32>
    %336 = arith.subf %330, %335 : vector<4x3xf32>
    %c0_160 = arith.constant 0 : index
    %c0_161 = arith.constant 0 : index
    %337 = vector.load %arg13[%c0_160, %c0_161] : memref<4x3xf32, #tpu.memory_space<vmem>>, vector<4x3xf32>
    tpu.vector_store %arg13[%c0_160, %c0_161], %336 {strides = array<i32>} : memref<4x3xf32, #tpu.memory_space<vmem>>, vector<4x3xf32>,
    return
  }
  func.func @transform_0(%arg0: i32) -> i32 {
    %c0_i32 = arith.constant 0 : i32
    %c0_i32_0 = arith.constant 0 : i32
    return %c0_i32 : i32
  }
  func.func @transform_1(%arg0: i32) -> (i32, i32) {
    %c0_i32 = arith.constant 0 : i32
    %c0_i32_0 = arith.constant 0 : i32
    %c0_i32_1 = arith.constant 0 : i32
    return %c0_i32, %c0_i32_0 : i32, i32
  }
  func.func @transform_2(%arg0: i32) -> (i32, i32) {
    %c0_i32 = arith.constant 0 : i32
    %c0_i32_0 = arith.constant 0 : i32
    %c0_i32_1 = arith.constant 0 : i32
    return %c0_i32, %c0_i32_0 : i32, i32
  }
  func.func @transform_3(%arg0: i32) -> (i32, i32) {
    %c0_i32 = arith.constant 0 : i32
    %c0_i32_0 = arith.constant 0 : i32
    %c0_i32_1 = arith.constant 0 : i32
    return %c0_i32, %c0_i32_0 : i32, i32
  }
  func.func @transform_4(%arg0: i32) -> (i32, i32) {
    %c0_i32 = arith.constant 0 : i32
    %c0_i32_0 = arith.constant 0 : i32
    %c0_i32_1 = arith.constant 0 : i32
    return %c0_i32, %c0_i32_0 : i32, i32
  }
  func.func @transform_5(%arg0: i32) -> (i32, i32, i32) {
    %c0_i32 = arith.constant 0 : i32
    %c0_i32_0 = arith.constant 0 : i32
    %c0_i32_1 = arith.constant 0 : i32
    %c0_i32_2 = arith.constant 0 : i32
    return %c0_i32, %c0_i32_0, %c0_i32_1 : i32, i32, i32
  }
  func.func @transform_6(%arg0: i32) -> (i32, i32, i32) {
    %c0_i32 = arith.constant 0 : i32
    %c0_i32_0 = arith.constant 0 : i32
    %c0_i32_1 = arith.constant 0 : i32
    %c0_i32_2 = arith.constant 0 : i32
    return %c0_i32, %c0_i32_0, %c0_i32_1 : i32, i32, i32
  }
  func.func @transform_7(%arg0: i32) -> (i32, i32, i32) {
    %c0_i32 = arith.constant 0 : i32
    %c0_i32_0 = arith.constant 0 : i32
    %c0_i32_1 = arith.constant 0 : i32
    %c0_i32_2 = arith.constant 0 : i32
    return %c0_i32, %c0_i32_0, %c0_i32_1 : i32, i32, i32
  }
  func.func @transform_8(%arg0: i32) -> (i32, i32) {
    %c0_i32 = arith.constant 0 : i32
    %c0_i32_0 = arith.constant 0 : i32
    %c0_i32_1 = arith.constant 0 : i32
    return %c0_i32, %c0_i32_0 : i32, i32
  }
  func.func @transform_9(%arg0: i32) -> (i32, i32) {
    %c0_i32 = arith.constant 0 : i32
    %c0_i32_0 = arith.constant 0 : i32
    %c0_i32_1 = arith.constant 0 : i32
    return %c0_i32, %c0_i32_0 : i32, i32
  }
  func.func @transform_10(%arg0: i32) -> (i32, i32) {
    %c0_i32 = arith.constant 0 : i32
    %c0_i32_0 = arith.constant 0 : i32
    %c0_i32_1 = arith.constant 0 : i32
    return %c0_i32, %c0_i32_0 : i32, i32
  }
  func.func @transform_11(%arg0: i32) -> (i32, i32) {
    %c0_i32 = arith.constant 0 : i32
    %c0_i32_0 = arith.constant 0 : i32
    %c0_i32_1 = arith.constant 0 : i32
    return %c0_i32, %c0_i32_0 : i32, i32
  }
  func.func @transform_12(%arg0: i32) -> (i32, i32) {
    %c0_i32 = arith.constant 0 : i32
    %c0_i32_0 = arith.constant 0 : i32
    %c0_i32_1 = arith.constant 0 : i32
    return %c0_i32, %c0_i32_0 : i32, i32
  }
}

</mosaic_0001>

<llo_original>
// kernel: gin_with_jk_forward.1
$region0: #{gin_with_jk_forward.1}
  #allocation0 [shape = 'u32[]', space=smem, size = 0x4, offset = 0x4, fixed_abs, tag = 'smem constant byte address 0x4 - core index']
  #allocation1 [shape = 'u32[144,128]{1,0:T(1,128)}', space=vmem, size = 0x12000, scoped, tag = 'internal scratch']
  %s0 = inlined_call_operand.hbm [shape: f32[8], index: 0, kind: input, shape index: {}]
  %s1 = inlined_call_operand.vmem [shape: bf16[64,64], index: 1, kind: input, shape index: {}]
  %s2 = inlined_call_operand.hbm [shape: f32[64,128], index: 2, kind: input, shape index: {}]
  %s3 = inlined_call_operand.hbm [shape: f32[4,64], index: 3, kind: input, shape index: {}]
  %s4 = inlined_call_operand.vmem [shape: bf16[128,64], index: 4, kind: input, shape index: {}]
  %s5 = inlined_call_operand.vmem [shape: bf16[7,64,64], index: 5, kind: input, shape index: {}]
  %s6 = inlined_call_operand.vmem [shape: bf16[8,64,64], index: 6, kind: input, shape index: {}]
  %s7 = inlined_call_operand.hbm [shape: f32[8,4,64], index: 7, kind: input, shape index: {}]
  %s8 = inlined_call_operand.vmem [shape: bf16[512,64], index: 8, kind: input, shape index: {}]
  %s9 = inlined_call_operand.hbm [shape: f32[1,64], index: 9, kind: input, shape index: {}]
  %s10 = inlined_call_operand.vmem [shape: bf16[64,3], index: 10, kind: input, shape index: {}]
  %s11 = inlined_call_operand.hbm [shape: f32[1,3], index: 11, kind: input, shape index: {}]
  %s12 = inlined_call_operand.hbm [shape: f32[4,3], index: 12, kind: output, shape index: {}]
  %s13 = sld [smem:[#allocation0]]
  $region82: #{gin_with_jk_forward.1} parent=0
    _
  %s15 = ssub.s32 1, %s13
  %s16 = scalar_select 0, %s15, %s13
  $region1: #{gin_with_jk_forward.1} parent=0
    #allocation2 [shape = 'u8[512]{0}', space=smem, size = 0x200, scoped, tag = 'input window, operand 0, single buffered']
    #allocation3 [shape = 's32[1]{0}', space=sflag, size = 0x4, scoped, tag = 'scoped memory for gin_with_jk_forward.1']
    #allocation4 [shape = 's32[1]{0}', space=sflag, size = 0x4, scoped, tag = 'scoped memory for gin_with_jk_forward.1']
    #allocation5 [shape = 's32[1]{0}', space=sflag, size = 0x4, scoped, tag = 'scoped memory for gin_with_jk_forward.1']
    #allocation6 [shape = 'u8[32768]{0}', space=vmem, size = 0x8000, scoped, tag = 'input window, operand 2, single buffered']
    #allocation7 [shape = 'u8[2048]{0}', space=vmem, size = 0x800, scoped, tag = 'input window, operand 3, single buffered']
    #allocation8 [shape = 's32[1]{0}', space=sflag, size = 0x4, scoped, tag = 'scoped memory for gin_with_jk_forward.1']
    #allocation9 [shape = 'u8[16384]{0}', space=vmem, size = 0x4000, scoped, tag = 'input window, operand 7, single buffered']
    #allocation10 [shape = 'u8[512]{0}', space=vmem, size = 0x400, scoped, tag = 'input window, operand 9, single buffered']
    #allocation11 [shape = 's32[1]{0}', space=sflag, size = 0x4, scoped, tag = 'scoped memory for gin_with_jk_forward.1']
    #allocation12 [shape = 'u8[512]{0}', space=vmem, size = 0x400, scoped, tag = 'input window, operand 11, single buffered']
    #allocation13 [shape = 'u8[2048]{0}', space=vmem, size = 0x800, scoped, tag = 'output window, operand 0, single buffered']
    %17 = vsyncpa [#allocation5], 0
    %18 = vsyncpa [#allocation3], 0
    %19 = vsyncpa [#allocation8], 0
    %20 = vsyncpa [#allocation11], 0
    %21 = vsyncpa [#allocation4], 0
    // Predicated region
    $region2: #{gin_with_jk_forward.1} parent=1 // pred_check
      _
    $region3: #{gin_with_jk_forward.1} parent=1 // pred_check_branch
      %23 = sbr.rel (0) target = $region5
    $region4: #{gin_with_jk_forward.1} parent=1 // pred_region
      %s25 = ssub.s32 16, 16
      %26 = vsyncadd [#allocation5], %s25
      %29 = dma.hbm_to_smem %s0, 16, [#allocation2], [#allocation5]
    $region5: #{gin_with_jk_forward.1} parent=1 // pred_fallthru
      _
    // Predicated region
    $region6: #{gin_with_jk_forward.1} parent=1 // pred_check
      _
    $region7: #{gin_with_jk_forward.1} parent=1 // pred_check_branch
      %31 = sbr.rel (0) target = $region9
    $region8: #{gin_with_jk_forward.1} parent=1 // pred_region
      _
    $region9: #{gin_with_jk_forward.1} parent=1 // pred_fallthru
      _
    // Predicated region
    $region10: #{gin_with_jk_forward.1} parent=1 // pred_check
      _
    $region11: #{gin_with_jk_forward.1} parent=1 // pred_check_branch
      %33 = sbr.rel (0) target = $region13
    $region12: #{gin_with_jk_forward.1} parent=1 // pred_region
      %s35 = ssub.s32 1024, 1024
      %36 = vsyncadd [#allocation3], %s35
      %s37 = sshll.u32 [#allocation6], 4
      %s38 = int_to_ptr.vmem [resolvable:$true] %s37
      %43 = dma.hbm_to_vmem [thread:$0]  %s2, 1024, %s38, [#allocation3], 128, 128, 8
    $region13: #{gin_with_jk_forward.1} parent=1 // pred_fallthru
      _
    // Predicated region
    $region14: #{gin_with_jk_forward.1} parent=1 // pred_check
      _
    $region15: #{gin_with_jk_forward.1} parent=1 // pred_check_branch
      %45 = sbr.rel (0) target = $region17
    $region16: #{gin_with_jk_forward.1} parent=1 // pred_region
      %s47 = ssub.s32 64, 64
      %48 = vsyncadd [#allocation8], %s47
      %s50 = sshll.u32 [#allocation7], 4
      %s51 = int_to_ptr.vmem [resolvable:$true] %s50
      %53 = dma.hbm_to_vmem [thread:$0]  %s3, 64, %s51, [#allocation8]
    $region17: #{gin_with_jk_forward.1} parent=1 // pred_fallthru
      _
    // Predicated region
    $region18: #{gin_with_jk_forward.1} parent=1 // pred_check
      _
    $region19: #{gin_with_jk_forward.1} parent=1 // pred_check_branch
      %55 = sbr.rel (0) target = $region21
    $region20: #{gin_with_jk_forward.1} parent=1 // pred_region
      _
    $region21: #{gin_with_jk_forward.1} parent=1 // pred_fallthru
      _
    // Predicated region
    $region22: #{gin_with_jk_forward.1} parent=1 // pred_check
      _
    $region23: #{gin_with_jk_forward.1} parent=1 // pred_check_branch
      %57 = sbr.rel (0) target = $region25
    $region24: #{gin_with_jk_forward.1} parent=1 // pred_region
      _
    $region25: #{gin_with_jk_forward.1} parent=1 // pred_fallthru
      _
    // Predicated region
    $region26: #{gin_with_jk_forward.1} parent=1 // pred_check
      _
    $region27: #{gin_with_jk_forward.1} parent=1 // pred_check_branch
      %59 = sbr.rel (0) target = $region29
    $region28: #{gin_with_jk_forward.1} parent=1 // pred_region
      _
    $region29: #{gin_with_jk_forward.1} parent=1 // pred_fallthru
      _
    // Predicated region
    $region30: #{gin_with_jk_forward.1} parent=1 // pred_check
      _
    $region31: #{gin_with_jk_forward.1} parent=1 // pred_check_branch
      %61 = sbr.rel (0) target = $region33
    $region32: #{gin_with_jk_forward.1} parent=1 // pred_region
      %s63 = ssub.s32 512, 512
      %64 = vsyncadd [#allocation8], %s63
      %s65 = sshll.u32 [#allocation9], 4
      %s66 = int_to_ptr.vmem [resolvable:$true] %s65
      %71 = dma.hbm_to_vmem [thread:$0]  %s7, 512, %s66, [#allocation8], 64, 64, 4
    $region33: #{gin_with_jk_forward.1} parent=1 // pred_fallthru
      _
    // Predicated region
    $region34: #{gin_with_jk_forward.1} parent=1 // pred_check
      _
    $region35: #{gin_with_jk_forward.1} parent=1 // pred_check_branch
      %73 = sbr.rel (0) target = $region37
    $region36: #{gin_with_jk_forward.1} parent=1 // pred_region
      _
    $region37: #{gin_with_jk_forward.1} parent=1 // pred_fallthru
      _
    // Predicated region
    $region38: #{gin_with_jk_forward.1} parent=1 // pred_check
      _
    $region39: #{gin_with_jk_forward.1} parent=1 // pred_check_branch
      %75 = sbr.rel (0) target = $region41
    $region40: #{gin_with_jk_forward.1} parent=1 // pred_region
      %s77 = ssub.s32 16, 16
      %78 = vsyncadd [#allocation11], %s77
      %s80 = sshll.u32 [#allocation10], 4
      %s81 = int_to_ptr.vmem [resolvable:$true] %s80
      %83 = dma.hbm_to_vmem [thread:$0]  %s9, 16, %s81, [#allocation11]
    $region41: #{gin_with_jk_forward.1} parent=1 // pred_fallthru
      _
    // Predicated region
    $region42: #{gin_with_jk_forward.1} parent=1 // pred_check
      _
    $region43: #{gin_with_jk_forward.1} parent=1 // pred_check_branch
      %85 = sbr.rel (0) target = $region45
    $region44: #{gin_with_jk_forward.1} parent=1 // pred_region
      _
    $region45: #{gin_with_jk_forward.1} parent=1 // pred_fallthru
      _
    // Predicated region
    $region46: #{gin_with_jk_forward.1} parent=1 // pred_check
      _
    $region47: #{gin_with_jk_forward.1} parent=1 // pred_check_branch
      %87 = sbr.rel (0) target = $region49
    $region48: #{gin_with_jk_forward.1} parent=1 // pred_region
      %s89 = ssub.s32 16, 16
      %90 = vsyncadd [#allocation11], %s89
      %s92 = sshll.u32 [#allocation12], 4
      %s93 = int_to_ptr.vmem [resolvable:$true] %s92
      %95 = dma.hbm_to_vmem [thread:$0]  %s11, 16, %s93, [#allocation11]
    $region49: #{gin_with_jk_forward.1} parent=1 // pred_fallthru
      _
    // Predicated region
    $region50: #{gin_with_jk_forward.1} parent=1 // pred_check
      _
    $region51: #{gin_with_jk_forward.1} parent=1 // pred_check_branch
      %97 = sbr.rel (0) target = $region53
    $region52: #{gin_with_jk_forward.1} parent=1 // pred_region
      %98 = dma.done [#allocation5], 16
    $region53: #{gin_with_jk_forward.1} parent=1 // pred_fallthru
      _
    // Predicated region
    $region54: #{gin_with_jk_forward.1} parent=1 // pred_check
      _
    $region55: #{gin_with_jk_forward.1} parent=1 // pred_check_branch
      %100 = sbr.rel (0) target = $region57
    $region56: #{gin_with_jk_forward.1} parent=1 // pred_region
      %101 = dma.done [#allocation3], 1024
    $region57: #{gin_with_jk_forward.1} parent=1 // pred_fallthru
      _
    // Predicated region
    $region58: #{gin_with_jk_forward.1} parent=1 // pred_check
      _
    $region59: #{gin_with_jk_forward.1} parent=1 // pred_check_branch
      %103 = sbr.rel (0) target = $region61
    $region60: #{gin_with_jk_forward.1} parent=1 // pred_region
      %104 = dma.done [#allocation8], 64
    $region61: #{gin_with_jk_forward.1} parent=1 // pred_fallthru
      _
    // Predicated region
    $region62: #{gin_with_jk_forward.1} parent=1 // pred_check
      _
    $region63: #{gin_with_jk_forward.1} parent=1 // pred_check_branch
      %106 = sbr.rel (0) target = $region65
    $region64: #{gin_with_jk_forward.1} parent=1 // pred_region
      %107 = dma.done [#allocation8], 512
    $region65: #{gin_with_jk_forward.1} parent=1 // pred_fallthru
      _
    // Predicated region
    $region66: #{gin_with_jk_forward.1} parent=1 // pred_check
      _
    $region67: #{gin_with_jk_forward.1} parent=1 // pred_check_branch
      %109 = sbr.rel (0) target = $region69
    $region68: #{gin_with_jk_forward.1} parent=1 // pred_region
      %110 = dma.done [#allocation11], 16
    $region69: #{gin_with_jk_forward.1} parent=1 // pred_fallthru
      _
    // Predicated region
    $region70: #{gin_with_jk_forward.1} parent=1 // pred_check
      _
    $region71: #{gin_with_jk_forward.1} parent=1 // pred_check_branch
      %112 = sbr.rel (0) target = $region73
    $region72: #{gin_with_jk_forward.1} parent=1 // pred_region
      %113 = dma.done [#allocation11], 16
    $region73: #{gin_with_jk_forward.1} parent=1 // pred_fallthru
      _
    %114 = sfence
    %v116 = vld [vmem:[%s1] sm:$0xf]
    %v117 = vld [vmem:[%s1 + $0x4] sm:$0xf]
    %v118 = vld [vmem:[%s1 + $0x8] sm:$0xf]
    %v119 = vld [vmem:[%s1 + $0xc] sm:$0xf]
    %v120 = vld [vmem:[%s1 + $0x10] sm:$0xf]
    %v121 = vld [vmem:[%s1 + $0x14] sm:$0xf]
    %v122 = vld [vmem:[%s1 + $0x18] sm:$0xf]
    %v123 = vld [vmem:[%s1 + $0x1c] sm:$0xf]
    %v124 = vld [vmem:[#allocation7] sm:$0xf]
    %v125 = vpack.c.bf16 %v124, %v124
    %v126 = vld [vmem:[#allocation6] sm:$0xff]
    %v127 = vld [vmem:[#allocation6 + $0x8] sm:$0xff]
    %v128 = vld [vmem:[#allocation6 + $0x10] sm:$0xff]
    %v129 = vld [vmem:[#allocation6 + $0x18] sm:$0xff]
    %v130 = vld [vmem:[#allocation6 + $0x20] sm:$0xff]
    %v131 = vld [vmem:[#allocation6 + $0x28] sm:$0xff]
    %v132 = vld [vmem:[#allocation6 + $0x30] sm:$0xff]
    %v133 = vld [vmem:[#allocation6 + $0x38] sm:$0xff]
    %v134 = vpack.c.bf16 %v127, %v126
    %v135 = vpack.c.bf16 %v129, %v128
    %v136 = vpack.c.bf16 %v131, %v130
    %v137 = vpack.c.bf16 %v133, %v132
    %v146 = vunpack.c.l.b16 %v116
    %v147 = vunpack.c.l.b16 %v117
    %v148 = vunpack.c.l.b16 %v118
    %v149 = vunpack.c.l.b16 %v119
    %v150 = vunpack.c.l.b16 %v120
    %v151 = vunpack.c.l.b16 %v121
    %v152 = vunpack.c.l.b16 %v122
    %v153 = vunpack.c.l.b16 %v123
    %v154 = vpack.c.b16 %v147, %v146
    %v155 = vpack.c.b16 %v149, %v148
    %v156 = vpack.c.b16 %v151, %v150
    %v157 = vpack.c.b16 %v153, %v152
    %vm158 = vcmask 523264
    %v160 = vsel %vm158, %v154, 0
    %v163 = vsel %vm158, %v155, 0
    %v166 = vsel %vm158, %v156, 0
    %v169 = vsel %vm158, %v157, 0
    %171 = vmatprep.subr.bf16.mxu0 0
    %172 = vmatpush1.bf16.msra.mxu0 %v134
    %173 = vmatprep.subr.bf16.mxu0 0
    %174 = vmatpush1.bf16.msra.mxu0 %v135
    %175 = vmatprep.subr.bf16.mxu0 0
    %176 = vmatpush1.bf16.msra.mxu0 %v136
    %177 = vmatprep.subr.bf16.mxu0 0
    %178 = vmatpush1.bf16.msra.mxu0 %v137
    %179 = vmatprep.subr.bf16.mxu0 0
    %180 = vmatpush1.bf16.msra.mxu0 0
    %181 = vmatprep.subr.bf16.mxu0 0
    %182 = vmatpush1.bf16.msra.mxu0 0
    %183 = vmatprep.subr.bf16.mxu0 0
    %184 = vmatpush1.bf16.msra.mxu0 0
    %185 = vmatprep.subr.bf16.mxu0 0
    %186 = vmatpush1.bf16.msra.mxu0 0
    %187 = vmatprep.subr.bf16.mxu0 0
    %188 = vmatpush1.bf16.msra.mxu0 0
    %189 = vmatprep.subr.bf16.mxu0 0
    %190 = vmatpush1.bf16.msra.mxu0 0
    %191 = vmatprep.subr.bf16.mxu0 0
    %192 = vmatpush1.bf16.msra.mxu0 0
    %193 = vmatprep.subr.bf16.mxu0 0
    %194 = vmatpush1.bf16.msra.mxu0 0
    %195 = vmatprep.subr.bf16.mxu0 0
    %196 = vmatpush1.bf16.msra.mxu0 0
    %197 = vmatprep.subr.bf16.mxu0 0
    %198 = vmatpush1.bf16.msra.mxu0 0
    %199 = vmatprep.subr.bf16.mxu0 0
    %200 = vmatpush1.bf16.msra.mxu0 0
    %201 = vmatprep.subr.bf16.mxu0 0
    %202 = vmatpush1.bf16.msra.mxu0 0
    %203 = vmatprep.mubr.bf16.mxu0 0
    %204 = vmatmul.mubr.bf16.gmra.mrb[0].mxu0 %v160
    %v205 = vpop.f32.mrb[0].mxu0
    %v206 = vadd.f32 0.0, %v205
    %v207 = vpop.f32.mrb[0].mxu0
    %v208 = vpop.f32.mrb[0].mxu0
    %v209 = vadd.f32 0.0, %v208
    %v210 = vpop.f32.mrb[0].mxu0
    %211 = vmatprep.mubr.bf16.mxu0 0
    %212 = vmatmul.mubr.bf16.gmra.mrb[0].mxu0 %v163
    %v213 = vpop.f32.mrb[0].mxu0
    %v214 = vadd.f32 0.0, %v213
    %v215 = vpop.f32.mrb[0].mxu0
    %v216 = vpop.f32.mrb[0].mxu0
    %v217 = vadd.f32 0.0, %v216
    %v218 = vpop.f32.mrb[0].mxu0
    %219 = vmatprep.mubr.bf16.mxu0 0
    %220 = vmatmul.mubr.bf16.gmra.mrb[0].mxu0 %v166
    %v221 = vpop.f32.mrb[0].mxu0
    %v222 = vadd.f32 0.0, %v221
    %v223 = vpop.f32.mrb[0].mxu0
    %v224 = vpop.f32.mrb[0].mxu0
    %v225 = vadd.f32 0.0, %v224
    %v226 = vpop.f32.mrb[0].mxu0
    %227 = vmatprep.mubr.bf16.mxu0 0
    %228 = vmatmul.mubr.bf16.gmra.mrb[0].mxu0 %v169
    %v229 = vpop.f32.mrb[0].mxu0
    %v230 = vadd.f32 0.0, %v229
    %v231 = vpop.f32.mrb[0].mxu0
    %v232 = vpop.f32.mrb[0].mxu0
    %v233 = vadd.f32 0.0, %v232
    %v234 = vpop.f32.mrb[0].mxu0
    %235 = vdwg.mxu0
    %s236 = sld [smem:[#allocation2]]
    %s237 = sadd.f32 %s236, 1.0
    %v238 = vstv %s237
    %v239 = vmul.f32 %v238, %v126
    %v240 = vmul.f32 %v238, %v127
    %v241 = vmul.f32 %v238, %v128
    %v242 = vmul.f32 %v238, %v129
    %v243 = vmul.f32 %v238, %v130
    %v244 = vmul.f32 %v238, %v131
    %v245 = vmul.f32 %v238, %v132
    %v246 = vmul.f32 %v238, %v133
    %v247 = vadd.f32 %v239, %v206
    %v248 = vadd.f32 %v240, %v209
    %v249 = vadd.f32 %v241, %v214
    %v250 = vadd.f32 %v242, %v217
    %v251 = vadd.f32 %v243, %v222
    %v252 = vadd.f32 %v244, %v225
    %v253 = vadd.f32 %v245, %v230
    %v254 = vadd.f32 %v246, %v233
    %v255 = vld [vmem:[%s4] sm:$0xf]
    %v256 = vld [vmem:[%s4 + $0x4] sm:$0xf]
    %v257 = vld [vmem:[%s4 + $0x8] sm:$0xf]
    %v258 = vld [vmem:[%s4 + $0xc] sm:$0xf]
    %v259 = vld [vmem:[%s4 + $0x10] sm:$0xf]
    %v260 = vld [vmem:[%s4 + $0x14] sm:$0xf]
    %v261 = vld [vmem:[%s4 + $0x18] sm:$0xf]
    %v262 = vld [vmem:[%s4 + $0x1c] sm:$0xf]
    %v263 = vld [vmem:[%s4 + $0x20] sm:$0xf]
    %v264 = vld [vmem:[%s4 + $0x24] sm:$0xf]
    %v265 = vld [vmem:[%s4 + $0x28] sm:$0xf]
    %v266 = vld [vmem:[%s4 + $0x2c] sm:$0xf]
    %v267 = vld [vmem:[%s4 + $0x30] sm:$0xf]
    %v268 = vld [vmem:[%s4 + $0x34] sm:$0xf]
    %v269 = vld [vmem:[%s4 + $0x38] sm:$0xf]
    %v270 = vld [vmem:[%s4 + $0x3c] sm:$0xf]
    %v271 = vld [vmem:[%s6] sm:$0xf]
    %v272 = vld [vmem:[%s6 + $0x4] sm:$0xf]
    %v273 = vld [vmem:[%s6 + $0x8] sm:$0xf]
    %v274 = vld [vmem:[%s6 + $0xc] sm:$0xf]
    %v275 = vld [vmem:[%s6 + $0x10] sm:$0xf]
    %v276 = vld [vmem:[%s6 + $0x14] sm:$0xf]
    %v277 = vld [vmem:[%s6 + $0x18] sm:$0xf]
    %v278 = vld [vmem:[%s6 + $0x1c] sm:$0xf]
    %v279 = vld [vmem:[#allocation9] sm:$0xf]
    %v280 = vpack.c.bf16 %v248, %v247
    %v281 = vpack.c.bf16 %v250, %v249
    %v282 = vpack.c.bf16 %v252, %v251
    %v283 = vpack.c.bf16 %v254, %v253
    %v284 = vlaneseq
    %v285 = vshrl.u32 %v284, 7
    %v286 = vsub.s32 0, %v285
    %v287 = vrot.slane %v279, %v286
    %v304 = vunpack.c.l.b16 %v255
    %v305 = vunpack.c.l.b16 %v256
    %v306 = vunpack.c.l.b16 %v257
    %v307 = vunpack.c.l.b16 %v258
    %v308 = vunpack.c.l.b16 %v259
    %v309 = vunpack.c.l.b16 %v260
    %v310 = vunpack.c.l.b16 %v261
    %v311 = vunpack.c.l.b16 %v262
    %v312 = vunpack.c.l.b16 %v263
    %v313 = vunpack.c.l.b16 %v264
    %v314 = vunpack.c.l.b16 %v265
    %v315 = vunpack.c.l.b16 %v266
    %v316 = vunpack.c.l.b16 %v267
    %v317 = vunpack.c.l.b16 %v268
    %v318 = vunpack.c.l.b16 %v269
    %v319 = vunpack.c.l.b16 %v270
    %v320 = vpack.c.b16 %v305, %v304
    %v321 = vpack.c.b16 %v307, %v306
    %v322 = vpack.c.b16 %v309, %v308
    %v323 = vpack.c.b16 %v311, %v310
    %v324 = vpack.c.b16 %v313, %v312
    %v325 = vpack.c.b16 %v315, %v314
    %v326 = vpack.c.b16 %v317, %v316
    %v327 = vpack.c.b16 %v319, %v318
    %336 = vmatprep.subr.bf16.mxu0 0
    %337 = vmatpush1.bf16.msra.mxu0 %v320
    %338 = vmatprep.subr.bf16.mxu0 0
    %339 = vmatpush1.bf16.msra.mxu0 %v321
    %340 = vmatprep.subr.bf16.mxu0 0
    %341 = vmatpush1.bf16.msra.mxu0 %v322
    %342 = vmatprep.subr.bf16.mxu0 0
    %343 = vmatpush1.bf16.msra.mxu0 %v323
    %344 = vmatprep.subr.bf16.mxu0 0
    %345 = vmatpush1.bf16.msra.mxu0 %v324
    %346 = vmatprep.subr.bf16.mxu0 0
    %347 = vmatpush1.bf16.msra.mxu0 %v325
    %348 = vmatprep.subr.bf16.mxu0 0
    %349 = vmatpush1.bf16.msra.mxu0 %v326
    %350 = vmatprep.subr.bf16.mxu0 0
    %351 = vmatpush1.bf16.msra.mxu0 %v327
    %352 = vmatprep.subr.bf16.mxu0 0
    %353 = vmatpush1.bf16.msra.mxu0 0
    %354 = vmatprep.subr.bf16.mxu0 0
    %355 = vmatpush1.bf16.msra.mxu0 0
    %356 = vmatprep.subr.bf16.mxu0 0
    %357 = vmatpush1.bf16.msra.mxu0 0
    %358 = vmatprep.subr.bf16.mxu0 0
    %359 = vmatpush1.bf16.msra.mxu0 0
    %360 = vmatprep.subr.bf16.mxu0 0
    %361 = vmatpush1.bf16.msra.mxu0 0
    %362 = vmatprep.subr.bf16.mxu0 0
    %363 = vmatpush1.bf16.msra.mxu0 0
    %364 = vmatprep.subr.bf16.mxu0 0
    %365 = vmatpush1.bf16.msra.mxu0 0
    %366 = vmatprep.subr.bf16.mxu0 0
    %367 = vmatpush1.bf16.msra.mxu0 0
    %368 = vmatprep.mubr.bf16.mxu0 0
    %369 = vmatmul.mubr.bf16.gmra.mrb[0].mxu0 %v280
    %v370 = vpop.f32.mrb[0].mxu0
    %v371 = vadd.f32 %v287, %v370
    %v372 = vpop.f32.mrb[0].mxu0
    %v373 = vpop.f32.mrb[0].mxu0
    %v374 = vadd.f32 %v287, %v373
    %v375 = vpop.f32.mrb[0].mxu0
    %376 = vmatprep.mubr.bf16.mxu0 0
    %377 = vmatmul.mubr.bf16.gmra.mrb[0].mxu0 %v281
    %v378 = vpop.f32.mrb[0].mxu0
    %v379 = vadd.f32 %v287, %v378
    %v380 = vpop.f32.mrb[0].mxu0
    %v381 = vpop.f32.mrb[0].mxu0
    %v382 = vadd.f32 %v287, %v381
    %v383 = vpop.f32.mrb[0].mxu0
    %384 = vmatprep.mubr.bf16.mxu0 0
    %385 = vmatmul.mubr.bf16.gmra.mrb[0].mxu0 %v282
    %v386 = vpop.f32.mrb[0].mxu0
    %v387 = vadd.f32 %v287, %v386
    %v388 = vpop.f32.mrb[0].mxu0
    %v389 = vpop.f32.mrb[0].mxu0
    %v390 = vadd.f32 %v287, %v389
    %v391 = vpop.f32.mrb[0].mxu0
    %392 = vmatprep.mubr.bf16.mxu0 0
    %393 = vmatmul.mubr.bf16.gmra.mrb[0].mxu0 %v283
    %v394 = vpop.f32.mrb[0].mxu0
    %v395 = vadd.f32 %v287, %v394
    %v396 = vpop.f32.mrb[0].mxu0
    %v397 = vpop.f32.mrb[0].mxu0
    %v398 = vadd.f32 %v287, %v397
    %v399 = vpop.f32.mrb[0].mxu0
    %400 = vdwg.mxu0
    %v401 = vmax.f32 %v371, 0.0
    %v402 = vmax.f32 %v374, 0.0
    %v403 = vmax.f32 %v379, 0.0
    %v404 = vmax.f32 %v382, 0.0
    %v405 = vmax.f32 %v387, 0.0
    %v406 = vmax.f32 %v390, 0.0
    %v407 = vmax.f32 %v395, 0.0
    %v408 = vmax.f32 %v398, 0.0
    %v409 = vpack.c.bf16 %v402, %v401
    %v410 = vpack.c.bf16 %v404, %v403
    %v411 = vpack.c.bf16 %v406, %v405
    %v412 = vpack.c.bf16 %v408, %v407
    %v413 = vlaneseq
    %v414 = vshrl.u32 %v413, 7
    %v415 = vsub.s32 1, %v414
    %v416 = vrot.slane %v279, %v415
    %v425 = vunpack.c.l.b16 %v271
    %v426 = vunpack.c.l.b16 %v272
    %v427 = vunpack.c.l.b16 %v273
    %v428 = vunpack.c.l.b16 %v274
    %v429 = vunpack.c.l.b16 %v275
    %v430 = vunpack.c.l.b16 %v276
    %v431 = vunpack.c.l.b16 %v277
    %v432 = vunpack.c.l.b16 %v278
    %v433 = vpack.c.b16 %v426, %v425
    %v434 = vpack.c.b16 %v428, %v427
    %v435 = vpack.c.b16 %v430, %v429
    %v436 = vpack.c.b16 %v432, %v431
    %v442 = vsel %vm158, %v409, 0
    %v445 = vsel %vm158, %v410, 0
    %v448 = vsel %vm158, %v411, 0
    %v451 = vsel %vm158, %v412, 0
    %453 = vmatprep.subr.bf16.mxu0 0
    %454 = vmatpush1.bf16.msra.mxu0 %v433
    %455 = vmatprep.subr.bf16.mxu0 0
    %456 = vmatpush1.bf16.msra.mxu0 %v434
    %457 = vmatprep.subr.bf16.mxu0 0
    %458 = vmatpush1.bf16.msra.mxu0 %v435
    %459 = vmatprep.subr.bf16.mxu0 0
    %460 = vmatpush1.bf16.msra.mxu0 %v436
    %461 = vmatprep.subr.bf16.mxu0 0
    %462 = vmatpush1.bf16.msra.mxu0 0
    %463 = vmatprep.subr.bf16.mxu0 0
    %464 = vmatpush1.bf16.msra.mxu0 0
    %465 = vmatprep.subr.bf16.mxu0 0
    %466 = vmatpush1.bf16.msra.mxu0 0
    %467 = vmatprep.subr.bf16.mxu0 0
    %468 = vmatpush1.bf16.msra.mxu0 0
    %469 = vmatprep.subr.bf16.mxu0 0
    %470 = vmatpush1.bf16.msra.mxu0 0
    %471 = vmatprep.subr.bf16.mxu0 0
    %472 = vmatpush1.bf16.msra.mxu0 0
    %473 = vmatprep.subr.bf16.mxu0 0
    %474 = vmatpush1.bf16.msra.mxu0 0
    %475 = vmatprep.subr.bf16.mxu0 0
    %476 = vmatpush1.bf16.msra.mxu0 0
    %477 = vmatprep.subr.bf16.mxu0 0
    %478 = vmatpush1.bf16.msra.mxu0 0
    %479 = vmatprep.subr.bf16.mxu0 0
    %480 = vmatpush1.bf16.msra.mxu0 0
    %481 = vmatprep.subr.bf16.mxu0 0
    %482 = vmatpush1.bf16.msra.mxu0 0
    %483 = vmatprep.subr.bf16.mxu0 0
    %484 = vmatpush1.bf16.msra.mxu0 0
    %485 = vmatprep.mubr.bf16.mxu0 0
    %486 = vmatmul.mubr.bf16.gmra.mrb[0].mxu0 %v442
    %v487 = vpop.f32.mrb[0].mxu0
    %v488 = vadd.f32 %v416, %v487
    %v489 = vpop.f32.mrb[0].mxu0
    %v490 = vpop.f32.mrb[0].mxu0
    %v491 = vadd.f32 %v416, %v490
    %v492 = vpop.f32.mrb[0].mxu0
    %493 = vmatprep.mubr.bf16.mxu0 0
    %494 = vmatmul.mubr.bf16.gmra.mrb[0].mxu0 %v445
    %v495 = vpop.f32.mrb[0].mxu0
    %v496 = vadd.f32 %v416, %v495
    %v497 = vpop.f32.mrb[0].mxu0
    %v498 = vpop.f32.mrb[0].mxu0
    %v499 = vadd.f32 %v416, %v498
    %v500 = vpop.f32.mrb[0].mxu0
    %501 = vmatprep.mubr.bf16.mxu0 0
    %502 = vmatmul.mubr.bf16.gmra.mrb[0].mxu0 %v448
    %v503 = vpop.f32.mrb[0].mxu0
    %v504 = vadd.f32 %v416, %v503
    %v505 = vpop.f32.mrb[0].mxu0
    %v506 = vpop.f32.mrb[0].mxu0
    %v507 = vadd.f32 %v416, %v506
    %v508 = vpop.f32.mrb[0].mxu0
    %509 = vmatprep.mubr.bf16.mxu0 0
    %510 = vmatmul.mubr.bf16.gmra.mrb[0].mxu0 %v451
    %v511 = vpop.f32.mrb[0].mxu0
    %v512 = vadd.f32 %v416, %v511
    %v513 = vpop.f32.mrb[0].mxu0
    %v514 = vpop.f32.mrb[0].mxu0
    %v515 = vadd.f32 %v416, %v514
    %v516 = vpop.f32.mrb[0].mxu0
    %517 = vdwg.mxu0
    %v518 = vmax.f32 %v488, 0.0
    %v519 = vmax.f32 %v491, 0.0
    %v520 = vmax.f32 %v496, 0.0
    %v521 = vmax.f32 %v499, 0.0
    %v522 = vmax.f32 %v504, 0.0
    %v523 = vmax.f32 %v507, 0.0
    %v524 = vmax.f32 %v512, 0.0
    %v525 = vmax.f32 %v515, 0.0
    %v526 = vlaneseq
    %v527 = vshrl.u32 %v526, 7
    %v528 = vsub.s32 2, %v527
    %v529 = vrot.slane %v279, %v528
    %v530 = vmul.f32 %v518, %v529
    %v531 = vmul.f32 %v519, %v529
    %v532 = vmul.f32 %v520, %v529
    %v533 = vmul.f32 %v521, %v529
    %v534 = vmul.f32 %v522, %v529
    %v535 = vmul.f32 %v523, %v529
    %v536 = vmul.f32 %v524, %v529
    %v537 = vmul.f32 %v525, %v529
    %v538 = vlaneseq
    %v539 = vshrl.u32 %v538, 7
    %v540 = vsub.s32 3, %v539
    %v541 = vrot.slane %v279, %v540
    %v542 = vadd.f32 %v530, %v541
    %v543 = vadd.f32 %v531, %v541
    %v544 = vadd.f32 %v532, %v541
    %v545 = vadd.f32 %v533, %v541
    %v546 = vadd.f32 %v534, %v541
    %v547 = vadd.f32 %v535, %v541
    %v548 = vadd.f32 %v536, %v541
    %v549 = vadd.f32 %v537, %v541
    %v550 = vpack.c.bf16 %v543, %v542
    %v551 = vpack.c.bf16 %v545, %v544
    %v552 = vpack.c.bf16 %v547, %v546
    %v553 = vpack.c.bf16 %v549, %v548
    %v555 = vsel %vm158, %v125, 0
    %557 = vmatprep.subr.bf16.mxu0 0
    %558 = vmatpush1.bf16.msra.mxu0 %v550
    %559 = vmatprep.subr.bf16.mxu0 0
    %560 = vmatpush1.bf16.msra.mxu0 %v551
    %561 = vmatprep.subr.bf16.mxu0 0
    %562 = vmatpush1.bf16.msra.mxu0 %v552
    %563 = vmatprep.subr.bf16.mxu0 0
    %564 = vmatpush1.bf16.msra.mxu0 %v553
    %565 = vmatprep.subr.bf16.mxu0 0
    %566 = vmatpush1.bf16.msra.mxu0 0
    %567 = vmatprep.subr.bf16.mxu0 0
    %568 = vmatpush1.bf16.msra.mxu0 0
    %569 = vmatprep.subr.bf16.mxu0 0
    %570 = vmatpush1.bf16.msra.mxu0 0
    %571 = vmatprep.subr.bf16.mxu0 0
    %572 = vmatpush1.bf16.msra.mxu0 0
    %573 = vmatprep.subr.bf16.mxu0 0
    %574 = vmatpush1.bf16.msra.mxu0 0
    %575 = vmatprep.subr.bf16.mxu0 0
    %576 = vmatpush1.bf16.msra.mxu0 0
    %577 = vmatprep.subr.bf16.mxu0 0
    %578 = vmatpush1.bf16.msra.mxu0 0
    %579 = vmatprep.subr.bf16.mxu0 0
    %580 = vmatpush1.bf16.msra.mxu0 0
    %581 = vmatprep.subr.bf16.mxu0 0
    %582 = vmatpush1.bf16.msra.mxu0 0
    %583 = vmatprep.subr.bf16.mxu0 0
    %584 = vmatpush1.bf16.msra.mxu0 0
    %585 = vmatprep.subr.bf16.mxu0 0
    %586 = vmatpush1.bf16.msra.mxu0 0
    %587 = vmatprep.subr.bf16.mxu0 0
    %588 = vmatpush1.bf16.msra.mxu0 0
    %589 = vmatprep.mubr.bf16.mxu0 0
    %590 = vmatmul.mubr.bf16.gmra.mrb[0].mxu0 %v555
    %v591 = vpop.f32.mrb[0].mxu0
    %v592 = vadd.f32 0.0, %v591
    %v593 = vpop.f32.mrb[0].mxu0
    %v594 = vpop.f32.mrb[0].mxu0
    %v595 = vpop.f32.mrb[0].mxu0
    %596 = vdwg.mxu0
    %v597 = vpack.c.bf16 %v592, %v592
    %v598 = vld [vmem:[%s8] sm:$0xf]
    %v599 = vld [vmem:[%s8 + $0x4] sm:$0xf]
    %v600 = vld [vmem:[%s8 + $0x8] sm:$0xf]
    %v601 = vld [vmem:[%s8 + $0xc] sm:$0xf]
    %v602 = vld [vmem:[%s8 + $0x10] sm:$0xf]
    %v603 = vld [vmem:[%s8 + $0x14] sm:$0xf]
    %v604 = vld [vmem:[%s8 + $0x18] sm:$0xf]
    %v605 = vld [vmem:[%s8 + $0x1c] sm:$0xf]
    %606 = vmatprep.subr.bf16.mxu0 0
    %607 = vmatpush1.bf16.msra.mxu0 %v550
    %608 = vmatprep.subr.bf16.mxu0 0
    %609 = vmatpush1.bf16.msra.mxu0 %v551
    %610 = vmatprep.subr.bf16.mxu0 0
    %611 = vmatpush1.bf16.msra.mxu0 %v552
    %612 = vmatprep.subr.bf16.mxu0 0
    %613 = vmatpush1.bf16.msra.mxu0 %v553
    %614 = vmatprep.subr.bf16.mxu0 0
    %615 = vmatpush1.bf16.msra.mxu0 0
    %616 = vmatprep.subr.bf16.mxu0 0
    %617 = vmatpush1.bf16.msra.mxu0 0
    %618 = vmatprep.subr.bf16.mxu0 0
    %619 = vmatpush1.bf16.msra.mxu0 0
    %620 = vmatprep.subr.bf16.mxu0 0
    %621 = vmatpush1.bf16.msra.mxu0 0
    %622 = vmatprep.subr.bf16.mxu0 0
    %623 = vmatpush1.bf16.msra.mxu0 0
    %624 = vmatprep.subr.bf16.mxu0 0
    %625 = vmatpush1.bf16.msra.mxu0 0
    %626 = vmatprep.subr.bf16.mxu0 0
    %627 = vmatpush1.bf16.msra.mxu0 0
    %628 = vmatprep.subr.bf16.mxu0 0
    %629 = vmatpush1.bf16.msra.mxu0 0
    %630 = vmatprep.subr.bf16.mxu0 0
    %631 = vmatpush1.bf16.msra.mxu0 0
    %632 = vmatprep.subr.bf16.mxu0 0
    %633 = vmatpush1.bf16.msra.mxu0 0
    %634 = vmatprep.subr.bf16.mxu0 0
    %635 = vmatpush1.bf16.msra.mxu0 0
    %636 = vmatprep.subr.bf16.mxu0 0
    %637 = vmatpush1.bf16.msra.mxu0 0
    %638 = vmatprep.mubr.bf16.mxu0 0
    %639 = vmatmul.mubr.bf16.gmra.mrb[0].mxu0 %v160
    %v640 = vpop.f32.mrb[0].mxu0
    %v641 = vadd.f32 0.0, %v640
    %v642 = vpop.f32.mrb[0].mxu0
    %v643 = vpop.f32.mrb[0].mxu0
    %v644 = vadd.f32 0.0, %v643
    %v645 = vpop.f32.mrb[0].mxu0
    %646 = vmatprep.mubr.bf16.mxu0 0
    %647 = vmatmul.mubr.bf16.gmra.mrb[0].mxu0 %v163
    %v648 = vpop.f32.mrb[0].mxu0
    %v649 = vadd.f32 0.0, %v648
    %v650 = vpop.f32.mrb[0].mxu0
    %v651 = vpop.f32.mrb[0].mxu0
    %v652 = vadd.f32 0.0, %v651
    %v653 = vpop.f32.mrb[0].mxu0
    %654 = vmatprep.mubr.bf16.mxu0 0
    %655 = vmatmul.mubr.bf16.gmra.mrb[0].mxu0 %v166
    %v656 = vpop.f32.mrb[0].mxu0
    %v657 = vadd.f32 0.0, %v656
    %v658 = vpop.f32.mrb[0].mxu0
    %v659 = vpop.f32.mrb[0].mxu0
    %v660 = vadd.f32 0.0, %v659
    %v661 = vpop.f32.mrb[0].mxu0
    %662 = vmatprep.mubr.bf16.mxu0 0
    %663 = vmatmul.mubr.bf16.gmra.mrb[0].mxu0 %v169
    %v664 = vpop.f32.mrb[0].mxu0
    %v665 = vadd.f32 0.0, %v664
    %v666 = vpop.f32.mrb[0].mxu0
    %v667 = vpop.f32.mrb[0].mxu0
    %v668 = vadd.f32 0.0, %v667
    %v669 = vpop.f32.mrb[0].mxu0
    %670 = vdwg.mxu0
    %s671 = sld [smem:[#allocation2 + $0x1]]
    %s672 = sadd.f32 %s671, 1.0
    %v673 = vstv %s672
    %v674 = vmul.f32 %v673, %v542
    %v675 = vmul.f32 %v673, %v543
    %v676 = vmul.f32 %v673, %v544
    %v677 = vmul.f32 %v673, %v545
    %v678 = vmul.f32 %v673, %v546
    %v679 = vmul.f32 %v673, %v547
    %v680 = vmul.f32 %v673, %v548
    %v681 = vmul.f32 %v673, %v549
    %v682 = vadd.f32 %v674, %v641
    %v683 = vadd.f32 %v675, %v644
    %v684 = vadd.f32 %v676, %v649
    %v685 = vadd.f32 %v677, %v652
    %v686 = vadd.f32 %v678, %v657
    %v687 = vadd.f32 %v679, %v660
    %v688 = vadd.f32 %v680, %v665
    %v689 = vadd.f32 %v681, %v668
    %v690 = vld [vmem:[%s5] sm:$0xf]
    %v691 = vld [vmem:[%s5 + $0x4] sm:$0xf]
    %v692 = vld [vmem:[%s5 + $0x8] sm:$0xf]
    %v693 = vld [vmem:[%s5 + $0xc] sm:$0xf]
    %v694 = vld [vmem:[%s5 + $0x10] sm:$0xf]
    %v695 = vld [vmem:[%s5 + $0x14] sm:$0xf]
    %v696 = vld [vmem:[%s5 + $0x18] sm:$0xf]
    %v697 = vld [vmem:[%s5 + $0x1c] sm:$0xf]
    %s698 = scalar_lea.vmem %s6, 32
    %v699 = vld [vmem:[%s698] sm:$0xf]
    %v700 = vld [vmem:[%s698 + $0x4] sm:$0xf]
    %v701 = vld [vmem:[%s698 + $0x8] sm:$0xf]
    %v702 = vld [vmem:[%s698 + $0xc] sm:$0xf]
    %v703 = vld [vmem:[%s698 + $0x10] sm:$0xf]
    %v704 = vld [vmem:[%s698 + $0x14] sm:$0xf]
    %v705 = vld [vmem:[%s698 + $0x18] sm:$0xf]
    %v706 = vld [vmem:[%s698 + $0x1c] sm:$0xf]
    %s707 = scalar_lea.vmem [#allocation9], 4
    %v708 = vld [vmem:[%s707] sm:$0xf]
    %v709 = vpack.c.bf16 %v683, %v682
    %v710 = vpack.c.bf16 %v685, %v684
    %v711 = vpack.c.bf16 %v687, %v686
    %v712 = vpack.c.bf16 %v689, %v688
    %v713 = vlaneseq
    %v714 = vshrl.u32 %v713, 7
    %v715 = vsub.s32 0, %v714
    %v716 = vrot.slane %v708, %v715
    %v725 = vunpack.c.l.b16 %v690
    %v726 = vunpack.c.l.b16 %v691
    %v727 = vunpack.c.l.b16 %v692
    %v728 = vunpack.c.l.b16 %v693
    %v729 = vunpack.c.l.b16 %v694
    %v730 = vunpack.c.l.b16 %v695
    %v731 = vunpack.c.l.b16 %v696
    %v732 = vunpack.c.l.b16 %v697
    %v733 = vpack.c.b16 %v726, %v725
    %v734 = vpack.c.b16 %v728, %v727
    %v735 = vpack.c.b16 %v730, %v729
    %v736 = vpack.c.b16 %v732, %v731
    %v742 = vsel %vm158, %v709, 0
    %v745 = vsel %vm158, %v710, 0
    %v748 = vsel %vm158, %v711, 0
    %v751 = vsel %vm158, %v712, 0
    %753 = vmatprep.subr.bf16.mxu0 0
    %754 = vmatpush1.bf16.msra.mxu0 %v733
    %755 = vmatprep.subr.bf16.mxu0 0
    %756 = vmatpush1.bf16.msra.mxu0 %v734
    %757 = vmatprep.subr.bf16.mxu0 0
    %758 = vmatpush1.bf16.msra.mxu0 %v735
    %759 = vmatprep.subr.bf16.mxu0 0
    %760 = vmatpush1.bf16.msra.mxu0 %v736
    %761 = vmatprep.subr.bf16.mxu0 0
    %762 = vmatpush1.bf16.msra.mxu0 0
    %763 = vmatprep.subr.bf16.mxu0 0
    %764 = vmatpush1.bf16.msra.mxu0 0
    %765 = vmatprep.subr.bf16.mxu0 0
    %766 = vmatpush1.bf16.msra.mxu0 0
    %767 = vmatprep.subr.bf16.mxu0 0
    %768 = vmatpush1.bf16.msra.mxu0 0
    %769 = vmatprep.subr.bf16.mxu0 0
    %770 = vmatpush1.bf16.msra.mxu0 0
    %771 = vmatprep.subr.bf16.mxu0 0
    %772 = vmatpush1.bf16.msra.mxu0 0
    %773 = vmatprep.subr.bf16.mxu0 0
    %774 = vmatpush1.bf16.msra.mxu0 0
    %775 = vmatprep.subr.bf16.mxu0 0
    %776 = vmatpush1.bf16.msra.mxu0 0
    %777 = vmatprep.subr.bf16.mxu0 0
    %778 = vmatpush1.bf16.msra.mxu0 0
    %779 = vmatprep.subr.bf16.mxu0 0
    %780 = vmatpush1.bf16.msra.mxu0 0
    %781 = vmatprep.subr.bf16.mxu0 0
    %782 = vmatpush1.bf16.msra.mxu0 0
    %783 = vmatprep.subr.bf16.mxu0 0
    %784 = vmatpush1.bf16.msra.mxu0 0
    %785 = vmatprep.mubr.bf16.mxu0 0
    %786 = vmatmul.mubr.bf16.gmra.mrb[0].mxu0 %v742
    %v787 = vpop.f32.mrb[0].mxu0
    %v788 = vadd.f32 %v716, %v787
    %v789 = vpop.f32.mrb[0].mxu0
    %v790 = vpop.f32.mrb[0].mxu0
    %v791 = vadd.f32 %v716, %v790
    %v792 = vpop.f32.mrb[0].mxu0
    %793 = vmatprep.mubr.bf16.mxu0 0
    %794 = vmatmul.mubr.bf16.gmra.mrb[0].mxu0 %v745
    %v795 = vpop.f32.mrb[0].mxu0
    %v796 = vadd.f32 %v716, %v795
    %v797 = vpop.f32.mrb[0].mxu0
    %v798 = vpop.f32.mrb[0].mxu0
    %v799 = vadd.f32 %v716, %v798
    %v800 = vpop.f32.mrb[0].mxu0
    %801 = vmatprep.mubr.bf16.mxu0 0
    %802 = vmatmul.mubr.bf16.gmra.mrb[0].mxu0 %v748
    %v803 = vpop.f32.mrb[0].mxu0
    %v804 = vadd.f32 %v716, %v803
    %v805 = vpop.f32.mrb[0].mxu0
    %v806 = vpop.f32.mrb[0].mxu0
    %v807 = vadd.f32 %v716, %v806
    %v808 = vpop.f32.mrb[0].mxu0
    %809 = vmatprep.mubr.bf16.mxu0 0
    %810 = vmatmul.mubr.bf16.gmra.mrb[0].mxu0 %v751
    %v811 = vpop.f32.mrb[0].mxu0
    %v812 = vadd.f32 %v716, %v811
    %v813 = vpop.f32.mrb[0].mxu0
    %v814 = vpop.f32.mrb[0].mxu0
    %v815 = vadd.f32 %v716, %v814
    %v816 = vpop.f32.mrb[0].mxu0
    %817 = vdwg.mxu0
    %v818 = vmax.f32 %v788, 0.0
    %v819 = vmax.f32 %v791, 0.0
    %v820 = vmax.f32 %v796, 0.0
    %v821 = vmax.f32 %v799, 0.0
    %v822 = vmax.f32 %v804, 0.0
    %v823 = vmax.f32 %v807, 0.0
    %v824 = vmax.f32 %v812, 0.0
    %v825 = vmax.f32 %v815, 0.0
    %v826 = vpack.c.bf16 %v819, %v818
    %v827 = vpack.c.bf16 %v821, %v820
    %v828 = vpack.c.bf16 %v823, %v822
    %v829 = vpack.c.bf16 %v825, %v824
    %v830 = vlaneseq
    %v831 = vshrl.u32 %v830, 7
    %v832 = vsub.s32 1, %v831
    %v833 = vrot.slane %v708, %v832
    %v842 = vunpack.c.l.b16 %v699
    %v843 = vunpack.c.l.b16 %v700
    %v844 = vunpack.c.l.b16 %v701
    %v845 = vunpack.c.l.b16 %v702
    %v846 = vunpack.c.l.b16 %v703
    %v847 = vunpack.c.l.b16 %v704
    %v848 = vunpack.c.l.b16 %v705
    %v849 = vunpack.c.l.b16 %v706
    %v850 = vpack.c.b16 %v843, %v842
    %v851 = vpack.c.b16 %v845, %v844
    %v852 = vpack.c.b16 %v847, %v846
    %v853 = vpack.c.b16 %v849, %v848
    %v859 = vsel %vm158, %v826, 0
    %v862 = vsel %vm158, %v827, 0
    %v865 = vsel %vm158, %v828, 0
    %v868 = vsel %vm158, %v829, 0
    %870 = vmatprep.subr.bf16.mxu0 0
    %871 = vmatpush1.bf16.msra.mxu0 %v850
    %872 = vmatprep.subr.bf16.mxu0 0
    %873 = vmatpush1.bf16.msra.mxu0 %v851
    %874 = vmatprep.subr.bf16.mxu0 0
    %875 = vmatpush1.bf16.msra.mxu0 %v852
    %876 = vmatprep.subr.bf16.mxu0 0
    %877 = vmatpush1.bf16.msra.mxu0 %v853
    %878 = vmatprep.subr.bf16.mxu0 0
    %879 = vmatpush1.bf16.msra.mxu0 0
    %880 = vmatprep.subr.bf16.mxu0 0
    %881 = vmatpush1.bf16.msra.mxu0 0
    %882 = vmatprep.subr.bf16.mxu0 0
    %883 = vmatpush1.bf16.msra.mxu0 0
    %884 = vmatprep.subr.bf16.mxu0 0
    %885 = vmatpush1.bf16.msra.mxu0 0
    %886 = vmatprep.subr.bf16.mxu0 0
    %887 = vmatpush1.bf16.msra.mxu0 0
    %888 = vmatprep.subr.bf16.mxu0 0
    %889 = vmatpush1.bf16.msra.mxu0 0
    %890 = vmatprep.subr.bf16.mxu0 0
    %891 = vmatpush1.bf16.msra.mxu0 0
    %892 = vmatprep.subr.bf16.mxu0 0
    %893 = vmatpush1.bf16.msra.mxu0 0
    %894 = vmatprep.subr.bf16.mxu0 0
    %895 = vmatpush1.bf16.msra.mxu0 0
    %896 = vmatprep.subr.bf16.mxu0 0
    %897 = vmatpush1.bf16.msra.mxu0 0
    %898 = vmatprep.subr.bf16.mxu0 0
    %899 = vmatpush1.bf16.msra.mxu0 0
    %900 = vmatprep.subr.bf16.mxu0 0
    %901 = vmatpush1.bf16.msra.mxu0 0
    %902 = vmatprep.mubr.bf16.mxu0 0
    %903 = vmatmul.mubr.bf16.gmra.mrb[0].mxu0 %v859
    %v904 = vpop.f32.mrb[0].mxu0
    %v905 = vadd.f32 %v833, %v904
    %v906 = vpop.f32.mrb[0].mxu0
    %v907 = vpop.f32.mrb[0].mxu0
    %v908 = vadd.f32 %v833, %v907
    %v909 = vpop.f32.mrb[0].mxu0
    %910 = vmatprep.mubr.bf16.mxu0 0
    %911 = vmatmul.mubr.bf16.gmra.mrb[0].mxu0 %v862
    %v912 = vpop.f32.mrb[0].mxu0
    %v913 = vadd.f32 %v833, %v912
    %v914 = vpop.f32.mrb[0].mxu0
    %v915 = vpop.f32.mrb[0].mxu0
    %v916 = vadd.f32 %v833, %v915
    %v917 = vpop.f32.mrb[0].mxu0
    %918 = vmatprep.mubr.bf16.mxu0 0
    %919 = vmatmul.mubr.bf16.gmra.mrb[0].mxu0 %v865
    %v920 = vpop.f32.mrb[0].mxu0
    %v921 = vadd.f32 %v833, %v920
    %v922 = vpop.f32.mrb[0].mxu0
    %v923 = vpop.f32.mrb[0].mxu0
    %v924 = vadd.f32 %v833, %v923
    %v925 = vpop.f32.mrb[0].mxu0
    %926 = vmatprep.mubr.bf16.mxu0 0
    %927 = vmatmul.mubr.bf16.gmra.mrb[0].mxu0 %v868
    %v928 = vpop.f32.mrb[0].mxu0
    %v929 = vadd.f32 %v833, %v928
    %v930 = vpop.f32.mrb[0].mxu0
    %v931 = vpop.f32.mrb[0].mxu0
    %v932 = vadd.f32 %v833, %v931
    %v933 = vpop.f32.mrb[0].mxu0
    %934 = vdwg.mxu0
    %v935 = vmax.f32 %v905, 0.0
    %v936 = vmax.f32 %v908, 0.0
    %v937 = vmax.f32 %v913, 0.0
    %v938 = vmax.f32 %v916, 0.0
    %v939 = vmax.f32 %v921, 0.0
    %v940 = vmax.f32 %v924, 0.0
    %v941 = vmax.f32 %v929, 0.0
    %v942 = vmax.f32 %v932, 0.0
    %v943 = vlaneseq
    %v944 = vshrl.u32 %v943, 7
    %v945 = vsub.s32 2, %v944
    %v946 = vrot.slane %v708, %v945
    %v947 = vmul.f32 %v935, %v946
    %v948 = vmul.f32 %v936, %v946
    %v949 = vmul.f32 %v937, %v946
    %v950 = vmul.f32 %v938, %v946
    %v951 = vmul.f32 %v939, %v946
    %v952 = vmul.f32 %v940, %v946
    %v953 = vmul.f32 %v941, %v946
    %v954 = vmul.f32 %v942, %v946
    %v955 = vlaneseq
    %v956 = vshrl.u32 %v955, 7
    %v957 = vsub.s32 3, %v956
    %v958 = vrot.slane %v708, %v957
    %v959 = vadd.f32 %v947, %v958
    %v960 = vadd.f32 %v948, %v958
    %v961 = vadd.f32 %v949, %v958
    %v962 = vadd.f32 %v950, %v958
    %v963 = vadd.f32 %v951, %v958
    %v964 = vadd.f32 %v952, %v958
    %v965 = vadd.f32 %v953, %v958
    %v966 = vadd.f32 %v954, %v958
    %v967 = vpack.c.bf16 %v960, %v959
    %v968 = vpack.c.bf16 %v962, %v961
    %v969 = vpack.c.bf16 %v964, %v963
    %v970 = vpack.c.bf16 %v966, %v965
    %971 = vmatprep.subr.bf16.mxu0 0
    %972 = vmatpush1.bf16.msra.mxu0 %v967
    %973 = vmatprep.subr.bf16.mxu0 0
    %974 = vmatpush1.bf16.msra.mxu0 %v968
    %975 = vmatprep.subr.bf16.mxu0 0
    %976 = vmatpush1.bf16.msra.mxu0 %v969
    %977 = vmatprep.subr.bf16.mxu0 0
    %978 = vmatpush1.bf16.msra.mxu0 %v970
    %979 = vmatprep.subr.bf16.mxu0 0
    %980 = vmatpush1.bf16.msra.mxu0 0
    %981 = vmatprep.subr.bf16.mxu0 0
    %982 = vmatpush1.bf16.msra.mxu0 0
    %983 = vmatprep.subr.bf16.mxu0 0
    %984 = vmatpush1.bf16.msra.mxu0 0
    %985 = vmatprep.subr.bf16.mxu0 0
    %986 = vmatpush1.bf16.msra.mxu0 0
    %987 = vmatprep.subr.bf16.mxu0 0
    %988 = vmatpush1.bf16.msra.mxu0 0
    %989 = vmatprep.subr.bf16.mxu0 0
    %990 = vmatpush1.bf16.msra.mxu0 0
    %991 = vmatprep.subr.bf16.mxu0 0
    %992 = vmatpush1.bf16.msra.mxu0 0
    %993 = vmatprep.subr.bf16.mxu0 0
    %994 = vmatpush1.bf16.msra.mxu0 0
    %995 = vmatprep.subr.bf16.mxu0 0
    %996 = vmatpush1.bf16.msra.mxu0 0
    %997 = vmatprep.subr.bf16.mxu0 0
    %998 = vmatpush1.bf16.msra.mxu0 0
    %999 = vmatprep.subr.bf16.mxu0 0
    %1000 = vmatpush1.bf16.msra.mxu0 0
    %1001 = vmatprep.subr.bf16.mxu0 0
    %1002 = vmatpush1.bf16.msra.mxu0 0
    %1003 = vmatprep.mubr.bf16.mxu0 0
    %1004 = vmatmul.mubr.bf16.gmra.mrb[0].mxu0 %v555
    %v1005 = vpop.f32.mrb[0].mxu0
    %v1006 = vadd.f32 0.0, %v1005
    %v1007 = vpop.f32.mrb[0].mxu0
    %v1008 = vpop.f32.mrb[0].mxu0
    %v1009 = vpop.f32.mrb[0].mxu0
    %1010 = vdwg.mxu0
    %v1011 = vpack.c.bf16 %v1006, %v1006
    %v1012 = vld [vmem:[%s8 + $0x20] sm:$0xf]
    %v1013 = vld [vmem:[%s8 + $0x24] sm:$0xf]
    %v1014 = vld [vmem:[%s8 + $0x28] sm:$0xf]
    %v1015 = vld [vmem:[%s8 + $0x2c] sm:$0xf]
    %v1016 = vld [vmem:[%s8 + $0x30] sm:$0xf]
    %v1017 = vld [vmem:[%s8 + $0x34] sm:$0xf]
    %v1018 = vld [vmem:[%s8 + $0x38] sm:$0xf]
    %v1019 = vld [vmem:[%s8 + $0x3c] sm:$0xf]
    %v1028 = vunpack.c.l.b16 %v1012
    %v1029 = vunpack.c.l.b16 %v1013
    %v1030 = vunpack.c.l.b16 %v1014
    %v1031 = vunpack.c.l.b16 %v1015
    %v1032 = vunpack.c.l.b16 %v1016
    %v1033 = vunpack.c.l.b16 %v1017
    %v1034 = vunpack.c.l.b16 %v1018
    %v1035 = vunpack.c.l.b16 %v1019
    %v1036 = vpack.c.b16 %v1029, %v1028
    %v1037 = vpack.c.b16 %v1031, %v1030
    %v1038 = vpack.c.b16 %v1033, %v1032
    %v1039 = vpack.c.b16 %v1035, %v1034
    %v1045 = vsel %vm158, %v1011, 0
    %1047 = vmatprep.subr.bf16.mxu0 0
    %1048 = vmatpush1.bf16.msra.mxu0 %v1036
    %1049 = vmatprep.subr.bf16.mxu0 0
    %1050 = vmatpush1.bf16.msra.mxu0 %v1037
    %1051 = vmatprep.subr.bf16.mxu0 0
    %1052 = vmatpush1.bf16.msra.mxu0 %v1038
    %1053 = vmatprep.subr.bf16.mxu0 0
    %1054 = vmatpush1.bf16.msra.mxu0 %v1039
    %1055 = vmatprep.subr.bf16.mxu0 0
    %1056 = vmatpush1.bf16.msra.mxu0 0
    %1057 = vmatprep.subr.bf16.mxu0 0
    %1058 = vmatpush1.bf16.msra.mxu0 0
    %1059 = vmatprep.subr.bf16.mxu0 0
    %1060 = vmatpush1.bf16.msra.mxu0 0
    %1061 = vmatprep.subr.bf16.mxu0 0
    %1062 = vmatpush1.bf16.msra.mxu0 0
    %1063 = vmatprep.subr.bf16.mxu0 0
    %1064 = vmatpush1.bf16.msra.mxu0 0
    %1065 = vmatprep.subr.bf16.mxu0 0
    %1066 = vmatpush1.bf16.msra.mxu0 0
    %1067 = vmatprep.subr.bf16.mxu0 0
    %1068 = vmatpush1.bf16.msra.mxu0 0
    %1069 = vmatprep.subr.bf16.mxu0 0
    %1070 = vmatpush1.bf16.msra.mxu0 0
    %1071 = vmatprep.subr.bf16.mxu0 0
    %1072 = vmatpush1.bf16.msra.mxu0 0
    %1073 = vmatprep.subr.bf16.mxu0 0
    %1074 = vmatpush1.bf16.msra.mxu0 0
    %1075 = vmatprep.subr.bf16.mxu0 0
    %1076 = vmatpush1.bf16.msra.mxu0 0
    %1077 = vmatprep.subr.bf16.mxu0 0
    %1078 = vmatpush1.bf16.msra.mxu0 0
    %1079 = vmatprep.mubr.bf16.mxu0 0
    %1080 = vmatmul.mubr.bf16.gmra.mrb[0].mxu0 %v1045
    %v1081 = vpop.f32.mrb[0].mxu0
    %v1082 = vadd.f32 0.0, %v1081
    %v1083 = vpop.f32.mrb[0].mxu0
    %v1084 = vpop.f32.mrb[0].mxu0
    %v1085 = vpop.f32.mrb[0].mxu0
    %1086 = vdwg.mxu0
    %v1095 = vunpack.c.l.b16 %v598
    %v1096 = vunpack.c.l.b16 %v599
    %v1097 = vunpack.c.l.b16 %v600
    %v1098 = vunpack.c.l.b16 %v601
    %v1099 = vunpack.c.l.b16 %v602
    %v1100 = vunpack.c.l.b16 %v603
    %v1101 = vunpack.c.l.b16 %v604
    %v1102 = vunpack.c.l.b16 %v605
    %v1103 = vpack.c.b16 %v1096, %v1095
    %v1104 = vpack.c.b16 %v1098, %v1097
    %v1105 = vpack.c.b16 %v1100, %v1099
    %v1106 = vpack.c.b16 %v1102, %v1101
    %v1112 = vsel %vm158, %v597, 0
    %1114 = vmatprep.subr.bf16.mxu0 0
    %1115 = vmatpush1.bf16.msra.mxu0 %v1103
    %1116 = vmatprep.subr.bf16.mxu0 0
    %1117 = vmatpush1.bf16.msra.mxu0 %v1104
    %1118 = vmatprep.subr.bf16.mxu0 0
    %1119 = vmatpush1.bf16.msra.mxu0 %v1105
    %1120 = vmatprep.subr.bf16.mxu0 0
    %1121 = vmatpush1.bf16.msra.mxu0 %v1106
    %1122 = vmatprep.subr.bf16.mxu0 0
    %1123 = vmatpush1.bf16.msra.mxu0 0
    %1124 = vmatprep.subr.bf16.mxu0 0
    %1125 = vmatpush1.bf16.msra.mxu0 0
    %1126 = vmatprep.subr.bf16.mxu0 0
    %1127 = vmatpush1.bf16.msra.mxu0 0
    %1128 = vmatprep.subr.bf16.mxu0 0
    %1129 = vmatpush1.bf16.msra.mxu0 0
    %1130 = vmatprep.subr.bf16.mxu0 0
    %1131 = vmatpush1.bf16.msra.mxu0 0
    %1132 = vmatprep.subr.bf16.mxu0 0
    %1133 = vmatpush1.bf16.msra.mxu0 0
    %1134 = vmatprep.subr.bf16.mxu0 0
    %1135 = vmatpush1.bf16.msra.mxu0 0
    %1136 = vmatprep.subr.bf16.mxu0 0
    %1137 = vmatpush1.bf16.msra.mxu0 0
    %1138 = vmatprep.subr.bf16.mxu0 0
    %1139 = vmatpush1.bf16.msra.mxu0 0
    %1140 = vmatprep.subr.bf16.mxu0 0
    %1141 = vmatpush1.bf16.msra.mxu0 0
    %1142 = vmatprep.subr.bf16.mxu0 0
    %1143 = vmatpush1.bf16.msra.mxu0 0
    %1144 = vmatprep.subr.bf16.mxu0 0
    %1145 = vmatpush1.bf16.msra.mxu0 0
    %1146 = vmatprep.mubr.bf16.mxu0 0
    %1147 = vmatmul.mubr.bf16.gmra.mrb[0].mxu0 %v1112
    %v1148 = vpop.f32.mrb[0].mxu0
    %v1149 = vadd.f32 %v1082, %v1148
    %v1150 = vpop.f32.mrb[0].mxu0
    %v1151 = vpop.f32.mrb[0].mxu0
    %v1152 = vpop.f32.mrb[0].mxu0
    %1153 = vdwg.mxu0
    %1154 = vmatprep.subr.bf16.mxu0 0
    %1155 = vmatpush1.bf16.msra.mxu0 %v967
    %1156 = vmatprep.subr.bf16.mxu0 0
    %1157 = vmatpush1.bf16.msra.mxu0 %v968
    %1158 = vmatprep.subr.bf16.mxu0 0
    %1159 = vmatpush1.bf16.msra.mxu0 %v969
    %1160 = vmatprep.subr.bf16.mxu0 0
    %1161 = vmatpush1.bf16.msra.mxu0 %v970
    %1162 = vmatprep.subr.bf16.mxu0 0
    %1163 = vmatpush1.bf16.msra.mxu0 0
    %1164 = vmatprep.subr.bf16.mxu0 0
    %1165 = vmatpush1.bf16.msra.mxu0 0
    %1166 = vmatprep.subr.bf16.mxu0 0
    %1167 = vmatpush1.bf16.msra.mxu0 0
    %1168 = vmatprep.subr.bf16.mxu0 0
    %1169 = vmatpush1.bf16.msra.mxu0 0
    %1170 = vmatprep.subr.bf16.mxu0 0
    %1171 = vmatpush1.bf16.msra.mxu0 0
    %1172 = vmatprep.subr.bf16.mxu0 0
    %1173 = vmatpush1.bf16.msra.mxu0 0
    %1174 = vmatprep.subr.bf16.mxu0 0
    %1175 = vmatpush1.bf16.msra.mxu0 0
    %1176 = vmatprep.subr.bf16.mxu0 0
    %1177 = vmatpush1.bf16.msra.mxu0 0
    %1178 = vmatprep.subr.bf16.mxu0 0
    %1179 = vmatpush1.bf16.msra.mxu0 0
    %1180 = vmatprep.subr.bf16.mxu0 0
    %1181 = vmatpush1.bf16.msra.mxu0 0
    %1182 = vmatprep.subr.bf16.mxu0 0
    %1183 = vmatpush1.bf16.msra.mxu0 0
    %1184 = vmatprep.subr.bf16.mxu0 0
    %1185 = vmatpush1.bf16.msra.mxu0 0
    %1186 = vmatprep.mubr.bf16.mxu0 0
    %1187 = vmatmul.mubr.bf16.gmra.mrb[0].mxu0 %v160
    %v1188 = vpop.f32.mrb[0].mxu0
    %v1189 = vadd.f32 0.0, %v1188
    %v1190 = vpop.f32.mrb[0].mxu0
    %v1191 = vpop.f32.mrb[0].mxu0
    %v1192 = vadd.f32 0.0, %v1191
    %v1193 = vpop.f32.mrb[0].mxu0
    %1194 = vmatprep.mubr.bf16.mxu0 0
    %1195 = vmatmul.mubr.bf16.gmra.mrb[0].mxu0 %v163
    %v1196 = vpop.f32.mrb[0].mxu0
    %v1197 = vadd.f32 0.0, %v1196
    %v1198 = vpop.f32.mrb[0].mxu0
    %v1199 = vpop.f32.mrb[0].mxu0
    %v1200 = vadd.f32 0.0, %v1199
    %v1201 = vpop.f32.mrb[0].mxu0
    %1202 = vmatprep.mubr.bf16.mxu0 0
    %1203 = vmatmul.mubr.bf16.gmra.mrb[0].mxu0 %v166
    %v1204 = vpop.f32.mrb[0].mxu0
    %v1205 = vadd.f32 0.0, %v1204
    %v1206 = vpop.f32.mrb[0].mxu0
    %v1207 = vpop.f32.mrb[0].mxu0
    %v1208 = vadd.f32 0.0, %v1207
    %v1209 = vpop.f32.mrb[0].mxu0
    %1210 = vmatprep.mubr.bf16.mxu0 0
    %1211 = vmatmul.mubr.bf16.gmra.mrb[0].mxu0 %v169
    %v1212 = vpop.f32.mrb[0].mxu0
    %v1213 = vadd.f32 0.0, %v1212
    %v1214 = vpop.f32.mrb[0].mxu0
    %v1215 = vpop.f32.mrb[0].mxu0
    %v1216 = vadd.f32 0.0, %v1215
    %v1217 = vpop.f32.mrb[0].mxu0
    %1218 = vdwg.mxu0
    %s1219 = sld [smem:[#allocation2 + $0x2]]
    %s1220 = sadd.f32 %s1219, 1.0
    %v1221 = vstv %s1220
    %v1222 = vmul.f32 %v1221, %v959
    %v1223 = vmul.f32 %v1221, %v960
    %v1224 = vmul.f32 %v1221, %v961
    %v1225 = vmul.f32 %v1221, %v962
    %v1226 = vmul.f32 %v1221, %v963
    %v1227 = vmul.f32 %v1221, %v964
    %v1228 = vmul.f32 %v1221, %v965
    %v1229 = vmul.f32 %v1221, %v966
    %v1230 = vadd.f32 %v1222, %v1189
    %v1231 = vadd.f32 %v1223, %v1192
    %v1232 = vadd.f32 %v1224, %v1197
    %v1233 = vadd.f32 %v1225, %v1200
    %v1234 = vadd.f32 %v1226, %v1205
    %v1235 = vadd.f32 %v1227, %v1208
    %v1236 = vadd.f32 %v1228, %v1213
    %v1237 = vadd.f32 %v1229, %v1216
    %s1238 = scalar_lea.vmem %s5, 32
    %v1239 = vld [vmem:[%s1238] sm:$0xf]
    %v1240 = vld [vmem:[%s1238 + $0x4] sm:$0xf]
    %v1241 = vld [vmem:[%s1238 + $0x8] sm:$0xf]
    %v1242 = vld [vmem:[%s1238 + $0xc] sm:$0xf]
    %v1243 = vld [vmem:[%s1238 + $0x10] sm:$0xf]
    %v1244 = vld [vmem:[%s1238 + $0x14] sm:$0xf]
    %v1245 = vld [vmem:[%s1238 + $0x18] sm:$0xf]
    %v1246 = vld [vmem:[%s1238 + $0x1c] sm:$0xf]
    %s1247 = scalar_lea.vmem %s6, 64
    %v1248 = vld [vmem:[%s1247] sm:$0xf]
    %v1249 = vld [vmem:[%s1247 + $0x4] sm:$0xf]
    %v1250 = vld [vmem:[%s1247 + $0x8] sm:$0xf]
    %v1251 = vld [vmem:[%s1247 + $0xc] sm:$0xf]
    %v1252 = vld [vmem:[%s1247 + $0x10] sm:$0xf]
    %v1253 = vld [vmem:[%s1247 + $0x14] sm:$0xf]
    %v1254 = vld [vmem:[%s1247 + $0x18] sm:$0xf]
    %v1255 = vld [vmem:[%s1247 + $0x1c] sm:$0xf]
    %s1256 = scalar_lea.vmem [#allocation9], 8
    %v1257 = vld [vmem:[%s1256] sm:$0xf]
    %v1258 = vpack.c.bf16 %v1231, %v1230
    %v1259 = vpack.c.bf16 %v1233, %v1232
    %v1260 = vpack.c.bf16 %v1235, %v1234
    %v1261 = vpack.c.bf16 %v1237, %v1236
    %v1262 = vlaneseq
    %v1263 = vshrl.u32 %v1262, 7
    %v1264 = vsub.s32 0, %v1263
    %v1265 = vrot.slane %v1257, %v1264
    %v1274 = vunpack.c.l.b16 %v1239
    %v1275 = vunpack.c.l.b16 %v1240
    %v1276 = vunpack.c.l.b16 %v1241
    %v1277 = vunpack.c.l.b16 %v1242
    %v1278 = vunpack.c.l.b16 %v1243
    %v1279 = vunpack.c.l.b16 %v1244
    %v1280 = vunpack.c.l.b16 %v1245
    %v1281 = vunpack.c.l.b16 %v1246
    %v1282 = vpack.c.b16 %v1275, %v1274
    %v1283 = vpack.c.b16 %v1277, %v1276
    %v1284 = vpack.c.b16 %v1279, %v1278
    %v1285 = vpack.c.b16 %v1281, %v1280
    %v1291 = vsel %vm158, %v1258, 0
    %v1294 = vsel %vm158, %v1259, 0
    %v1297 = vsel %vm158, %v1260, 0
    %v1300 = vsel %vm158, %v1261, 0
    %1302 = vmatprep.subr.bf16.mxu0 0
    %1303 = vmatpush1.bf16.msra.mxu0 %v1282
    %1304 = vmatprep.subr.bf16.mxu0 0
    %1305 = vmatpush1.bf16.msra.mxu0 %v1283
    %1306 = vmatprep.subr.bf16.mxu0 0
    %1307 = vmatpush1.bf16.msra.mxu0 %v1284
    %1308 = vmatprep.subr.bf16.mxu0 0
    %1309 = vmatpush1.bf16.msra.mxu0 %v1285
    %1310 = vmatprep.subr.bf16.mxu0 0
    %1311 = vmatpush1.bf16.msra.mxu0 0
    %1312 = vmatprep.subr.bf16.mxu0 0
    %1313 = vmatpush1.bf16.msra.mxu0 0
    %1314 = vmatprep.subr.bf16.mxu0 0
    %1315 = vmatpush1.bf16.msra.mxu0 0
    %1316 = vmatprep.subr.bf16.mxu0 0
    %1317 = vmatpush1.bf16.msra.mxu0 0
    %1318 = vmatprep.subr.bf16.mxu0 0
    %1319 = vmatpush1.bf16.msra.mxu0 0
    %1320 = vmatprep.subr.bf16.mxu0 0
    %1321 = vmatpush1.bf16.msra.mxu0 0
    %1322 = vmatprep.subr.bf16.mxu0 0
    %1323 = vmatpush1.bf16.msra.mxu0 0
    %1324 = vmatprep.subr.bf16.mxu0 0
    %1325 = vmatpush1.bf16.msra.mxu0 0
    %1326 = vmatprep.subr.bf16.mxu0 0
    %1327 = vmatpush1.bf16.msra.mxu0 0
    %1328 = vmatprep.subr.bf16.mxu0 0
    %1329 = vmatpush1.bf16.msra.mxu0 0
    %1330 = vmatprep.subr.bf16.mxu0 0
    %1331 = vmatpush1.bf16.msra.mxu0 0
    %1332 = vmatprep.subr.bf16.mxu0 0
    %1333 = vmatpush1.bf16.msra.mxu0 0
    %1334 = vmatprep.mubr.bf16.mxu0 0
    %1335 = vmatmul.mubr.bf16.gmra.mrb[0].mxu0 %v1291
    %v1336 = vpop.f32.mrb[0].mxu0
    %v1337 = vadd.f32 %v1265, %v1336
    %v1338 = vpop.f32.mrb[0].mxu0
    %v1339 = vpop.f32.mrb[0].mxu0
    %v1340 = vadd.f32 %v1265, %v1339
    %v1341 = vpop.f32.mrb[0].mxu0
    %1342 = vmatprep.mubr.bf16.mxu0 0
    %1343 = vmatmul.mubr.bf16.gmra.mrb[0].mxu0 %v1294
    %v1344 = vpop.f32.mrb[0].mxu0
    %v1345 = vadd.f32 %v1265, %v1344
    %v1346 = vpop.f32.mrb[0].mxu0
    %v1347 = vpop.f32.mrb[0].mxu0
    %v1348 = vadd.f32 %v1265, %v1347
    %v1349 = vpop.f32.mrb[0].mxu0
    %1350 = vmatprep.mubr.bf16.mxu0 0
    %1351 = vmatmul.mubr.bf16.gmra.mrb[0].mxu0 %v1297
    %v1352 = vpop.f32.mrb[0].mxu0
    %v1353 = vadd.f32 %v1265, %v1352
    %v1354 = vpop.f32.mrb[0].mxu0
    %v1355 = vpop.f32.mrb[0].mxu0
    %v1356 = vadd.f32 %v1265, %v1355
    %v1357 = vpop.f32.mrb[0].mxu0
    %1358 = vmatprep.mubr.bf16.mxu0 0
    %1359 = vmatmul.mubr.bf16.gmra.mrb[0].mxu0 %v1300
    %v1360 = vpop.f32.mrb[0].mxu0
    %v1361 = vadd.f32 %v1265, %v1360
    %v1362 = vpop.f32.mrb[0].mxu0
    %v1363 = vpop.f32.mrb[0].mxu0
    %v1364 = vadd.f32 %v1265, %v1363
    %v1365 = vpop.f32.mrb[0].mxu0
    %1366 = vdwg.mxu0
    %v1367 = vmax.f32 %v1337, 0.0
    %v1368 = vmax.f32 %v1340, 0.0
    %v1369 = vmax.f32 %v1345, 0.0
    %v1370 = vmax.f32 %v1348, 0.0
    %v1371 = vmax.f32 %v1353, 0.0
    %v1372 = vmax.f32 %v1356, 0.0
    %v1373 = vmax.f32 %v1361, 0.0
    %v1374 = vmax.f32 %v1364, 0.0
    %v1375 = vpack.c.bf16 %v1368, %v1367
    %v1376 = vpack.c.bf16 %v1370, %v1369
    %v1377 = vpack.c.bf16 %v1372, %v1371
    %v1378 = vpack.c.bf16 %v1374, %v1373
    %v1379 = vlaneseq
    %v1380 = vshrl.u32 %v1379, 7
    %v1381 = vsub.s32 1, %v1380
    %v1382 = vrot.slane %v1257, %v1381
    %v1391 = vunpack.c.l.b16 %v1248
    %v1392 = vunpack.c.l.b16 %v1249
    %v1393 = vunpack.c.l.b16 %v1250
    %v1394 = vunpack.c.l.b16 %v1251
    %v1395 = vunpack.c.l.b16 %v1252
    %v1396 = vunpack.c.l.b16 %v1253
    %v1397 = vunpack.c.l.b16 %v1254
    %v1398 = vunpack.c.l.b16 %v1255
    %v1399 = vpack.c.b16 %v1392, %v1391
    %v1400 = vpack.c.b16 %v1394, %v1393
    %v1401 = vpack.c.b16 %v1396, %v1395
    %v1402 = vpack.c.b16 %v1398, %v1397
    %v1408 = vsel %vm158, %v1375, 0
    %v1411 = vsel %vm158, %v1376, 0
    %v1414 = vsel %vm158, %v1377, 0
    %v1417 = vsel %vm158, %v1378, 0
    %1419 = vmatprep.subr.bf16.mxu0 0
    %1420 = vmatpush1.bf16.msra.mxu0 %v1399
    %1421 = vmatprep.subr.bf16.mxu0 0
    %1422 = vmatpush1.bf16.msra.mxu0 %v1400
    %1423 = vmatprep.subr.bf16.mxu0 0
    %1424 = vmatpush1.bf16.msra.mxu0 %v1401
    %1425 = vmatprep.subr.bf16.mxu0 0
    %1426 = vmatpush1.bf16.msra.mxu0 %v1402
    %1427 = vmatprep.subr.bf16.mxu0 0
    %1428 = vmatpush1.bf16.msra.mxu0 0
    %1429 = vmatprep.subr.bf16.mxu0 0
    %1430 = vmatpush1.bf16.msra.mxu0 0
    %1431 = vmatprep.subr.bf16.mxu0 0
    %1432 = vmatpush1.bf16.msra.mxu0 0
    %1433 = vmatprep.subr.bf16.mxu0 0
    %1434 = vmatpush1.bf16.msra.mxu0 0
    %1435 = vmatprep.subr.bf16.mxu0 0
    %1436 = vmatpush1.bf16.msra.mxu0 0
    %1437 = vmatprep.subr.bf16.mxu0 0
    %1438 = vmatpush1.bf16.msra.mxu0 0
    %1439 = vmatprep.subr.bf16.mxu0 0
    %1440 = vmatpush1.bf16.msra.mxu0 0
    %1441 = vmatprep.subr.bf16.mxu0 0
    %1442 = vmatpush1.bf16.msra.mxu0 0
    %1443 = vmatprep.subr.bf16.mxu0 0
    %1444 = vmatpush1.bf16.msra.mxu0 0
    %1445 = vmatprep.subr.bf16.mxu0 0
    %1446 = vmatpush1.bf16.msra.mxu0 0
    %1447 = vmatprep.subr.bf16.mxu0 0
    %1448 = vmatpush1.bf16.msra.mxu0 0
    %1449 = vmatprep.subr.bf16.mxu0 0
    %1450 = vmatpush1.bf16.msra.mxu0 0
    %1451 = vmatprep.mubr.bf16.mxu0 0
    %1452 = vmatmul.mubr.bf16.gmra.mrb[0].mxu0 %v1408
    %v1453 = vpop.f32.mrb[0].mxu0
    %v1454 = vadd.f32 %v1382, %v1453
    %v1455 = vpop.f32.mrb[0].mxu0
    %v1456 = vpop.f32.mrb[0].mxu0
    %v1457 = vadd.f32 %v1382, %v1456
    %v1458 = vpop.f32.mrb[0].mxu0
    %1459 = vmatprep.mubr.bf16.mxu0 0
    %1460 = vmatmul.mubr.bf16.gmra.mrb[0].mxu0 %v1411
    %v1461 = vpop.f32.mrb[0].mxu0
    %v1462 = vadd.f32 %v1382, %v1461
    %v1463 = vpop.f32.mrb[0].mxu0
    %v1464 = vpop.f32.mrb[0].mxu0
    %v1465 = vadd.f32 %v1382, %v1464
    %v1466 = vpop.f32.mrb[0].mxu0
    %1467 = vmatprep.mubr.bf16.mxu0 0
    %1468 = vmatmul.mubr.bf16.gmra.mrb[0].mxu0 %v1414
    %v1469 = vpop.f32.mrb[0].mxu0
    %v1470 = vadd.f32 %v1382, %v1469
    %v1471 = vpop.f32.mrb[0].mxu0
    %v1472 = vpop.f32.mrb[0].mxu0
    %v1473 = vadd.f32 %v1382, %v1472
    %v1474 = vpop.f32.mrb[0].mxu0
    %1475 = vmatprep.mubr.bf16.mxu0 0
    %1476 = vmatmul.mubr.bf16.gmra.mrb[0].mxu0 %v1417
    %v1477 = vpop.f32.mrb[0].mxu0
    %v1478 = vadd.f32 %v1382, %v1477
    %v1479 = vpop.f32.mrb[0].mxu0
    %v1480 = vpop.f32.mrb[0].mxu0
    %v1481 = vadd.f32 %v1382, %v1480
    %v1482 = vpop.f32.mrb[0].mxu0
    %1483 = vdwg.mxu0
    %v1484 = vmax.f32 %v1454, 0.0
    %v1485 = vmax.f32 %v1457, 0.0
    %v1486 = vmax.f32 %v1462, 0.0
    %v1487 = vmax.f32 %v1465, 0.0
    %v1488 = vmax.f32 %v1470, 0.0
    %v1489 = vmax.f32 %v1473, 0.0
    %v1490 = vmax.f32 %v1478, 0.0
    %v1491 = vmax.f32 %v1481, 0.0
    %v1492 = vlaneseq
    %v1493 = vshrl.u32 %v1492, 7
    %v1494 = vsub.s32 2, %v1493
    %v1495 = vrot.slane %v1257, %v1494
    %v1496 = vmul.f32 %v1484, %v1495
    %v1497 = vmul.f32 %v1485, %v1495
    %v1498 = vmul.f32 %v1486, %v1495
    %v1499 = vmul.f32 %v1487, %v1495
    %v1500 = vmul.f32 %v1488, %v1495
    %v1501 = vmul.f32 %v1489, %v1495
    %v1502 = vmul.f32 %v1490, %v1495
    %v1503 = vmul.f32 %v1491, %v1495
    %v1504 = vlaneseq
    %v1505 = vshrl.u32 %v1504, 7
    %v1506 = vsub.s32 3, %v1505
    %v1507 = vrot.slane %v1257, %v1506
    %v1508 = vadd.f32 %v1496, %v1507
    %v1509 = vadd.f32 %v1497, %v1507
    %v1510 = vadd.f32 %v1498, %v1507
    %v1511 = vadd.f32 %v1499, %v1507
    %v1512 = vadd.f32 %v1500, %v1507
    %v1513 = vadd.f32 %v1501, %v1507
    %v1514 = vadd.f32 %v1502, %v1507
    %v1515 = vadd.f32 %v1503, %v1507
    %v1516 = vpack.c.bf16 %v1509, %v1508
    %v1517 = vpack.c.bf16 %v1511, %v1510
    %v1518 = vpack.c.bf16 %v1513, %v1512
    %v1519 = vpack.c.bf16 %v1515, %v1514
    %1520 = vmatprep.subr.bf16.mxu0 0
    %1521 = vmatpush1.bf16.msra.mxu0 %v1516
    %1522 = vmatprep.subr.bf16.mxu0 0
    %1523 = vmatpush1.bf16.msra.mxu0 %v1517
    %1524 = vmatprep.subr.bf16.mxu0 0
    %1525 = vmatpush1.bf16.msra.mxu0 %v1518
    %1526 = vmatprep.subr.bf16.mxu0 0
    %1527 = vmatpush1.bf16.msra.mxu0 %v1519
    %1528 = vmatprep.subr.bf16.mxu0 0
    %1529 = vmatpush1.bf16.msra.mxu0 0
    %1530 = vmatprep.subr.bf16.mxu0 0
    %1531 = vmatpush1.bf16.msra.mxu0 0
    %1532 = vmatprep.subr.bf16.mxu0 0
    %1533 = vmatpush1.bf16.msra.mxu0 0
    %1534 = vmatprep.subr.bf16.mxu0 0
    %1535 = vmatpush1.bf16.msra.mxu0 0
    %1536 = vmatprep.subr.bf16.mxu0 0
    %1537 = vmatpush1.bf16.msra.mxu0 0
    %1538 = vmatprep.subr.bf16.mxu0 0
    %1539 = vmatpush1.bf16.msra.mxu0 0
    %1540 = vmatprep.subr.bf16.mxu0 0
    %1541 = vmatpush1.bf16.msra.mxu0 0
    %1542 = vmatprep.subr.bf16.mxu0 0
    %1543 = vmatpush1.bf16.msra.mxu0 0
    %1544 = vmatprep.subr.bf16.mxu0 0
    %1545 = vmatpush1.bf16.msra.mxu0 0
    %1546 = vmatprep.subr.bf16.mxu0 0
    %1547 = vmatpush1.bf16.msra.mxu0 0
    %1548 = vmatprep.subr.bf16.mxu0 0
    %1549 = vmatpush1.bf16.msra.mxu0 0
    %1550 = vmatprep.subr.bf16.mxu0 0
    %1551 = vmatpush1.bf16.msra.mxu0 0
    %1552 = vmatprep.mubr.bf16.mxu0 0
    %1553 = vmatmul.mubr.bf16.gmra.mrb[0].mxu0 %v555
    %v1554 = vpop.f32.mrb[0].mxu0
    %v1555 = vadd.f32 0.0, %v1554
    %v1556 = vpop.f32.mrb[0].mxu0
    %v1557 = vpop.f32.mrb[0].mxu0
    %v1558 = vpop.f32.mrb[0].mxu0
    %1559 = vdwg.mxu0
    %v1560 = vpack.c.bf16 %v1555, %v1555
    %v1561 = vld [vmem:[%s8 + $0x40] sm:$0xf]
    %v1562 = vld [vmem:[%s8 + $0x44] sm:$0xf]
    %v1563 = vld [vmem:[%s8 + $0x48] sm:$0xf]
    %v1564 = vld [vmem:[%s8 + $0x4c] sm:$0xf]
    %v1565 = vld [vmem:[%s8 + $0x50] sm:$0xf]
    %v1566 = vld [vmem:[%s8 + $0x54] sm:$0xf]
    %v1567 = vld [vmem:[%s8 + $0x58] sm:$0xf]
    %v1568 = vld [vmem:[%s8 + $0x5c] sm:$0xf]
    %v1577 = vunpack.c.l.b16 %v1561
    %v1578 = vunpack.c.l.b16 %v1562
    %v1579 = vunpack.c.l.b16 %v1563
    %v1580 = vunpack.c.l.b16 %v1564
    %v1581 = vunpack.c.l.b16 %v1565
    %v1582 = vunpack.c.l.b16 %v1566
    %v1583 = vunpack.c.l.b16 %v1567
    %v1584 = vunpack.c.l.b16 %v1568
    %v1585 = vpack.c.b16 %v1578, %v1577
    %v1586 = vpack.c.b16 %v1580, %v1579
    %v1587 = vpack.c.b16 %v1582, %v1581
    %v1588 = vpack.c.b16 %v1584, %v1583
    %v1594 = vsel %vm158, %v1560, 0
    %1596 = vmatprep.subr.bf16.mxu0 0
    %1597 = vmatpush1.bf16.msra.mxu0 %v1585
    %1598 = vmatprep.subr.bf16.mxu0 0
    %1599 = vmatpush1.bf16.msra.mxu0 %v1586
    %1600 = vmatprep.subr.bf16.mxu0 0
    %1601 = vmatpush1.bf16.msra.mxu0 %v1587
    %1602 = vmatprep.subr.bf16.mxu0 0
    %1603 = vmatpush1.bf16.msra.mxu0 %v1588
    %1604 = vmatprep.subr.bf16.mxu0 0
    %1605 = vmatpush1.bf16.msra.mxu0 0
    %1606 = vmatprep.subr.bf16.mxu0 0
    %1607 = vmatpush1.bf16.msra.mxu0 0
    %1608 = vmatprep.subr.bf16.mxu0 0
    %1609 = vmatpush1.bf16.msra.mxu0 0
    %1610 = vmatprep.subr.bf16.mxu0 0
    %1611 = vmatpush1.bf16.msra.mxu0 0
    %1612 = vmatprep.subr.bf16.mxu0 0
    %1613 = vmatpush1.bf16.msra.mxu0 0
    %1614 = vmatprep.subr.bf16.mxu0 0
    %1615 = vmatpush1.bf16.msra.mxu0 0
    %1616 = vmatprep.subr.bf16.mxu0 0
    %1617 = vmatpush1.bf16.msra.mxu0 0
    %1618 = vmatprep.subr.bf16.mxu0 0
    %1619 = vmatpush1.bf16.msra.mxu0 0
    %1620 = vmatprep.subr.bf16.mxu0 0
    %1621 = vmatpush1.bf16.msra.mxu0 0
    %1622 = vmatprep.subr.bf16.mxu0 0
    %1623 = vmatpush1.bf16.msra.mxu0 0
    %1624 = vmatprep.subr.bf16.mxu0 0
    %1625 = vmatpush1.bf16.msra.mxu0 0
    %1626 = vmatprep.subr.bf16.mxu0 0
    %1627 = vmatpush1.bf16.msra.mxu0 0
    %1628 = vmatprep.mubr.bf16.mxu0 0
    %1629 = vmatmul.mubr.bf16.gmra.mrb[0].mxu0 %v1594
    %v1630 = vpop.f32.mrb[0].mxu0
    %v1631 = vadd.f32 0.0, %v1630
    %v1632 = vpop.f32.mrb[0].mxu0
    %v1633 = vpop.f32.mrb[0].mxu0
    %v1634 = vpop.f32.mrb[0].mxu0
    %1635 = vdwg.mxu0
    %v1636 = vadd.f32 %v1149, %v1631
    %1637 = vmatprep.subr.bf16.mxu0 0
    %1638 = vmatpush1.bf16.msra.mxu0 %v1516
    %1639 = vmatprep.subr.bf16.mxu0 0
    %1640 = vmatpush1.bf16.msra.mxu0 %v1517
    %1641 = vmatprep.subr.bf16.mxu0 0
    %1642 = vmatpush1.bf16.msra.mxu0 %v1518
    %1643 = vmatprep.subr.bf16.mxu0 0
    %1644 = vmatpush1.bf16.msra.mxu0 %v1519
    %1645 = vmatprep.subr.bf16.mxu0 0
    %1646 = vmatpush1.bf16.msra.mxu0 0
    %1647 = vmatprep.subr.bf16.mxu0 0
    %1648 = vmatpush1.bf16.msra.mxu0 0
    %1649 = vmatprep.subr.bf16.mxu0 0
    %1650 = vmatpush1.bf16.msra.mxu0 0
    %1651 = vmatprep.subr.bf16.mxu0 0
    %1652 = vmatpush1.bf16.msra.mxu0 0
    %1653 = vmatprep.subr.bf16.mxu0 0
    %1654 = vmatpush1.bf16.msra.mxu0 0
    %1655 = vmatprep.subr.bf16.mxu0 0
    %1656 = vmatpush1.bf16.msra.mxu0 0
    %1657 = vmatprep.subr.bf16.mxu0 0
    %1658 = vmatpush1.bf16.msra.mxu0 0
    %1659 = vmatprep.subr.bf16.mxu0 0
    %1660 = vmatpush1.bf16.msra.mxu0 0
    %1661 = vmatprep.subr.bf16.mxu0 0
    %1662 = vmatpush1.bf16.msra.mxu0 0
    %1663 = vmatprep.subr.bf16.mxu0 0
    %1664 = vmatpush1.bf16.msra.mxu0 0
    %1665 = vmatprep.subr.bf16.mxu0 0
    %1666 = vmatpush1.bf16.msra.mxu0 0
    %1667 = vmatprep.subr.bf16.mxu0 0
    %1668 = vmatpush1.bf16.msra.mxu0 0
    %1669 = vmatprep.mubr.bf16.mxu0 0
    %1670 = vmatmul.mubr.bf16.gmra.mrb[0].mxu0 %v160
    %v1671 = vpop.f32.mrb[0].mxu0
    %v1672 = vadd.f32 0.0, %v1671
    %v1673 = vpop.f32.mrb[0].mxu0
    %v1674 = vpop.f32.mrb[0].mxu0
    %v1675 = vadd.f32 0.0, %v1674
    %v1676 = vpop.f32.mrb[0].mxu0
    %1677 = vmatprep.mubr.bf16.mxu0 0
    %1678 = vmatmul.mubr.bf16.gmra.mrb[0].mxu0 %v163
    %v1679 = vpop.f32.mrb[0].mxu0
    %v1680 = vadd.f32 0.0, %v1679
    %v1681 = vpop.f32.mrb[0].mxu0
    %v1682 = vpop.f32.mrb[0].mxu0
    %v1683 = vadd.f32 0.0, %v1682
    %v1684 = vpop.f32.mrb[0].mxu0
    %1685 = vmatprep.mubr.bf16.mxu0 0
    %1686 = vmatmul.mubr.bf16.gmra.mrb[0].mxu0 %v166
    %v1687 = vpop.f32.mrb[0].mxu0
    %v1688 = vadd.f32 0.0, %v1687
    %v1689 = vpop.f32.mrb[0].mxu0
    %v1690 = vpop.f32.mrb[0].mxu0
    %v1691 = vadd.f32 0.0, %v1690
    %v1692 = vpop.f32.mrb[0].mxu0
    %1693 = vmatprep.mubr.bf16.mxu0 0
    %1694 = vmatmul.mubr.bf16.gmra.mrb[0].mxu0 %v169
    %v1695 = vpop.f32.mrb[0].mxu0
    %v1696 = vadd.f32 0.0, %v1695
    %v1697 = vpop.f32.mrb[0].mxu0
    %v1698 = vpop.f32.mrb[0].mxu0
    %v1699 = vadd.f32 0.0, %v1698
    %v1700 = vpop.f32.mrb[0].mxu0
    %1701 = vdwg.mxu0
    %s1702 = sld [smem:[#allocation2 + $0x3]]
    %s1703 = sadd.f32 %s1702, 1.0
    %v1704 = vstv %s1703
    %v1705 = vmul.f32 %v1704, %v1508
    %v1706 = vmul.f32 %v1704, %v1509
    %v1707 = vmul.f32 %v1704, %v1510
    %v1708 = vmul.f32 %v1704, %v1511
    %v1709 = vmul.f32 %v1704, %v1512
    %v1710 = vmul.f32 %v1704, %v1513
    %v1711 = vmul.f32 %v1704, %v1514
    %v1712 = vmul.f32 %v1704, %v1515
    %v1713 = vadd.f32 %v1705, %v1672
    %v1714 = vadd.f32 %v1706, %v1675
    %v1715 = vadd.f32 %v1707, %v1680
    %v1716 = vadd.f32 %v1708, %v1683
    %v1717 = vadd.f32 %v1709, %v1688
    %v1718 = vadd.f32 %v1710, %v1691
    %v1719 = vadd.f32 %v1711, %v1696
    %v1720 = vadd.f32 %v1712, %v1699
    %s1721 = scalar_lea.vmem %s5, 64
    %v1722 = vld [vmem:[%s1721] sm:$0xf]
    %v1723 = vld [vmem:[%s1721 + $0x4] sm:$0xf]
    %v1724 = vld [vmem:[%s1721 + $0x8] sm:$0xf]
    %v1725 = vld [vmem:[%s1721 + $0xc] sm:$0xf]
    %v1726 = vld [vmem:[%s1721 + $0x10] sm:$0xf]
    %v1727 = vld [vmem:[%s1721 + $0x14] sm:$0xf]
    %v1728 = vld [vmem:[%s1721 + $0x18] sm:$0xf]
    %v1729 = vld [vmem:[%s1721 + $0x1c] sm:$0xf]
    %s1730 = scalar_lea.vmem %s6, 96
    %v1731 = vld [vmem:[%s1730] sm:$0xf]
    %v1732 = vld [vmem:[%s1730 + $0x4] sm:$0xf]
    %v1733 = vld [vmem:[%s1730 + $0x8] sm:$0xf]
    %v1734 = vld [vmem:[%s1730 + $0xc] sm:$0xf]
    %v1735 = vld [vmem:[%s1730 + $0x10] sm:$0xf]
    %v1736 = vld [vmem:[%s1730 + $0x14] sm:$0xf]
    %v1737 = vld [vmem:[%s1730 + $0x18] sm:$0xf]
    %v1738 = vld [vmem:[%s1730 + $0x1c] sm:$0xf]
    %s1739 = scalar_lea.vmem [#allocation9], 12
    %v1740 = vld [vmem:[%s1739] sm:$0xf]
    %v1741 = vpack.c.bf16 %v1714, %v1713
    %v1742 = vpack.c.bf16 %v1716, %v1715
    %v1743 = vpack.c.bf16 %v1718, %v1717
    %v1744 = vpack.c.bf16 %v1720, %v1719
    %v1745 = vlaneseq
    %v1746 = vshrl.u32 %v1745, 7
    %v1747 = vsub.s32 0, %v1746
    %v1748 = vrot.slane %v1740, %v1747
    %v1757 = vunpack.c.l.b16 %v1722
    %v1758 = vunpack.c.l.b16 %v1723
    %v1759 = vunpack.c.l.b16 %v1724
    %v1760 = vunpack.c.l.b16 %v1725
    %v1761 = vunpack.c.l.b16 %v1726
    %v1762 = vunpack.c.l.b16 %v1727
    %v1763 = vunpack.c.l.b16 %v1728
    %v1764 = vunpack.c.l.b16 %v1729
    %v1765 = vpack.c.b16 %v1758, %v1757
    %v1766 = vpack.c.b16 %v1760, %v1759
    %v1767 = vpack.c.b16 %v1762, %v1761
    %v1768 = vpack.c.b16 %v1764, %v1763
    %v1774 = vsel %vm158, %v1741, 0
    %v1777 = vsel %vm158, %v1742, 0
    %v1780 = vsel %vm158, %v1743, 0
    %v1783 = vsel %vm158, %v1744, 0
    %1785 = vmatprep.subr.bf16.mxu0 0
    %1786 = vmatpush1.bf16.msra.mxu0 %v1765
    %1787 = vmatprep.subr.bf16.mxu0 0
    %1788 = vmatpush1.bf16.msra.mxu0 %v1766
    %1789 = vmatprep.subr.bf16.mxu0 0
    %1790 = vmatpush1.bf16.msra.mxu0 %v1767
    %1791 = vmatprep.subr.bf16.mxu0 0
    %1792 = vmatpush1.bf16.msra.mxu0 %v1768
    %1793 = vmatprep.subr.bf16.mxu0 0
    %1794 = vmatpush1.bf16.msra.mxu0 0
    %1795 = vmatprep.subr.bf16.mxu0 0
    %1796 = vmatpush1.bf16.msra.mxu0 0
    %1797 = vmatprep.subr.bf16.mxu0 0
    %1798 = vmatpush1.bf16.msra.mxu0 0
    %1799 = vmatprep.subr.bf16.mxu0 0
    %1800 = vmatpush1.bf16.msra.mxu0 0
    %1801 = vmatprep.subr.bf16.mxu0 0
    %1802 = vmatpush1.bf16.msra.mxu0 0
    %1803 = vmatprep.subr.bf16.mxu0 0
    %1804 = vmatpush1.bf16.msra.mxu0 0
    %1805 = vmatprep.subr.bf16.mxu0 0
    %1806 = vmatpush1.bf16.msra.mxu0 0
    %1807 = vmatprep.subr.bf16.mxu0 0
    %1808 = vmatpush1.bf16.msra.mxu0 0
    %1809 = vmatprep.subr.bf16.mxu0 0
    %1810 = vmatpush1.bf16.msra.mxu0 0
    %1811 = vmatprep.subr.bf16.mxu0 0
    %1812 = vmatpush1.bf16.msra.mxu0 0
    %1813 = vmatprep.subr.bf16.mxu0 0
    %1814 = vmatpush1.bf16.msra.mxu0 0
    %1815 = vmatprep.subr.bf16.mxu0 0
    %1816 = vmatpush1.bf16.msra.mxu0 0
    %1817 = vmatprep.mubr.bf16.mxu0 0
    %1818 = vmatmul.mubr.bf16.gmra.mrb[0].mxu0 %v1774
    %v1819 = vpop.f32.mrb[0].mxu0
    %v1820 = vadd.f32 %v1748, %v1819
    %v1821 = vpop.f32.mrb[0].mxu0
    %v1822 = vpop.f32.mrb[0].mxu0
    %v1823 = vadd.f32 %v1748, %v1822
    %v1824 = vpop.f32.mrb[0].mxu0
    %1825 = vmatprep.mubr.bf16.mxu0 0
    %1826 = vmatmul.mubr.bf16.gmra.mrb[0].mxu0 %v1777
    %v1827 = vpop.f32.mrb[0].mxu0
    %v1828 = vadd.f32 %v1748, %v1827
    %v1829 = vpop.f32.mrb[0].mxu0
    %v1830 = vpop.f32.mrb[0].mxu0
    %v1831 = vadd.f32 %v1748, %v1830
    %v1832 = vpop.f32.mrb[0].mxu0
    %1833 = vmatprep.mubr.bf16.mxu0 0
    %1834 = vmatmul.mubr.bf16.gmra.mrb[0].mxu0 %v1780
    %v1835 = vpop.f32.mrb[0].mxu0
    %v1836 = vadd.f32 %v1748, %v1835
    %v1837 = vpop.f32.mrb[0].mxu0
    %v1838 = vpop.f32.mrb[0].mxu0
    %v1839 = vadd.f32 %v1748, %v1838
    %v1840 = vpop.f32.mrb[0].mxu0
    %1841 = vmatprep.mubr.bf16.mxu0 0
    %1842 = vmatmul.mubr.bf16.gmra.mrb[0].mxu0 %v1783
    %v1843 = vpop.f32.mrb[0].mxu0
    %v1844 = vadd.f32 %v1748, %v1843
    %v1845 = vpop.f32.mrb[0].mxu0
    %v1846 = vpop.f32.mrb[0].mxu0
    %v1847 = vadd.f32 %v1748, %v1846
    %v1848 = vpop.f32.mrb[0].mxu0
    %1849 = vdwg.mxu0
    %v1850 = vmax.f32 %v1820, 0.0
    %v1851 = vmax.f32 %v1823, 0.0
    %v1852 = vmax.f32 %v1828, 0.0
    %v1853 = vmax.f32 %v1831, 0.0
    %v1854 = vmax.f32 %v1836, 0.0
    %v1855 = vmax.f32 %v1839, 0.0
    %v1856 = vmax.f32 %v1844, 0.0
    %v1857 = vmax.f32 %v1847, 0.0
    %v1858 = vpack.c.bf16 %v1851, %v1850
    %v1859 = vpack.c.bf16 %v1853, %v1852
    %v1860 = vpack.c.bf16 %v1855, %v1854
    %v1861 = vpack.c.bf16 %v1857, %v1856
    %v1862 = vlaneseq
    %v1863 = vshrl.u32 %v1862, 7
    %v1864 = vsub.s32 1, %v1863
    %v1865 = vrot.slane %v1740, %v1864
    %v1874 = vunpack.c.l.b16 %v1731
    %v1875 = vunpack.c.l.b16 %v1732
    %v1876 = vunpack.c.l.b16 %v1733
    %v1877 = vunpack.c.l.b16 %v1734
    %v1878 = vunpack.c.l.b16 %v1735
    %v1879 = vunpack.c.l.b16 %v1736
    %v1880 = vunpack.c.l.b16 %v1737
    %v1881 = vunpack.c.l.b16 %v1738
    %v1882 = vpack.c.b16 %v1875, %v1874
    %v1883 = vpack.c.b16 %v1877, %v1876
    %v1884 = vpack.c.b16 %v1879, %v1878
    %v1885 = vpack.c.b16 %v1881, %v1880
    %v1891 = vsel %vm158, %v1858, 0
    %v1894 = vsel %vm158, %v1859, 0
    %v1897 = vsel %vm158, %v1860, 0
    %v1900 = vsel %vm158, %v1861, 0
    %1902 = vmatprep.subr.bf16.mxu0 0
    %1903 = vmatpush1.bf16.msra.mxu0 %v1882
    %1904 = vmatprep.subr.bf16.mxu0 0
    %1905 = vmatpush1.bf16.msra.mxu0 %v1883
    %1906 = vmatprep.subr.bf16.mxu0 0
    %1907 = vmatpush1.bf16.msra.mxu0 %v1884
    %1908 = vmatprep.subr.bf16.mxu0 0
    %1909 = vmatpush1.bf16.msra.mxu0 %v1885
    %1910 = vmatprep.subr.bf16.mxu0 0
    %1911 = vmatpush1.bf16.msra.mxu0 0
    %1912 = vmatprep.subr.bf16.mxu0 0
    %1913 = vmatpush1.bf16.msra.mxu0 0
    %1914 = vmatprep.subr.bf16.mxu0 0
    %1915 = vmatpush1.bf16.msra.mxu0 0
    %1916 = vmatprep.subr.bf16.mxu0 0
    %1917 = vmatpush1.bf16.msra.mxu0 0
    %1918 = vmatprep.subr.bf16.mxu0 0
    %1919 = vmatpush1.bf16.msra.mxu0 0
    %1920 = vmatprep.subr.bf16.mxu0 0
    %1921 = vmatpush1.bf16.msra.mxu0 0
    %1922 = vmatprep.subr.bf16.mxu0 0
    %1923 = vmatpush1.bf16.msra.mxu0 0
    %1924 = vmatprep.subr.bf16.mxu0 0
    %1925 = vmatpush1.bf16.msra.mxu0 0
    %1926 = vmatprep.subr.bf16.mxu0 0
    %1927 = vmatpush1.bf16.msra.mxu0 0
    %1928 = vmatprep.subr.bf16.mxu0 0
    %1929 = vmatpush1.bf16.msra.mxu0 0
    %1930 = vmatprep.subr.bf16.mxu0 0
    %1931 = vmatpush1.bf16.msra.mxu0 0
    %1932 = vmatprep.subr.bf16.mxu0 0
    %1933 = vmatpush1.bf16.msra.mxu0 0
    %1934 = vmatprep.mubr.bf16.mxu0 0
    %1935 = vmatmul.mubr.bf16.gmra.mrb[0].mxu0 %v1891
    %v1936 = vpop.f32.mrb[0].mxu0
    %v1937 = vadd.f32 %v1865, %v1936
    %v1938 = vpop.f32.mrb[0].mxu0
    %v1939 = vpop.f32.mrb[0].mxu0
    %v1940 = vadd.f32 %v1865, %v1939
    %v1941 = vpop.f32.mrb[0].mxu0
    %1942 = vmatprep.mubr.bf16.mxu0 0
    %1943 = vmatmul.mubr.bf16.gmra.mrb[0].mxu0 %v1894
    %v1944 = vpop.f32.mrb[0].mxu0
    %v1945 = vadd.f32 %v1865, %v1944
    %v1946 = vpop.f32.mrb[0].mxu0
    %v1947 = vpop.f32.mrb[0].mxu0
    %v1948 = vadd.f32 %v1865, %v1947
    %v1949 = vpop.f32.mrb[0].mxu0
    %1950 = vmatprep.mubr.bf16.mxu0 0
    %1951 = vmatmul.mubr.bf16.gmra.mrb[0].mxu0 %v1897
    %v1952 = vpop.f32.mrb[0].mxu0
    %v1953 = vadd.f32 %v1865, %v1952
    %v1954 = vpop.f32.mrb[0].mxu0
    %v1955 = vpop.f32.mrb[0].mxu0
    %v1956 = vadd.f32 %v1865, %v1955
    %v1957 = vpop.f32.mrb[0].mxu0
    %1958 = vmatprep.mubr.bf16.mxu0 0
    %1959 = vmatmul.mubr.bf16.gmra.mrb[0].mxu0 %v1900
    %v1960 = vpop.f32.mrb[0].mxu0
    %v1961 = vadd.f32 %v1865, %v1960
    %v1962 = vpop.f32.mrb[0].mxu0
    %v1963 = vpop.f32.mrb[0].mxu0
    %v1964 = vadd.f32 %v1865, %v1963
    %v1965 = vpop.f32.mrb[0].mxu0
    %1966 = vdwg.mxu0
    %v1967 = vmax.f32 %v1937, 0.0
    %v1968 = vmax.f32 %v1940, 0.0
    %v1969 = vmax.f32 %v1945, 0.0
    %v1970 = vmax.f32 %v1948, 0.0
    %v1971 = vmax.f32 %v1953, 0.0
    %v1972 = vmax.f32 %v1956, 0.0
    %v1973 = vmax.f32 %v1961, 0.0
    %v1974 = vmax.f32 %v1964, 0.0
    %v1975 = vlaneseq
    %v1976 = vshrl.u32 %v1975, 7
    %v1977 = vsub.s32 2, %v1976
    %v1978 = vrot.slane %v1740, %v1977
    %v1979 = vmul.f32 %v1967, %v1978
    %v1980 = vmul.f32 %v1968, %v1978
    %v1981 = vmul.f32 %v1969, %v1978
    %v1982 = vmul.f32 %v1970, %v1978
    %v1983 = vmul.f32 %v1971, %v1978
    %v1984 = vmul.f32 %v1972, %v1978
    %v1985 = vmul.f32 %v1973, %v1978
    %v1986 = vmul.f32 %v1974, %v1978
    %v1987 = vlaneseq
    %v1988 = vshrl.u32 %v1987, 7
    %v1989 = vsub.s32 3, %v1988
    %v1990 = vrot.slane %v1740, %v1989
    %v1991 = vadd.f32 %v1979, %v1990
    %v1992 = vadd.f32 %v1980, %v1990
    %v1993 = vadd.f32 %v1981, %v1990
    %v1994 = vadd.f32 %v1982, %v1990
    %v1995 = vadd.f32 %v1983, %v1990
    %v1996 = vadd.f32 %v1984, %v1990
    %v1997 = vadd.f32 %v1985, %v1990
    %v1998 = vadd.f32 %v1986, %v1990
    %v1999 = vpack.c.bf16 %v1992, %v1991
    %v2000 = vpack.c.bf16 %v1994, %v1993
    %v2001 = vpack.c.bf16 %v1996, %v1995
    %v2002 = vpack.c.bf16 %v1998, %v1997
    %2003 = vmatprep.subr.bf16.mxu0 0
    %2004 = vmatpush1.bf16.msra.mxu0 %v1999
    %2005 = vmatprep.subr.bf16.mxu0 0
    %2006 = vmatpush1.bf16.msra.mxu0 %v2000
    %2007 = vmatprep.subr.bf16.mxu0 0
    %2008 = vmatpush1.bf16.msra.mxu0 %v2001
    %2009 = vmatprep.subr.bf16.mxu0 0
    %2010 = vmatpush1.bf16.msra.mxu0 %v2002
    %2011 = vmatprep.subr.bf16.mxu0 0
    %2012 = vmatpush1.bf16.msra.mxu0 0
    %2013 = vmatprep.subr.bf16.mxu0 0
    %2014 = vmatpush1.bf16.msra.mxu0 0
    %2015 = vmatprep.subr.bf16.mxu0 0
    %2016 = vmatpush1.bf16.msra.mxu0 0
    %2017 = vmatprep.subr.bf16.mxu0 0
    %2018 = vmatpush1.bf16.msra.mxu0 0
    %2019 = vmatprep.subr.bf16.mxu0 0
    %2020 = vmatpush1.bf16.msra.mxu0 0
    %2021 = vmatprep.subr.bf16.mxu0 0
    %2022 = vmatpush1.bf16.msra.mxu0 0
    %2023 = vmatprep.subr.bf16.mxu0 0
    %2024 = vmatpush1.bf16.msra.mxu0 0
    %2025 = vmatprep.subr.bf16.mxu0 0
    %2026 = vmatpush1.bf16.msra.mxu0 0
    %2027 = vmatprep.subr.bf16.mxu0 0
    %2028 = vmatpush1.bf16.msra.mxu0 0
    %2029 = vmatprep.subr.bf16.mxu0 0
    %2030 = vmatpush1.bf16.msra.mxu0 0
    %2031 = vmatprep.subr.bf16.mxu0 0
    %2032 = vmatpush1.bf16.msra.mxu0 0
    %2033 = vmatprep.subr.bf16.mxu0 0
    %2034 = vmatpush1.bf16.msra.mxu0 0
    %2035 = vmatprep.mubr.bf16.mxu0 0
    %2036 = vmatmul.mubr.bf16.gmra.mrb[0].mxu0 %v555
    %v2037 = vpop.f32.mrb[0].mxu0
    %v2038 = vadd.f32 0.0, %v2037
    %v2039 = vpop.f32.mrb[0].mxu0
    %v2040 = vpop.f32.mrb[0].mxu0
    %v2041 = vpop.f32.mrb[0].mxu0
    %2042 = vdwg.mxu0
    %v2043 = vpack.c.bf16 %v2038, %v2038
    %v2044 = vld [vmem:[%s8 + $0x60] sm:$0xf]
    %v2045 = vld [vmem:[%s8 + $0x64] sm:$0xf]
    %v2046 = vld [vmem:[%s8 + $0x68] sm:$0xf]
    %v2047 = vld [vmem:[%s8 + $0x6c] sm:$0xf]
    %v2048 = vld [vmem:[%s8 + $0x70] sm:$0xf]
    %v2049 = vld [vmem:[%s8 + $0x74] sm:$0xf]
    %v2050 = vld [vmem:[%s8 + $0x78] sm:$0xf]
    %v2051 = vld [vmem:[%s8 + $0x7c] sm:$0xf]
    %v2060 = vunpack.c.l.b16 %v2044
    %v2061 = vunpack.c.l.b16 %v2045
    %v2062 = vunpack.c.l.b16 %v2046
    %v2063 = vunpack.c.l.b16 %v2047
    %v2064 = vunpack.c.l.b16 %v2048
    %v2065 = vunpack.c.l.b16 %v2049
    %v2066 = vunpack.c.l.b16 %v2050
    %v2067 = vunpack.c.l.b16 %v2051
    %v2068 = vpack.c.b16 %v2061, %v2060
    %v2069 = vpack.c.b16 %v2063, %v2062
    %v2070 = vpack.c.b16 %v2065, %v2064
    %v2071 = vpack.c.b16 %v2067, %v2066
    %v2077 = vsel %vm158, %v2043, 0
    %2079 = vmatprep.subr.bf16.mxu0 0
    %2080 = vmatpush1.bf16.msra.mxu0 %v2068
    %2081 = vmatprep.subr.bf16.mxu0 0
    %2082 = vmatpush1.bf16.msra.mxu0 %v2069
    %2083 = vmatprep.subr.bf16.mxu0 0
    %2084 = vmatpush1.bf16.msra.mxu0 %v2070
    %2085 = vmatprep.subr.bf16.mxu0 0
    %2086 = vmatpush1.bf16.msra.mxu0 %v2071
    %2087 = vmatprep.subr.bf16.mxu0 0
    %2088 = vmatpush1.bf16.msra.mxu0 0
    %2089 = vmatprep.subr.bf16.mxu0 0
    %2090 = vmatpush1.bf16.msra.mxu0 0
    %2091 = vmatprep.subr.bf16.mxu0 0
    %2092 = vmatpush1.bf16.msra.mxu0 0
    %2093 = vmatprep.subr.bf16.mxu0 0
    %2094 = vmatpush1.bf16.msra.mxu0 0
    %2095 = vmatprep.subr.bf16.mxu0 0
    %2096 = vmatpush1.bf16.msra.mxu0 0
    %2097 = vmatprep.subr.bf16.mxu0 0
    %2098 = vmatpush1.bf16.msra.mxu0 0
    %2099 = vmatprep.subr.bf16.mxu0 0
    %2100 = vmatpush1.bf16.msra.mxu0 0
    %2101 = vmatprep.subr.bf16.mxu0 0
    %2102 = vmatpush1.bf16.msra.mxu0 0
    %2103 = vmatprep.subr.bf16.mxu0 0
    %2104 = vmatpush1.bf16.msra.mxu0 0
    %2105 = vmatprep.subr.bf16.mxu0 0
    %2106 = vmatpush1.bf16.msra.mxu0 0
    %2107 = vmatprep.subr.bf16.mxu0 0
    %2108 = vmatpush1.bf16.msra.mxu0 0
    %2109 = vmatprep.subr.bf16.mxu0 0
    %2110 = vmatpush1.bf16.msra.mxu0 0
    %2111 = vmatprep.mubr.bf16.mxu0 0
    %2112 = vmatmul.mubr.bf16.gmra.mrb[0].mxu0 %v2077
    %v2113 = vpop.f32.mrb[0].mxu0
    %v2114 = vadd.f32 0.0, %v2113
    %v2115 = vpop.f32.mrb[0].mxu0
    %v2116 = vpop.f32.mrb[0].mxu0
    %v2117 = vpop.f32.mrb[0].mxu0
    %2118 = vdwg.mxu0
    %v2119 = vadd.f32 %v1636, %v2114
    %2120 = vmatprep.subr.bf16.mxu0 0
    %2121 = vmatpush1.bf16.msra.mxu0 %v1999
    %2122 = vmatprep.subr.bf16.mxu0 0
    %2123 = vmatpush1.bf16.msra.mxu0 %v2000
    %2124 = vmatprep.subr.bf16.mxu0 0
    %2125 = vmatpush1.bf16.msra.mxu0 %v2001
    %2126 = vmatprep.subr.bf16.mxu0 0
    %2127 = vmatpush1.bf16.msra.mxu0 %v2002
    %2128 = vmatprep.subr.bf16.mxu0 0
    %2129 = vmatpush1.bf16.msra.mxu0 0
    %2130 = vmatprep.subr.bf16.mxu0 0
    %2131 = vmatpush1.bf16.msra.mxu0 0
    %2132 = vmatprep.subr.bf16.mxu0 0
    %2133 = vmatpush1.bf16.msra.mxu0 0
    %2134 = vmatprep.subr.bf16.mxu0 0
    %2135 = vmatpush1.bf16.msra.mxu0 0
    %2136 = vmatprep.subr.bf16.mxu0 0
    %2137 = vmatpush1.bf16.msra.mxu0 0
    %2138 = vmatprep.subr.bf16.mxu0 0
    %2139 = vmatpush1.bf16.msra.mxu0 0
    %2140 = vmatprep.subr.bf16.mxu0 0
    %2141 = vmatpush1.bf16.msra.mxu0 0
    %2142 = vmatprep.subr.bf16.mxu0 0
    %2143 = vmatpush1.bf16.msra.mxu0 0
    %2144 = vmatprep.subr.bf16.mxu0 0
    %2145 = vmatpush1.bf16.msra.mxu0 0
    %2146 = vmatprep.subr.bf16.mxu0 0
    %2147 = vmatpush1.bf16.msra.mxu0 0
    %2148 = vmatprep.subr.bf16.mxu0 0
    %2149 = vmatpush1.bf16.msra.mxu0 0
    %2150 = vmatprep.subr.bf16.mxu0 0
    %2151 = vmatpush1.bf16.msra.mxu0 0
    %2152 = vmatprep.mubr.bf16.mxu0 0
    %2153 = vmatmul.mubr.bf16.gmra.mrb[0].mxu0 %v160
    %v2154 = vpop.f32.mrb[0].mxu0
    %v2155 = vadd.f32 0.0, %v2154
    %v2156 = vpop.f32.mrb[0].mxu0
    %v2157 = vpop.f32.mrb[0].mxu0
    %v2158 = vadd.f32 0.0, %v2157
    %v2159 = vpop.f32.mrb[0].mxu0
    %2160 = vmatprep.mubr.bf16.mxu0 0
    %2161 = vmatmul.mubr.bf16.gmra.mrb[0].mxu0 %v163
    %v2162 = vpop.f32.mrb[0].mxu0
    %v2163 = vadd.f32 0.0, %v2162
    %v2164 = vpop.f32.mrb[0].mxu0
    %v2165 = vpop.f32.mrb[0].mxu0
    %v2166 = vadd.f32 0.0, %v2165
    %v2167 = vpop.f32.mrb[0].mxu0
    %2168 = vmatprep.mubr.bf16.mxu0 0
    %2169 = vmatmul.mubr.bf16.gmra.mrb[0].mxu0 %v166
    %v2170 = vpop.f32.mrb[0].mxu0
    %v2171 = vadd.f32 0.0, %v2170
    %v2172 = vpop.f32.mrb[0].mxu0
    %v2173 = vpop.f32.mrb[0].mxu0
    %v2174 = vadd.f32 0.0, %v2173
    %v2175 = vpop.f32.mrb[0].mxu0
    %2176 = vmatprep.mubr.bf16.mxu0 0
    %2177 = vmatmul.mubr.bf16.gmra.mrb[0].mxu0 %v169
    %v2178 = vpop.f32.mrb[0].mxu0
    %v2179 = vadd.f32 0.0, %v2178
    %v2180 = vpop.f32.mrb[0].mxu0
    %v2181 = vpop.f32.mrb[0].mxu0
    %v2182 = vadd.f32 0.0, %v2181
    %v2183 = vpop.f32.mrb[0].mxu0
    %2184 = vdwg.mxu0
    %s2185 = sld [smem:[#allocation2 + $0x4]]
    %s2186 = sadd.f32 %s2185, 1.0
    %v2187 = vstv %s2186
    %v2188 = vmul.f32 %v2187, %v1991
    %v2189 = vmul.f32 %v2187, %v1992
    %v2190 = vmul.f32 %v2187, %v1993
    %v2191 = vmul.f32 %v2187, %v1994
    %v2192 = vmul.f32 %v2187, %v1995
    %v2193 = vmul.f32 %v2187, %v1996
    %v2194 = vmul.f32 %v2187, %v1997
    %v2195 = vmul.f32 %v2187, %v1998
    %v2196 = vadd.f32 %v2188, %v2155
    %v2197 = vadd.f32 %v2189, %v2158
    %v2198 = vadd.f32 %v2190, %v2163
    %v2199 = vadd.f32 %v2191, %v2166
    %v2200 = vadd.f32 %v2192, %v2171
    %v2201 = vadd.f32 %v2193, %v2174
    %v2202 = vadd.f32 %v2194, %v2179
    %v2203 = vadd.f32 %v2195, %v2182
    %s2204 = scalar_lea.vmem %s5, 96
    %v2205 = vld [vmem:[%s2204] sm:$0xf]
    %v2206 = vld [vmem:[%s2204 + $0x4] sm:$0xf]
    %v2207 = vld [vmem:[%s2204 + $0x8] sm:$0xf]
    %v2208 = vld [vmem:[%s2204 + $0xc] sm:$0xf]
    %v2209 = vld [vmem:[%s2204 + $0x10] sm:$0xf]
    %v2210 = vld [vmem:[%s2204 + $0x14] sm:$0xf]
    %v2211 = vld [vmem:[%s2204 + $0x18] sm:$0xf]
    %v2212 = vld [vmem:[%s2204 + $0x1c] sm:$0xf]
    %s2213 = scalar_lea.vmem %s6, 128
    %v2214 = vld [vmem:[%s2213] sm:$0xf]
    %v2215 = vld [vmem:[%s2213 + $0x4] sm:$0xf]
    %v2216 = vld [vmem:[%s2213 + $0x8] sm:$0xf]
    %v2217 = vld [vmem:[%s2213 + $0xc] sm:$0xf]
    %v2218 = vld [vmem:[%s2213 + $0x10] sm:$0xf]
    %v2219 = vld [vmem:[%s2213 + $0x14] sm:$0xf]
    %v2220 = vld [vmem:[%s2213 + $0x18] sm:$0xf]
    %v2221 = vld [vmem:[%s2213 + $0x1c] sm:$0xf]
    %s2222 = scalar_lea.vmem [#allocation9], 16
    %v2223 = vld [vmem:[%s2222] sm:$0xf]
    %v2224 = vpack.c.bf16 %v2197, %v2196
    %v2225 = vpack.c.bf16 %v2199, %v2198
    %v2226 = vpack.c.bf16 %v2201, %v2200
    %v2227 = vpack.c.bf16 %v2203, %v2202
    %v2228 = vlaneseq
    %v2229 = vshrl.u32 %v2228, 7
    %v2230 = vsub.s32 0, %v2229
    %v2231 = vrot.slane %v2223, %v2230
    %v2240 = vunpack.c.l.b16 %v2205
    %v2241 = vunpack.c.l.b16 %v2206
    %v2242 = vunpack.c.l.b16 %v2207
    %v2243 = vunpack.c.l.b16 %v2208
    %v2244 = vunpack.c.l.b16 %v2209
    %v2245 = vunpack.c.l.b16 %v2210
    %v2246 = vunpack.c.l.b16 %v2211
    %v2247 = vunpack.c.l.b16 %v2212
    %v2248 = vpack.c.b16 %v2241, %v2240
    %v2249 = vpack.c.b16 %v2243, %v2242
    %v2250 = vpack.c.b16 %v2245, %v2244
    %v2251 = vpack.c.b16 %v2247, %v2246
    %v2257 = vsel %vm158, %v2224, 0
    %v2260 = vsel %vm158, %v2225, 0
    %v2263 = vsel %vm158, %v2226, 0
    %v2266 = vsel %vm158, %v2227, 0
    %2268 = vmatprep.subr.bf16.mxu0 0
    %2269 = vmatpush1.bf16.msra.mxu0 %v2248
    %2270 = vmatprep.subr.bf16.mxu0 0
    %2271 = vmatpush1.bf16.msra.mxu0 %v2249
    %2272 = vmatprep.subr.bf16.mxu0 0
    %2273 = vmatpush1.bf16.msra.mxu0 %v2250
    %2274 = vmatprep.subr.bf16.mxu0 0
    %2275 = vmatpush1.bf16.msra.mxu0 %v2251
    %2276 = vmatprep.subr.bf16.mxu0 0
    %2277 = vmatpush1.bf16.msra.mxu0 0
    %2278 = vmatprep.subr.bf16.mxu0 0
    %2279 = vmatpush1.bf16.msra.mxu0 0
    %2280 = vmatprep.subr.bf16.mxu0 0
    %2281 = vmatpush1.bf16.msra.mxu0 0
    %2282 = vmatprep.subr.bf16.mxu0 0
    %2283 = vmatpush1.bf16.msra.mxu0 0
    %2284 = vmatprep.subr.bf16.mxu0 0
    %2285 = vmatpush1.bf16.msra.mxu0 0
    %2286 = vmatprep.subr.bf16.mxu0 0
    %2287 = vmatpush1.bf16.msra.mxu0 0
    %2288 = vmatprep.subr.bf16.mxu0 0
    %2289 = vmatpush1.bf16.msra.mxu0 0
    %2290 = vmatprep.subr.bf16.mxu0 0
    %2291 = vmatpush1.bf16.msra.mxu0 0
    %2292 = vmatprep.subr.bf16.mxu0 0
    %2293 = vmatpush1.bf16.msra.mxu0 0
    %2294 = vmatprep.subr.bf16.mxu0 0
    %2295 = vmatpush1.bf16.msra.mxu0 0
    %2296 = vmatprep.subr.bf16.mxu0 0
    %2297 = vmatpush1.bf16.msra.mxu0 0
    %2298 = vmatprep.subr.bf16.mxu0 0
    %2299 = vmatpush1.bf16.msra.mxu0 0
    %2300 = vmatprep.mubr.bf16.mxu0 0
    %2301 = vmatmul.mubr.bf16.gmra.mrb[0].mxu0 %v2257
    %v2302 = vpop.f32.mrb[0].mxu0
    %v2303 = vadd.f32 %v2231, %v2302
    %v2304 = vpop.f32.mrb[0].mxu0
    %v2305 = vpop.f32.mrb[0].mxu0
    %v2306 = vadd.f32 %v2231, %v2305
    %v2307 = vpop.f32.mrb[0].mxu0
    %2308 = vmatprep.mubr.bf16.mxu0 0
    %2309 = vmatmul.mubr.bf16.gmra.mrb[0].mxu0 %v2260
    %v2310 = vpop.f32.mrb[0].mxu0
    %v2311 = vadd.f32 %v2231, %v2310
    %v2312 = vpop.f32.mrb[0].mxu0
    %v2313 = vpop.f32.mrb[0].mxu0
    %v2314 = vadd.f32 %v2231, %v2313
    %v2315 = vpop.f32.mrb[0].mxu0
    %2316 = vmatprep.mubr.bf16.mxu0 0
    %2317 = vmatmul.mubr.bf16.gmra.mrb[0].mxu0 %v2263
    %v2318 = vpop.f32.mrb[0].mxu0
    %v2319 = vadd.f32 %v2231, %v2318
    %v2320 = vpop.f32.mrb[0].mxu0
    %v2321 = vpop.f32.mrb[0].mxu0
    %v2322 = vadd.f32 %v2231, %v2321
    %v2323 = vpop.f32.mrb[0].mxu0
    %2324 = vmatprep.mubr.bf16.mxu0 0
    %2325 = vmatmul.mubr.bf16.gmra.mrb[0].mxu0 %v2266
    %v2326 = vpop.f32.mrb[0].mxu0
    %v2327 = vadd.f32 %v2231, %v2326
    %v2328 = vpop.f32.mrb[0].mxu0
    %v2329 = vpop.f32.mrb[0].mxu0
    %v2330 = vadd.f32 %v2231, %v2329
    %v2331 = vpop.f32.mrb[0].mxu0
    %2332 = vdwg.mxu0
    %v2333 = vmax.f32 %v2303, 0.0
    %v2334 = vmax.f32 %v2306, 0.0
    %v2335 = vmax.f32 %v2311, 0.0
    %v2336 = vmax.f32 %v2314, 0.0
    %v2337 = vmax.f32 %v2319, 0.0
    %v2338 = vmax.f32 %v2322, 0.0
    %v2339 = vmax.f32 %v2327, 0.0
    %v2340 = vmax.f32 %v2330, 0.0
    %v2341 = vpack.c.bf16 %v2334, %v2333
    %v2342 = vpack.c.bf16 %v2336, %v2335
    %v2343 = vpack.c.bf16 %v2338, %v2337
    %v2344 = vpack.c.bf16 %v2340, %v2339
    %v2345 = vlaneseq
    %v2346 = vshrl.u32 %v2345, 7
    %v2347 = vsub.s32 1, %v2346
    %v2348 = vrot.slane %v2223, %v2347
    %v2357 = vunpack.c.l.b16 %v2214
    %v2358 = vunpack.c.l.b16 %v2215
    %v2359 = vunpack.c.l.b16 %v2216
    %v2360 = vunpack.c.l.b16 %v2217
    %v2361 = vunpack.c.l.b16 %v2218
    %v2362 = vunpack.c.l.b16 %v2219
    %v2363 = vunpack.c.l.b16 %v2220
    %v2364 = vunpack.c.l.b16 %v2221
    %v2365 = vpack.c.b16 %v2358, %v2357
    %v2366 = vpack.c.b16 %v2360, %v2359
    %v2367 = vpack.c.b16 %v2362, %v2361
    %v2368 = vpack.c.b16 %v2364, %v2363
    %v2374 = vsel %vm158, %v2341, 0
    %v2377 = vsel %vm158, %v2342, 0
    %v2380 = vsel %vm158, %v2343, 0
    %v2383 = vsel %vm158, %v2344, 0
    %2385 = vmatprep.subr.bf16.mxu0 0
    %2386 = vmatpush1.bf16.msra.mxu0 %v2365
    %2387 = vmatprep.subr.bf16.mxu0 0
    %2388 = vmatpush1.bf16.msra.mxu0 %v2366
    %2389 = vmatprep.subr.bf16.mxu0 0
    %2390 = vmatpush1.bf16.msra.mxu0 %v2367
    %2391 = vmatprep.subr.bf16.mxu0 0
    %2392 = vmatpush1.bf16.msra.mxu0 %v2368
    %2393 = vmatprep.subr.bf16.mxu0 0
    %2394 = vmatpush1.bf16.msra.mxu0 0
    %2395 = vmatprep.subr.bf16.mxu0 0
    %2396 = vmatpush1.bf16.msra.mxu0 0
    %2397 = vmatprep.subr.bf16.mxu0 0
    %2398 = vmatpush1.bf16.msra.mxu0 0
    %2399 = vmatprep.subr.bf16.mxu0 0
    %2400 = vmatpush1.bf16.msra.mxu0 0
    %2401 = vmatprep.subr.bf16.mxu0 0
    %2402 = vmatpush1.bf16.msra.mxu0 0
    %2403 = vmatprep.subr.bf16.mxu0 0
    %2404 = vmatpush1.bf16.msra.mxu0 0
    %2405 = vmatprep.subr.bf16.mxu0 0
    %2406 = vmatpush1.bf16.msra.mxu0 0
    %2407 = vmatprep.subr.bf16.mxu0 0
    %2408 = vmatpush1.bf16.msra.mxu0 0
    %2409 = vmatprep.subr.bf16.mxu0 0
    %2410 = vmatpush1.bf16.msra.mxu0 0
    %2411 = vmatprep.subr.bf16.mxu0 0
    %2412 = vmatpush1.bf16.msra.mxu0 0
    %2413 = vmatprep.subr.bf16.mxu0 0
    %2414 = vmatpush1.bf16.msra.mxu0 0
    %2415 = vmatprep.subr.bf16.mxu0 0
    %2416 = vmatpush1.bf16.msra.mxu0 0
    %2417 = vmatprep.mubr.bf16.mxu0 0
    %2418 = vmatmul.mubr.bf16.gmra.mrb[0].mxu0 %v2374
    %v2419 = vpop.f32.mrb[0].mxu0
    %v2420 = vadd.f32 %v2348, %v2419
    %v2421 = vpop.f32.mrb[0].mxu0
    %v2422 = vpop.f32.mrb[0].mxu0
    %v2423 = vadd.f32 %v2348, %v2422
    %v2424 = vpop.f32.mrb[0].mxu0
    %2425 = vmatprep.mubr.bf16.mxu0 0
    %2426 = vmatmul.mubr.bf16.gmra.mrb[0].mxu0 %v2377
    %v2427 = vpop.f32.mrb[0].mxu0
    %v2428 = vadd.f32 %v2348, %v2427
    %v2429 = vpop.f32.mrb[0].mxu0
    %v2430 = vpop.f32.mrb[0].mxu0
    %v2431 = vadd.f32 %v2348, %v2430
    %v2432 = vpop.f32.mrb[0].mxu0
    %2433 = vmatprep.mubr.bf16.mxu0 0
    %2434 = vmatmul.mubr.bf16.gmra.mrb[0].mxu0 %v2380
    %v2435 = vpop.f32.mrb[0].mxu0
    %v2436 = vadd.f32 %v2348, %v2435
    %v2437 = vpop.f32.mrb[0].mxu0
    %v2438 = vpop.f32.mrb[0].mxu0
    %v2439 = vadd.f32 %v2348, %v2438
    %v2440 = vpop.f32.mrb[0].mxu0
    %2441 = vmatprep.mubr.bf16.mxu0 0
    %2442 = vmatmul.mubr.bf16.gmra.mrb[0].mxu0 %v2383
    %v2443 = vpop.f32.mrb[0].mxu0
    %v2444 = vadd.f32 %v2348, %v2443
    %v2445 = vpop.f32.mrb[0].mxu0
    %v2446 = vpop.f32.mrb[0].mxu0
    %v2447 = vadd.f32 %v2348, %v2446
    %v2448 = vpop.f32.mrb[0].mxu0
    %2449 = vdwg.mxu0
    %v2450 = vmax.f32 %v2420, 0.0
    %v2451 = vmax.f32 %v2423, 0.0
    %v2452 = vmax.f32 %v2428, 0.0
    %v2453 = vmax.f32 %v2431, 0.0
    %v2454 = vmax.f32 %v2436, 0.0
    %v2455 = vmax.f32 %v2439, 0.0
    %v2456 = vmax.f32 %v2444, 0.0
    %v2457 = vmax.f32 %v2447, 0.0
    %v2458 = vlaneseq
    %v2459 = vshrl.u32 %v2458, 7
    %v2460 = vsub.s32 2, %v2459
    %v2461 = vrot.slane %v2223, %v2460
    %v2462 = vmul.f32 %v2450, %v2461
    %v2463 = vmul.f32 %v2451, %v2461
    %v2464 = vmul.f32 %v2452, %v2461
    %v2465 = vmul.f32 %v2453, %v2461
    %v2466 = vmul.f32 %v2454, %v2461
    %v2467 = vmul.f32 %v2455, %v2461
    %v2468 = vmul.f32 %v2456, %v2461
    %v2469 = vmul.f32 %v2457, %v2461
    %v2470 = vlaneseq
    %v2471 = vshrl.u32 %v2470, 7
    %v2472 = vsub.s32 3, %v2471
    %v2473 = vrot.slane %v2223, %v2472
    %v2474 = vadd.f32 %v2462, %v2473
    %v2475 = vadd.f32 %v2463, %v2473
    %v2476 = vadd.f32 %v2464, %v2473
    %v2477 = vadd.f32 %v2465, %v2473
    %v2478 = vadd.f32 %v2466, %v2473
    %v2479 = vadd.f32 %v2467, %v2473
    %v2480 = vadd.f32 %v2468, %v2473
    %v2481 = vadd.f32 %v2469, %v2473
    %v2482 = vpack.c.bf16 %v2475, %v2474
    %v2483 = vpack.c.bf16 %v2477, %v2476
    %v2484 = vpack.c.bf16 %v2479, %v2478
    %v2485 = vpack.c.bf16 %v2481, %v2480
    %2486 = vmatprep.subr.bf16.mxu0 0
    %2487 = vmatpush1.bf16.msra.mxu0 %v2482
    %2488 = vmatprep.subr.bf16.mxu0 0
    %2489 = vmatpush1.bf16.msra.mxu0 %v2483
    %2490 = vmatprep.subr.bf16.mxu0 0
    %2491 = vmatpush1.bf16.msra.mxu0 %v2484
    %2492 = vmatprep.subr.bf16.mxu0 0
    %2493 = vmatpush1.bf16.msra.mxu0 %v2485
    %2494 = vmatprep.subr.bf16.mxu0 0
    %2495 = vmatpush1.bf16.msra.mxu0 0
    %2496 = vmatprep.subr.bf16.mxu0 0
    %2497 = vmatpush1.bf16.msra.mxu0 0
    %2498 = vmatprep.subr.bf16.mxu0 0
    %2499 = vmatpush1.bf16.msra.mxu0 0
    %2500 = vmatprep.subr.bf16.mxu0 0
    %2501 = vmatpush1.bf16.msra.mxu0 0
    %2502 = vmatprep.subr.bf16.mxu0 0
    %2503 = vmatpush1.bf16.msra.mxu0 0
    %2504 = vmatprep.subr.bf16.mxu0 0
    %2505 = vmatpush1.bf16.msra.mxu0 0
    %2506 = vmatprep.subr.bf16.mxu0 0
    %2507 = vmatpush1.bf16.msra.mxu0 0
    %2508 = vmatprep.subr.bf16.mxu0 0
    %2509 = vmatpush1.bf16.msra.mxu0 0
    %2510 = vmatprep.subr.bf16.mxu0 0
    %2511 = vmatpush1.bf16.msra.mxu0 0
    %2512 = vmatprep.subr.bf16.mxu0 0
    %2513 = vmatpush1.bf16.msra.mxu0 0
    %2514 = vmatprep.subr.bf16.mxu0 0
    %2515 = vmatpush1.bf16.msra.mxu0 0
    %2516 = vmatprep.subr.bf16.mxu0 0
    %2517 = vmatpush1.bf16.msra.mxu0 0
    %2518 = vmatprep.mubr.bf16.mxu0 0
    %2519 = vmatmul.mubr.bf16.gmra.mrb[0].mxu0 %v555
    %v2520 = vpop.f32.mrb[0].mxu0
    %v2521 = vadd.f32 0.0, %v2520
    %v2522 = vpop.f32.mrb[0].mxu0
    %v2523 = vpop.f32.mrb[0].mxu0
    %v2524 = vpop.f32.mrb[0].mxu0
    %2525 = vdwg.mxu0
    %v2526 = vpack.c.bf16 %v2521, %v2521
    %v2527 = vld [vmem:[%s8 + $0x80] sm:$0xf]
    %v2528 = vld [vmem:[%s8 + $0x84] sm:$0xf]
    %v2529 = vld [vmem:[%s8 + $0x88] sm:$0xf]
    %v2530 = vld [vmem:[%s8 + $0x8c] sm:$0xf]
    %v2531 = vld [vmem:[%s8 + $0x90] sm:$0xf]
    %v2532 = vld [vmem:[%s8 + $0x94] sm:$0xf]
    %v2533 = vld [vmem:[%s8 + $0x98] sm:$0xf]
    %v2534 = vld [vmem:[%s8 + $0x9c] sm:$0xf]
    %v2543 = vunpack.c.l.b16 %v2527
    %v2544 = vunpack.c.l.b16 %v2528
    %v2545 = vunpack.c.l.b16 %v2529
    %v2546 = vunpack.c.l.b16 %v2530
    %v2547 = vunpack.c.l.b16 %v2531
    %v2548 = vunpack.c.l.b16 %v2532
    %v2549 = vunpack.c.l.b16 %v2533
    %v2550 = vunpack.c.l.b16 %v2534
    %v2551 = vpack.c.b16 %v2544, %v2543
    %v2552 = vpack.c.b16 %v2546, %v2545
    %v2553 = vpack.c.b16 %v2548, %v2547
    %v2554 = vpack.c.b16 %v2550, %v2549
    %v2560 = vsel %vm158, %v2526, 0
    %2562 = vmatprep.subr.bf16.mxu0 0
    %2563 = vmatpush1.bf16.msra.mxu0 %v2551
    %2564 = vmatprep.subr.bf16.mxu0 0
    %2565 = vmatpush1.bf16.msra.mxu0 %v2552
    %2566 = vmatprep.subr.bf16.mxu0 0
    %2567 = vmatpush1.bf16.msra.mxu0 %v2553
    %2568 = vmatprep.subr.bf16.mxu0 0
    %2569 = vmatpush1.bf16.msra.mxu0 %v2554
    %2570 = vmatprep.subr.bf16.mxu0 0
    %2571 = vmatpush1.bf16.msra.mxu0 0
    %2572 = vmatprep.subr.bf16.mxu0 0
    %2573 = vmatpush1.bf16.msra.mxu0 0
    %2574 = vmatprep.subr.bf16.mxu0 0
    %2575 = vmatpush1.bf16.msra.mxu0 0
    %2576 = vmatprep.subr.bf16.mxu0 0
    %2577 = vmatpush1.bf16.msra.mxu0 0
    %2578 = vmatprep.subr.bf16.mxu0 0
    %2579 = vmatpush1.bf16.msra.mxu0 0
    %2580 = vmatprep.subr.bf16.mxu0 0
    %2581 = vmatpush1.bf16.msra.mxu0 0
    %2582 = vmatprep.subr.bf16.mxu0 0
    %2583 = vmatpush1.bf16.msra.mxu0 0
    %2584 = vmatprep.subr.bf16.mxu0 0
    %2585 = vmatpush1.bf16.msra.mxu0 0
    %2586 = vmatprep.subr.bf16.mxu0 0
    %2587 = vmatpush1.bf16.msra.mxu0 0
    %2588 = vmatprep.subr.bf16.mxu0 0
    %2589 = vmatpush1.bf16.msra.mxu0 0
    %2590 = vmatprep.subr.bf16.mxu0 0
    %2591 = vmatpush1.bf16.msra.mxu0 0
    %2592 = vmatprep.subr.bf16.mxu0 0
    %2593 = vmatpush1.bf16.msra.mxu0 0
    %2594 = vmatprep.mubr.bf16.mxu0 0
    %2595 = vmatmul.mubr.bf16.gmra.mrb[0].mxu0 %v2560
    %v2596 = vpop.f32.mrb[0].mxu0
    %v2597 = vadd.f32 0.0, %v2596
    %v2598 = vpop.f32.mrb[0].mxu0
    %v2599 = vpop.f32.mrb[0].mxu0
    %v2600 = vpop.f32.mrb[0].mxu0
    %2601 = vdwg.mxu0
    %v2602 = vadd.f32 %v2119, %v2597
    %2603 = vmatprep.subr.bf16.mxu0 0
    %2604 = vmatpush1.bf16.msra.mxu0 %v2482
    %2605 = vmatprep.subr.bf16.mxu0 0
    %2606 = vmatpush1.bf16.msra.mxu0 %v2483
    %2607 = vmatprep.subr.bf16.mxu0 0
    %2608 = vmatpush1.bf16.msra.mxu0 %v2484
    %2609 = vmatprep.subr.bf16.mxu0 0
    %2610 = vmatpush1.bf16.msra.mxu0 %v2485
    %2611 = vmatprep.subr.bf16.mxu0 0
    %2612 = vmatpush1.bf16.msra.mxu0 0
    %2613 = vmatprep.subr.bf16.mxu0 0
    %2614 = vmatpush1.bf16.msra.mxu0 0
    %2615 = vmatprep.subr.bf16.mxu0 0
    %2616 = vmatpush1.bf16.msra.mxu0 0
    %2617 = vmatprep.subr.bf16.mxu0 0
    %2618 = vmatpush1.bf16.msra.mxu0 0
    %2619 = vmatprep.subr.bf16.mxu0 0
    %2620 = vmatpush1.bf16.msra.mxu0 0
    %2621 = vmatprep.subr.bf16.mxu0 0
    %2622 = vmatpush1.bf16.msra.mxu0 0
    %2623 = vmatprep.subr.bf16.mxu0 0
    %2624 = vmatpush1.bf16.msra.mxu0 0
    %2625 = vmatprep.subr.bf16.mxu0 0
    %2626 = vmatpush1.bf16.msra.mxu0 0
    %2627 = vmatprep.subr.bf16.mxu0 0
    %2628 = vmatpush1.bf16.msra.mxu0 0
    %2629 = vmatprep.subr.bf16.mxu0 0
    %2630 = vmatpush1.bf16.msra.mxu0 0
    %2631 = vmatprep.subr.bf16.mxu0 0
    %2632 = vmatpush1.bf16.msra.mxu0 0
    %2633 = vmatprep.subr.bf16.mxu0 0
    %2634 = vmatpush1.bf16.msra.mxu0 0
    %2635 = vmatprep.mubr.bf16.mxu0 0
    %2636 = vmatmul.mubr.bf16.gmra.mrb[0].mxu0 %v160
    %v2637 = vpop.f32.mrb[0].mxu0
    %v2638 = vadd.f32 0.0, %v2637
    %v2639 = vpop.f32.mrb[0].mxu0
    %v2640 = vpop.f32.mrb[0].mxu0
    %v2641 = vadd.f32 0.0, %v2640
    %v2642 = vpop.f32.mrb[0].mxu0
    %2643 = vmatprep.mubr.bf16.mxu0 0
    %2644 = vmatmul.mubr.bf16.gmra.mrb[0].mxu0 %v163
    %v2645 = vpop.f32.mrb[0].mxu0
    %v2646 = vadd.f32 0.0, %v2645
    %v2647 = vpop.f32.mrb[0].mxu0
    %v2648 = vpop.f32.mrb[0].mxu0
    %v2649 = vadd.f32 0.0, %v2648
    %v2650 = vpop.f32.mrb[0].mxu0
    %2651 = vmatprep.mubr.bf16.mxu0 0
    %2652 = vmatmul.mubr.bf16.gmra.mrb[0].mxu0 %v166
    %v2653 = vpop.f32.mrb[0].mxu0
    %v2654 = vadd.f32 0.0, %v2653
    %v2655 = vpop.f32.mrb[0].mxu0
    %v2656 = vpop.f32.mrb[0].mxu0
    %v2657 = vadd.f32 0.0, %v2656
    %v2658 = vpop.f32.mrb[0].mxu0
    %2659 = vmatprep.mubr.bf16.mxu0 0
    %2660 = vmatmul.mubr.bf16.gmra.mrb[0].mxu0 %v169
    %v2661 = vpop.f32.mrb[0].mxu0
    %v2662 = vadd.f32 0.0, %v2661
    %v2663 = vpop.f32.mrb[0].mxu0
    %v2664 = vpop.f32.mrb[0].mxu0
    %v2665 = vadd.f32 0.0, %v2664
    %v2666 = vpop.f32.mrb[0].mxu0
    %2667 = vdwg.mxu0
    %s2668 = sld [smem:[#allocation2 + $0x5]]
    %s2669 = sadd.f32 %s2668, 1.0
    %v2670 = vstv %s2669
    %v2671 = vmul.f32 %v2670, %v2474
    %v2672 = vmul.f32 %v2670, %v2475
    %v2673 = vmul.f32 %v2670, %v2476
    %v2674 = vmul.f32 %v2670, %v2477
    %v2675 = vmul.f32 %v2670, %v2478
    %v2676 = vmul.f32 %v2670, %v2479
    %v2677 = vmul.f32 %v2670, %v2480
    %v2678 = vmul.f32 %v2670, %v2481
    %v2679 = vadd.f32 %v2671, %v2638
    %v2680 = vadd.f32 %v2672, %v2641
    %v2681 = vadd.f32 %v2673, %v2646
    %v2682 = vadd.f32 %v2674, %v2649
    %v2683 = vadd.f32 %v2675, %v2654
    %v2684 = vadd.f32 %v2676, %v2657
    %v2685 = vadd.f32 %v2677, %v2662
    %v2686 = vadd.f32 %v2678, %v2665
    %s2687 = scalar_lea.vmem %s5, 128
    %v2688 = vld [vmem:[%s2687] sm:$0xf]
    %v2689 = vld [vmem:[%s2687 + $0x4] sm:$0xf]
    %v2690 = vld [vmem:[%s2687 + $0x8] sm:$0xf]
    %v2691 = vld [vmem:[%s2687 + $0xc] sm:$0xf]
    %v2692 = vld [vmem:[%s2687 + $0x10] sm:$0xf]
    %v2693 = vld [vmem:[%s2687 + $0x14] sm:$0xf]
    %v2694 = vld [vmem:[%s2687 + $0x18] sm:$0xf]
    %v2695 = vld [vmem:[%s2687 + $0x1c] sm:$0xf]
    %s2696 = scalar_lea.vmem %s6, 160
    %v2697 = vld [vmem:[%s2696] sm:$0xf]
    %v2698 = vld [vmem:[%s2696 + $0x4] sm:$0xf]
    %v2699 = vld [vmem:[%s2696 + $0x8] sm:$0xf]
    %v2700 = vld [vmem:[%s2696 + $0xc] sm:$0xf]
    %v2701 = vld [vmem:[%s2696 + $0x10] sm:$0xf]
    %v2702 = vld [vmem:[%s2696 + $0x14] sm:$0xf]
    %v2703 = vld [vmem:[%s2696 + $0x18] sm:$0xf]
    %v2704 = vld [vmem:[%s2696 + $0x1c] sm:$0xf]
    %s2705 = scalar_lea.vmem [#allocation9], 20
    %v2706 = vld [vmem:[%s2705] sm:$0xf]
    %v2707 = vpack.c.bf16 %v2680, %v2679
    %v2708 = vpack.c.bf16 %v2682, %v2681
    %v2709 = vpack.c.bf16 %v2684, %v2683
    %v2710 = vpack.c.bf16 %v2686, %v2685
    %v2711 = vlaneseq
    %v2712 = vshrl.u32 %v2711, 7
    %v2713 = vsub.s32 0, %v2712
    %v2714 = vrot.slane %v2706, %v2713
    %v2723 = vunpack.c.l.b16 %v2688
    %v2724 = vunpack.c.l.b16 %v2689
    %v2725 = vunpack.c.l.b16 %v2690
    %v2726 = vunpack.c.l.b16 %v2691
    %v2727 = vunpack.c.l.b16 %v2692
    %v2728 = vunpack.c.l.b16 %v2693
    %v2729 = vunpack.c.l.b16 %v2694
    %v2730 = vunpack.c.l.b16 %v2695
    %v2731 = vpack.c.b16 %v2724, %v2723
    %v2732 = vpack.c.b16 %v2726, %v2725
    %v2733 = vpack.c.b16 %v2728, %v2727
    %v2734 = vpack.c.b16 %v2730, %v2729
    %v2740 = vsel %vm158, %v2707, 0
    %v2743 = vsel %vm158, %v2708, 0
    %v2746 = vsel %vm158, %v2709, 0
    %v2749 = vsel %vm158, %v2710, 0
    %2751 = vmatprep.subr.bf16.mxu0 0
    %2752 = vmatpush1.bf16.msra.mxu0 %v2731
    %2753 = vmatprep.subr.bf16.mxu0 0
    %2754 = vmatpush1.bf16.msra.mxu0 %v2732
    %2755 = vmatprep.subr.bf16.mxu0 0
    %2756 = vmatpush1.bf16.msra.mxu0 %v2733
    %2757 = vmatprep.subr.bf16.mxu0 0
    %2758 = vmatpush1.bf16.msra.mxu0 %v2734
    %2759 = vmatprep.subr.bf16.mxu0 0
    %2760 = vmatpush1.bf16.msra.mxu0 0
    %2761 = vmatprep.subr.bf16.mxu0 0
    %2762 = vmatpush1.bf16.msra.mxu0 0
    %2763 = vmatprep.subr.bf16.mxu0 0
    %2764 = vmatpush1.bf16.msra.mxu0 0
    %2765 = vmatprep.subr.bf16.mxu0 0
    %2766 = vmatpush1.bf16.msra.mxu0 0
    %2767 = vmatprep.subr.bf16.mxu0 0
    %2768 = vmatpush1.bf16.msra.mxu0 0
    %2769 = vmatprep.subr.bf16.mxu0 0
    %2770 = vmatpush1.bf16.msra.mxu0 0
    %2771 = vmatprep.subr.bf16.mxu0 0
    %2772 = vmatpush1.bf16.msra.mxu0 0
    %2773 = vmatprep.subr.bf16.mxu0 0
    %2774 = vmatpush1.bf16.msra.mxu0 0
    %2775 = vmatprep.subr.bf16.mxu0 0
    %2776 = vmatpush1.bf16.msra.mxu0 0
    %2777 = vmatprep.subr.bf16.mxu0 0
    %2778 = vmatpush1.bf16.msra.mxu0 0
    %2779 = vmatprep.subr.bf16.mxu0 0
    %2780 = vmatpush1.bf16.msra.mxu0 0
    %2781 = vmatprep.subr.bf16.mxu0 0
    %2782 = vmatpush1.bf16.msra.mxu0 0
    %2783 = vmatprep.mubr.bf16.mxu0 0
    %2784 = vmatmul.mubr.bf16.gmra.mrb[0].mxu0 %v2740
    %v2785 = vpop.f32.mrb[0].mxu0
    %v2786 = vadd.f32 %v2714, %v2785
    %v2787 = vpop.f32.mrb[0].mxu0
    %v2788 = vpop.f32.mrb[0].mxu0
    %v2789 = vadd.f32 %v2714, %v2788
    %v2790 = vpop.f32.mrb[0].mxu0
    %2791 = vmatprep.mubr.bf16.mxu0 0
    %2792 = vmatmul.mubr.bf16.gmra.mrb[0].mxu0 %v2743
    %v2793 = vpop.f32.mrb[0].mxu0
    %v2794 = vadd.f32 %v2714, %v2793
    %v2795 = vpop.f32.mrb[0].mxu0
    %v2796 = vpop.f32.mrb[0].mxu0
    %v2797 = vadd.f32 %v2714, %v2796
    %v2798 = vpop.f32.mrb[0].mxu0
    %2799 = vmatprep.mubr.bf16.mxu0 0
    %2800 = vmatmul.mubr.bf16.gmra.mrb[0].mxu0 %v2746
    %v2801 = vpop.f32.mrb[0].mxu0
    %v2802 = vadd.f32 %v2714, %v2801
    %v2803 = vpop.f32.mrb[0].mxu0
    %v2804 = vpop.f32.mrb[0].mxu0
    %v2805 = vadd.f32 %v2714, %v2804
    %v2806 = vpop.f32.mrb[0].mxu0
    %2807 = vmatprep.mubr.bf16.mxu0 0
    %2808 = vmatmul.mubr.bf16.gmra.mrb[0].mxu0 %v2749
    %v2809 = vpop.f32.mrb[0].mxu0
    %v2810 = vadd.f32 %v2714, %v2809
    %v2811 = vpop.f32.mrb[0].mxu0
    %v2812 = vpop.f32.mrb[0].mxu0
    %v2813 = vadd.f32 %v2714, %v2812
    %v2814 = vpop.f32.mrb[0].mxu0
    %2815 = vdwg.mxu0
    %v2816 = vmax.f32 %v2786, 0.0
    %v2817 = vmax.f32 %v2789, 0.0
    %v2818 = vmax.f32 %v2794, 0.0
    %v2819 = vmax.f32 %v2797, 0.0
    %v2820 = vmax.f32 %v2802, 0.0
    %v2821 = vmax.f32 %v2805, 0.0
    %v2822 = vmax.f32 %v2810, 0.0
    %v2823 = vmax.f32 %v2813, 0.0
    %v2824 = vpack.c.bf16 %v2817, %v2816
    %v2825 = vpack.c.bf16 %v2819, %v2818
    %v2826 = vpack.c.bf16 %v2821, %v2820
    %v2827 = vpack.c.bf16 %v2823, %v2822
    %v2828 = vlaneseq
    %v2829 = vshrl.u32 %v2828, 7
    %v2830 = vsub.s32 1, %v2829
    %v2831 = vrot.slane %v2706, %v2830
    %v2840 = vunpack.c.l.b16 %v2697
    %v2841 = vunpack.c.l.b16 %v2698
    %v2842 = vunpack.c.l.b16 %v2699
    %v2843 = vunpack.c.l.b16 %v2700
    %v2844 = vunpack.c.l.b16 %v2701
    %v2845 = vunpack.c.l.b16 %v2702
    %v2846 = vunpack.c.l.b16 %v2703
    %v2847 = vunpack.c.l.b16 %v2704
    %v2848 = vpack.c.b16 %v2841, %v2840
    %v2849 = vpack.c.b16 %v2843, %v2842
    %v2850 = vpack.c.b16 %v2845, %v2844
    %v2851 = vpack.c.b16 %v2847, %v2846
    %v2857 = vsel %vm158, %v2824, 0
    %v2860 = vsel %vm158, %v2825, 0
    %v2863 = vsel %vm158, %v2826, 0
    %v2866 = vsel %vm158, %v2827, 0
    %2868 = vmatprep.subr.bf16.mxu0 0
    %2869 = vmatpush1.bf16.msra.mxu0 %v2848
    %2870 = vmatprep.subr.bf16.mxu0 0
    %2871 = vmatpush1.bf16.msra.mxu0 %v2849
    %2872 = vmatprep.subr.bf16.mxu0 0
    %2873 = vmatpush1.bf16.msra.mxu0 %v2850
    %2874 = vmatprep.subr.bf16.mxu0 0
    %2875 = vmatpush1.bf16.msra.mxu0 %v2851
    %2876 = vmatprep.subr.bf16.mxu0 0
    %2877 = vmatpush1.bf16.msra.mxu0 0
    %2878 = vmatprep.subr.bf16.mxu0 0
    %2879 = vmatpush1.bf16.msra.mxu0 0
    %2880 = vmatprep.subr.bf16.mxu0 0
    %2881 = vmatpush1.bf16.msra.mxu0 0
    %2882 = vmatprep.subr.bf16.mxu0 0
    %2883 = vmatpush1.bf16.msra.mxu0 0
    %2884 = vmatprep.subr.bf16.mxu0 0
    %2885 = vmatpush1.bf16.msra.mxu0 0
    %2886 = vmatprep.subr.bf16.mxu0 0
    %2887 = vmatpush1.bf16.msra.mxu0 0
    %2888 = vmatprep.subr.bf16.mxu0 0
    %2889 = vmatpush1.bf16.msra.mxu0 0
    %2890 = vmatprep.subr.bf16.mxu0 0
    %2891 = vmatpush1.bf16.msra.mxu0 0
    %2892 = vmatprep.subr.bf16.mxu0 0
    %2893 = vmatpush1.bf16.msra.mxu0 0
    %2894 = vmatprep.subr.bf16.mxu0 0
    %2895 = vmatpush1.bf16.msra.mxu0 0
    %2896 = vmatprep.subr.bf16.mxu0 0
    %2897 = vmatpush1.bf16.msra.mxu0 0
    %2898 = vmatprep.subr.bf16.mxu0 0
    %2899 = vmatpush1.bf16.msra.mxu0 0
    %2900 = vmatprep.mubr.bf16.mxu0 0
    %2901 = vmatmul.mubr.bf16.gmra.mrb[0].mxu0 %v2857
    %v2902 = vpop.f32.mrb[0].mxu0
    %v2903 = vadd.f32 %v2831, %v2902
    %v2904 = vpop.f32.mrb[0].mxu0
    %v2905 = vpop.f32.mrb[0].mxu0
    %v2906 = vadd.f32 %v2831, %v2905
    %v2907 = vpop.f32.mrb[0].mxu0
    %2908 = vmatprep.mubr.bf16.mxu0 0
    %2909 = vmatmul.mubr.bf16.gmra.mrb[0].mxu0 %v2860
    %v2910 = vpop.f32.mrb[0].mxu0
    %v2911 = vadd.f32 %v2831, %v2910
    %v2912 = vpop.f32.mrb[0].mxu0
    %v2913 = vpop.f32.mrb[0].mxu0
    %v2914 = vadd.f32 %v2831, %v2913
    %v2915 = vpop.f32.mrb[0].mxu0
    %2916 = vmatprep.mubr.bf16.mxu0 0
    %2917 = vmatmul.mubr.bf16.gmra.mrb[0].mxu0 %v2863
    %v2918 = vpop.f32.mrb[0].mxu0
    %v2919 = vadd.f32 %v2831, %v2918
    %v2920 = vpop.f32.mrb[0].mxu0
    %v2921 = vpop.f32.mrb[0].mxu0
    %v2922 = vadd.f32 %v2831, %v2921
    %v2923 = vpop.f32.mrb[0].mxu0
    %2924 = vmatprep.mubr.bf16.mxu0 0
    %2925 = vmatmul.mubr.bf16.gmra.mrb[0].mxu0 %v2866
    %v2926 = vpop.f32.mrb[0].mxu0
    %v2927 = vadd.f32 %v2831, %v2926
    %v2928 = vpop.f32.mrb[0].mxu0
    %v2929 = vpop.f32.mrb[0].mxu0
    %v2930 = vadd.f32 %v2831, %v2929
    %v2931 = vpop.f32.mrb[0].mxu0
    %2932 = vdwg.mxu0
    %v2933 = vmax.f32 %v2903, 0.0
    %v2934 = vmax.f32 %v2906, 0.0
    %v2935 = vmax.f32 %v2911, 0.0
    %v2936 = vmax.f32 %v2914, 0.0
    %v2937 = vmax.f32 %v2919, 0.0
    %v2938 = vmax.f32 %v2922, 0.0
    %v2939 = vmax.f32 %v2927, 0.0
    %v2940 = vmax.f32 %v2930, 0.0
    %v2941 = vlaneseq
    %v2942 = vshrl.u32 %v2941, 7
    %v2943 = vsub.s32 2, %v2942
    %v2944 = vrot.slane %v2706, %v2943
    %v2945 = vmul.f32 %v2933, %v2944
    %v2946 = vmul.f32 %v2934, %v2944
    %v2947 = vmul.f32 %v2935, %v2944
    %v2948 = vmul.f32 %v2936, %v2944
    %v2949 = vmul.f32 %v2937, %v2944
    %v2950 = vmul.f32 %v2938, %v2944
    %v2951 = vmul.f32 %v2939, %v2944
    %v2952 = vmul.f32 %v2940, %v2944
    %v2953 = vlaneseq
    %v2954 = vshrl.u32 %v2953, 7
    %v2955 = vsub.s32 3, %v2954
    %v2956 = vrot.slane %v2706, %v2955
    %v2957 = vadd.f32 %v2945, %v2956
    %v2958 = vadd.f32 %v2946, %v2956
    %v2959 = vadd.f32 %v2947, %v2956
    %v2960 = vadd.f32 %v2948, %v2956
    %v2961 = vadd.f32 %v2949, %v2956
    %v2962 = vadd.f32 %v2950, %v2956
    %v2963 = vadd.f32 %v2951, %v2956
    %v2964 = vadd.f32 %v2952, %v2956
    %v2965 = vpack.c.bf16 %v2958, %v2957
    %v2966 = vpack.c.bf16 %v2960, %v2959
    %v2967 = vpack.c.bf16 %v2962, %v2961
    %v2968 = vpack.c.bf16 %v2964, %v2963
    %2969 = vmatprep.subr.bf16.mxu0 0
    %2970 = vmatpush1.bf16.msra.mxu0 %v2965
    %2971 = vmatprep.subr.bf16.mxu0 0
    %2972 = vmatpush1.bf16.msra.mxu0 %v2966
    %2973 = vmatprep.subr.bf16.mxu0 0
    %2974 = vmatpush1.bf16.msra.mxu0 %v2967
    %2975 = vmatprep.subr.bf16.mxu0 0
    %2976 = vmatpush1.bf16.msra.mxu0 %v2968
    %2977 = vmatprep.subr.bf16.mxu0 0
    %2978 = vmatpush1.bf16.msra.mxu0 0
    %2979 = vmatprep.subr.bf16.mxu0 0
    %2980 = vmatpush1.bf16.msra.mxu0 0
    %2981 = vmatprep.subr.bf16.mxu0 0
    %2982 = vmatpush1.bf16.msra.mxu0 0
    %2983 = vmatprep.subr.bf16.mxu0 0
    %2984 = vmatpush1.bf16.msra.mxu0 0
    %2985 = vmatprep.subr.bf16.mxu0 0
    %2986 = vmatpush1.bf16.msra.mxu0 0
    %2987 = vmatprep.subr.bf16.mxu0 0
    %2988 = vmatpush1.bf16.msra.mxu0 0
    %2989 = vmatprep.subr.bf16.mxu0 0
    %2990 = vmatpush1.bf16.msra.mxu0 0
    %2991 = vmatprep.subr.bf16.mxu0 0
    %2992 = vmatpush1.bf16.msra.mxu0 0
    %2993 = vmatprep.subr.bf16.mxu0 0
    %2994 = vmatpush1.bf16.msra.mxu0 0
    %2995 = vmatprep.subr.bf16.mxu0 0
    %2996 = vmatpush1.bf16.msra.mxu0 0
    %2997 = vmatprep.subr.bf16.mxu0 0
    %2998 = vmatpush1.bf16.msra.mxu0 0
    %2999 = vmatprep.subr.bf16.mxu0 0
    %3000 = vmatpush1.bf16.msra.mxu0 0
    %3001 = vmatprep.mubr.bf16.mxu0 0
    %3002 = vmatmul.mubr.bf16.gmra.mrb[0].mxu0 %v555
    %v3003 = vpop.f32.mrb[0].mxu0
    %v3004 = vadd.f32 0.0, %v3003
    %v3005 = vpop.f32.mrb[0].mxu0
    %v3006 = vpop.f32.mrb[0].mxu0
    %v3007 = vpop.f32.mrb[0].mxu0
    %3008 = vdwg.mxu0
    %v3009 = vpack.c.bf16 %v3004, %v3004
    %v3010 = vld [vmem:[%s8 + $0xa0] sm:$0xf]
    %v3011 = vld [vmem:[%s8 + $0xa4] sm:$0xf]
    %v3012 = vld [vmem:[%s8 + $0xa8] sm:$0xf]
    %v3013 = vld [vmem:[%s8 + $0xac] sm:$0xf]
    %v3014 = vld [vmem:[%s8 + $0xb0] sm:$0xf]
    %v3015 = vld [vmem:[%s8 + $0xb4] sm:$0xf]
    %v3016 = vld [vmem:[%s8 + $0xb8] sm:$0xf]
    %v3017 = vld [vmem:[%s8 + $0xbc] sm:$0xf]
    %v3026 = vunpack.c.l.b16 %v3010
    %v3027 = vunpack.c.l.b16 %v3011
    %v3028 = vunpack.c.l.b16 %v3012
    %v3029 = vunpack.c.l.b16 %v3013
    %v3030 = vunpack.c.l.b16 %v3014
    %v3031 = vunpack.c.l.b16 %v3015
    %v3032 = vunpack.c.l.b16 %v3016
    %v3033 = vunpack.c.l.b16 %v3017
    %v3034 = vpack.c.b16 %v3027, %v3026
    %v3035 = vpack.c.b16 %v3029, %v3028
    %v3036 = vpack.c.b16 %v3031, %v3030
    %v3037 = vpack.c.b16 %v3033, %v3032
    %v3043 = vsel %vm158, %v3009, 0
    %3045 = vmatprep.subr.bf16.mxu0 0
    %3046 = vmatpush1.bf16.msra.mxu0 %v3034
    %3047 = vmatprep.subr.bf16.mxu0 0
    %3048 = vmatpush1.bf16.msra.mxu0 %v3035
    %3049 = vmatprep.subr.bf16.mxu0 0
    %3050 = vmatpush1.bf16.msra.mxu0 %v3036
    %3051 = vmatprep.subr.bf16.mxu0 0
    %3052 = vmatpush1.bf16.msra.mxu0 %v3037
    %3053 = vmatprep.subr.bf16.mxu0 0
    %3054 = vmatpush1.bf16.msra.mxu0 0
    %3055 = vmatprep.subr.bf16.mxu0 0
    %3056 = vmatpush1.bf16.msra.mxu0 0
    %3057 = vmatprep.subr.bf16.mxu0 0
    %3058 = vmatpush1.bf16.msra.mxu0 0
    %3059 = vmatprep.subr.bf16.mxu0 0
    %3060 = vmatpush1.bf16.msra.mxu0 0
    %3061 = vmatprep.subr.bf16.mxu0 0
    %3062 = vmatpush1.bf16.msra.mxu0 0
    %3063 = vmatprep.subr.bf16.mxu0 0
    %3064 = vmatpush1.bf16.msra.mxu0 0
    %3065 = vmatprep.subr.bf16.mxu0 0
    %3066 = vmatpush1.bf16.msra.mxu0 0
    %3067 = vmatprep.subr.bf16.mxu0 0
    %3068 = vmatpush1.bf16.msra.mxu0 0
    %3069 = vmatprep.subr.bf16.mxu0 0
    %3070 = vmatpush1.bf16.msra.mxu0 0
    %3071 = vmatprep.subr.bf16.mxu0 0
    %3072 = vmatpush1.bf16.msra.mxu0 0
    %3073 = vmatprep.subr.bf16.mxu0 0
    %3074 = vmatpush1.bf16.msra.mxu0 0
    %3075 = vmatprep.subr.bf16.mxu0 0
    %3076 = vmatpush1.bf16.msra.mxu0 0
    %3077 = vmatprep.mubr.bf16.mxu0 0
    %3078 = vmatmul.mubr.bf16.gmra.mrb[0].mxu0 %v3043
    %v3079 = vpop.f32.mrb[0].mxu0
    %v3080 = vadd.f32 0.0, %v3079
    %v3081 = vpop.f32.mrb[0].mxu0
    %v3082 = vpop.f32.mrb[0].mxu0
    %v3083 = vpop.f32.mrb[0].mxu0
    %3084 = vdwg.mxu0
    %v3085 = vadd.f32 %v2602, %v3080
    %3086 = vmatprep.subr.bf16.mxu0 0
    %3087 = vmatpush1.bf16.msra.mxu0 %v2965
    %3088 = vmatprep.subr.bf16.mxu0 0
    %3089 = vmatpush1.bf16.msra.mxu0 %v2966
    %3090 = vmatprep.subr.bf16.mxu0 0
    %3091 = vmatpush1.bf16.msra.mxu0 %v2967
    %3092 = vmatprep.subr.bf16.mxu0 0
    %3093 = vmatpush1.bf16.msra.mxu0 %v2968
    %3094 = vmatprep.subr.bf16.mxu0 0
    %3095 = vmatpush1.bf16.msra.mxu0 0
    %3096 = vmatprep.subr.bf16.mxu0 0
    %3097 = vmatpush1.bf16.msra.mxu0 0
    %3098 = vmatprep.subr.bf16.mxu0 0
    %3099 = vmatpush1.bf16.msra.mxu0 0
    %3100 = vmatprep.subr.bf16.mxu0 0
    %3101 = vmatpush1.bf16.msra.mxu0 0
    %3102 = vmatprep.subr.bf16.mxu0 0
    %3103 = vmatpush1.bf16.msra.mxu0 0
    %3104 = vmatprep.subr.bf16.mxu0 0
    %3105 = vmatpush1.bf16.msra.mxu0 0
    %3106 = vmatprep.subr.bf16.mxu0 0
    %3107 = vmatpush1.bf16.msra.mxu0 0
    %3108 = vmatprep.subr.bf16.mxu0 0
    %3109 = vmatpush1.bf16.msra.mxu0 0
    %3110 = vmatprep.subr.bf16.mxu0 0
    %3111 = vmatpush1.bf16.msra.mxu0 0
    %3112 = vmatprep.subr.bf16.mxu0 0
    %3113 = vmatpush1.bf16.msra.mxu0 0
    %3114 = vmatprep.subr.bf16.mxu0 0
    %3115 = vmatpush1.bf16.msra.mxu0 0
    %3116 = vmatprep.subr.bf16.mxu0 0
    %3117 = vmatpush1.bf16.msra.mxu0 0
    %3118 = vmatprep.mubr.bf16.mxu0 0
    %3119 = vmatmul.mubr.bf16.gmra.mrb[0].mxu0 %v160
    %v3120 = vpop.f32.mrb[0].mxu0
    %v3121 = vadd.f32 0.0, %v3120
    %v3122 = vpop.f32.mrb[0].mxu0
    %v3123 = vpop.f32.mrb[0].mxu0
    %v3124 = vadd.f32 0.0, %v3123
    %v3125 = vpop.f32.mrb[0].mxu0
    %3126 = vmatprep.mubr.bf16.mxu0 0
    %3127 = vmatmul.mubr.bf16.gmra.mrb[0].mxu0 %v163
    %v3128 = vpop.f32.mrb[0].mxu0
    %v3129 = vadd.f32 0.0, %v3128
    %v3130 = vpop.f32.mrb[0].mxu0
    %v3131 = vpop.f32.mrb[0].mxu0
    %v3132 = vadd.f32 0.0, %v3131
    %v3133 = vpop.f32.mrb[0].mxu0
    %3134 = vmatprep.mubr.bf16.mxu0 0
    %3135 = vmatmul.mubr.bf16.gmra.mrb[0].mxu0 %v166
    %v3136 = vpop.f32.mrb[0].mxu0
    %v3137 = vadd.f32 0.0, %v3136
    %v3138 = vpop.f32.mrb[0].mxu0
    %v3139 = vpop.f32.mrb[0].mxu0
    %v3140 = vadd.f32 0.0, %v3139
    %v3141 = vpop.f32.mrb[0].mxu0
    %3142 = vmatprep.mubr.bf16.mxu0 0
    %3143 = vmatmul.mubr.bf16.gmra.mrb[0].mxu0 %v169
    %v3144 = vpop.f32.mrb[0].mxu0
    %v3145 = vadd.f32 0.0, %v3144
    %v3146 = vpop.f32.mrb[0].mxu0
    %v3147 = vpop.f32.mrb[0].mxu0
    %v3148 = vadd.f32 0.0, %v3147
    %v3149 = vpop.f32.mrb[0].mxu0
    %3150 = vdwg.mxu0
    %s3151 = sld [smem:[#allocation2 + $0x6]]
    %s3152 = sadd.f32 %s3151, 1.0
    %v3153 = vstv %s3152
    %v3154 = vmul.f32 %v3153, %v2957
    %v3155 = vmul.f32 %v3153, %v2958
    %v3156 = vmul.f32 %v3153, %v2959
    %v3157 = vmul.f32 %v3153, %v2960
    %v3158 = vmul.f32 %v3153, %v2961
    %v3159 = vmul.f32 %v3153, %v2962
    %v3160 = vmul.f32 %v3153, %v2963
    %v3161 = vmul.f32 %v3153, %v2964
    %v3162 = vadd.f32 %v3154, %v3121
    %v3163 = vadd.f32 %v3155, %v3124
    %v3164 = vadd.f32 %v3156, %v3129
    %v3165 = vadd.f32 %v3157, %v3132
    %v3166 = vadd.f32 %v3158, %v3137
    %v3167 = vadd.f32 %v3159, %v3140
    %v3168 = vadd.f32 %v3160, %v3145
    %v3169 = vadd.f32 %v3161, %v3148
    %s3170 = scalar_lea.vmem %s5, 160
    %v3171 = vld [vmem:[%s3170] sm:$0xf]
    %v3172 = vld [vmem:[%s3170 + $0x4] sm:$0xf]
    %v3173 = vld [vmem:[%s3170 + $0x8] sm:$0xf]
    %v3174 = vld [vmem:[%s3170 + $0xc] sm:$0xf]
    %v3175 = vld [vmem:[%s3170 + $0x10] sm:$0xf]
    %v3176 = vld [vmem:[%s3170 + $0x14] sm:$0xf]
    %v3177 = vld [vmem:[%s3170 + $0x18] sm:$0xf]
    %v3178 = vld [vmem:[%s3170 + $0x1c] sm:$0xf]
    %s3179 = scalar_lea.vmem %s6, 192
    %v3180 = vld [vmem:[%s3179] sm:$0xf]
    %v3181 = vld [vmem:[%s3179 + $0x4] sm:$0xf]
    %v3182 = vld [vmem:[%s3179 + $0x8] sm:$0xf]
    %v3183 = vld [vmem:[%s3179 + $0xc] sm:$0xf]
    %v3184 = vld [vmem:[%s3179 + $0x10] sm:$0xf]
    %v3185 = vld [vmem:[%s3179 + $0x14] sm:$0xf]
    %v3186 = vld [vmem:[%s3179 + $0x18] sm:$0xf]
    %v3187 = vld [vmem:[%s3179 + $0x1c] sm:$0xf]
    %s3188 = scalar_lea.vmem [#allocation9], 24
    %v3189 = vld [vmem:[%s3188] sm:$0xf]
    %v3190 = vpack.c.bf16 %v3163, %v3162
    %v3191 = vpack.c.bf16 %v3165, %v3164
    %v3192 = vpack.c.bf16 %v3167, %v3166
    %v3193 = vpack.c.bf16 %v3169, %v3168
    %v3194 = vlaneseq
    %v3195 = vshrl.u32 %v3194, 7
    %v3196 = vsub.s32 0, %v3195
    %v3197 = vrot.slane %v3189, %v3196
    %v3206 = vunpack.c.l.b16 %v3171
    %v3207 = vunpack.c.l.b16 %v3172
    %v3208 = vunpack.c.l.b16 %v3173
    %v3209 = vunpack.c.l.b16 %v3174
    %v3210 = vunpack.c.l.b16 %v3175
    %v3211 = vunpack.c.l.b16 %v3176
    %v3212 = vunpack.c.l.b16 %v3177
    %v3213 = vunpack.c.l.b16 %v3178
    %v3214 = vpack.c.b16 %v3207, %v3206
    %v3215 = vpack.c.b16 %v3209, %v3208
    %v3216 = vpack.c.b16 %v3211, %v3210
    %v3217 = vpack.c.b16 %v3213, %v3212
    %v3223 = vsel %vm158, %v3190, 0
    %v3226 = vsel %vm158, %v3191, 0
    %v3229 = vsel %vm158, %v3192, 0
    %v3232 = vsel %vm158, %v3193, 0
    %3234 = vmatprep.subr.bf16.mxu0 0
    %3235 = vmatpush1.bf16.msra.mxu0 %v3214
    %3236 = vmatprep.subr.bf16.mxu0 0
    %3237 = vmatpush1.bf16.msra.mxu0 %v3215
    %3238 = vmatprep.subr.bf16.mxu0 0
    %3239 = vmatpush1.bf16.msra.mxu0 %v3216
    %3240 = vmatprep.subr.bf16.mxu0 0
    %3241 = vmatpush1.bf16.msra.mxu0 %v3217
    %3242 = vmatprep.subr.bf16.mxu0 0
    %3243 = vmatpush1.bf16.msra.mxu0 0
    %3244 = vmatprep.subr.bf16.mxu0 0
    %3245 = vmatpush1.bf16.msra.mxu0 0
    %3246 = vmatprep.subr.bf16.mxu0 0
    %3247 = vmatpush1.bf16.msra.mxu0 0
    %3248 = vmatprep.subr.bf16.mxu0 0
    %3249 = vmatpush1.bf16.msra.mxu0 0
    %3250 = vmatprep.subr.bf16.mxu0 0
    %3251 = vmatpush1.bf16.msra.mxu0 0
    %3252 = vmatprep.subr.bf16.mxu0 0
    %3253 = vmatpush1.bf16.msra.mxu0 0
    %3254 = vmatprep.subr.bf16.mxu0 0
    %3255 = vmatpush1.bf16.msra.mxu0 0
    %3256 = vmatprep.subr.bf16.mxu0 0
    %3257 = vmatpush1.bf16.msra.mxu0 0
    %3258 = vmatprep.subr.bf16.mxu0 0
    %3259 = vmatpush1.bf16.msra.mxu0 0
    %3260 = vmatprep.subr.bf16.mxu0 0
    %3261 = vmatpush1.bf16.msra.mxu0 0
    %3262 = vmatprep.subr.bf16.mxu0 0
    %3263 = vmatpush1.bf16.msra.mxu0 0
    %3264 = vmatprep.subr.bf16.mxu0 0
    %3265 = vmatpush1.bf16.msra.mxu0 0
    %3266 = vmatprep.mubr.bf16.mxu0 0
    %3267 = vmatmul.mubr.bf16.gmra.mrb[0].mxu0 %v3223
    %v3268 = vpop.f32.mrb[0].mxu0
    %v3269 = vadd.f32 %v3197, %v3268
    %v3270 = vpop.f32.mrb[0].mxu0
    %v3271 = vpop.f32.mrb[0].mxu0
    %v3272 = vadd.f32 %v3197, %v3271
    %v3273 = vpop.f32.mrb[0].mxu0
    %3274 = vmatprep.mubr.bf16.mxu0 0
    %3275 = vmatmul.mubr.bf16.gmra.mrb[0].mxu0 %v3226
    %v3276 = vpop.f32.mrb[0].mxu0
    %v3277 = vadd.f32 %v3197, %v3276
    %v3278 = vpop.f32.mrb[0].mxu0
    %v3279 = vpop.f32.mrb[0].mxu0
    %v3280 = vadd.f32 %v3197, %v3279
    %v3281 = vpop.f32.mrb[0].mxu0
    %3282 = vmatprep.mubr.bf16.mxu0 0
    %3283 = vmatmul.mubr.bf16.gmra.mrb[0].mxu0 %v3229
    %v3284 = vpop.f32.mrb[0].mxu0
    %v3285 = vadd.f32 %v3197, %v3284
    %v3286 = vpop.f32.mrb[0].mxu0
    %v3287 = vpop.f32.mrb[0].mxu0
    %v3288 = vadd.f32 %v3197, %v3287
    %v3289 = vpop.f32.mrb[0].mxu0
    %3290 = vmatprep.mubr.bf16.mxu0 0
    %3291 = vmatmul.mubr.bf16.gmra.mrb[0].mxu0 %v3232
    %v3292 = vpop.f32.mrb[0].mxu0
    %v3293 = vadd.f32 %v3197, %v3292
    %v3294 = vpop.f32.mrb[0].mxu0
    %v3295 = vpop.f32.mrb[0].mxu0
    %v3296 = vadd.f32 %v3197, %v3295
    %v3297 = vpop.f32.mrb[0].mxu0
    %3298 = vdwg.mxu0
    %v3299 = vmax.f32 %v3269, 0.0
    %v3300 = vmax.f32 %v3272, 0.0
    %v3301 = vmax.f32 %v3277, 0.0
    %v3302 = vmax.f32 %v3280, 0.0
    %v3303 = vmax.f32 %v3285, 0.0
    %v3304 = vmax.f32 %v3288, 0.0
    %v3305 = vmax.f32 %v3293, 0.0
    %v3306 = vmax.f32 %v3296, 0.0
    %v3307 = vpack.c.bf16 %v3300, %v3299
    %v3308 = vpack.c.bf16 %v3302, %v3301
    %v3309 = vpack.c.bf16 %v3304, %v3303
    %v3310 = vpack.c.bf16 %v3306, %v3305
    %v3311 = vlaneseq
    %v3312 = vshrl.u32 %v3311, 7
    %v3313 = vsub.s32 1, %v3312
    %v3314 = vrot.slane %v3189, %v3313
    %v3323 = vunpack.c.l.b16 %v3180
    %v3324 = vunpack.c.l.b16 %v3181
    %v3325 = vunpack.c.l.b16 %v3182
    %v3326 = vunpack.c.l.b16 %v3183
    %v3327 = vunpack.c.l.b16 %v3184
    %v3328 = vunpack.c.l.b16 %v3185
    %v3329 = vunpack.c.l.b16 %v3186
    %v3330 = vunpack.c.l.b16 %v3187
    %v3331 = vpack.c.b16 %v3324, %v3323
    %v3332 = vpack.c.b16 %v3326, %v3325
    %v3333 = vpack.c.b16 %v3328, %v3327
    %v3334 = vpack.c.b16 %v3330, %v3329
    %v3340 = vsel %vm158, %v3307, 0
    %v3343 = vsel %vm158, %v3308, 0
    %v3346 = vsel %vm158, %v3309, 0
    %v3349 = vsel %vm158, %v3310, 0
    %3351 = vmatprep.subr.bf16.mxu0 0
    %3352 = vmatpush1.bf16.msra.mxu0 %v3331
    %3353 = vmatprep.subr.bf16.mxu0 0
    %3354 = vmatpush1.bf16.msra.mxu0 %v3332
    %3355 = vmatprep.subr.bf16.mxu0 0
    %3356 = vmatpush1.bf16.msra.mxu0 %v3333
    %3357 = vmatprep.subr.bf16.mxu0 0
    %3358 = vmatpush1.bf16.msra.mxu0 %v3334
    %3359 = vmatprep.subr.bf16.mxu0 0
    %3360 = vmatpush1.bf16.msra.mxu0 0
    %3361 = vmatprep.subr.bf16.mxu0 0
    %3362 = vmatpush1.bf16.msra.mxu0 0
    %3363 = vmatprep.subr.bf16.mxu0 0
    %3364 = vmatpush1.bf16.msra.mxu0 0
    %3365 = vmatprep.subr.bf16.mxu0 0
    %3366 = vmatpush1.bf16.msra.mxu0 0
    %3367 = vmatprep.subr.bf16.mxu0 0
    %3368 = vmatpush1.bf16.msra.mxu0 0
    %3369 = vmatprep.subr.bf16.mxu0 0
    %3370 = vmatpush1.bf16.msra.mxu0 0
    %3371 = vmatprep.subr.bf16.mxu0 0
    %3372 = vmatpush1.bf16.msra.mxu0 0
    %3373 = vmatprep.subr.bf16.mxu0 0
    %3374 = vmatpush1.bf16.msra.mxu0 0
    %3375 = vmatprep.subr.bf16.mxu0 0
    %3376 = vmatpush1.bf16.msra.mxu0 0
    %3377 = vmatprep.subr.bf16.mxu0 0
    %3378 = vmatpush1.bf16.msra.mxu0 0
    %3379 = vmatprep.subr.bf16.mxu0 0
    %3380 = vmatpush1.bf16.msra.mxu0 0
    %3381 = vmatprep.subr.bf16.mxu0 0
    %3382 = vmatpush1.bf16.msra.mxu0 0
    %3383 = vmatprep.mubr.bf16.mxu0 0
    %3384 = vmatmul.mubr.bf16.gmra.mrb[0].mxu0 %v3340
    %v3385 = vpop.f32.mrb[0].mxu0
    %v3386 = vadd.f32 %v3314, %v3385
    %v3387 = vpop.f32.mrb[0].mxu0
    %v3388 = vpop.f32.mrb[0].mxu0
    %v3389 = vadd.f32 %v3314, %v3388
    %v3390 = vpop.f32.mrb[0].mxu0
    %3391 = vmatprep.mubr.bf16.mxu0 0
    %3392 = vmatmul.mubr.bf16.gmra.mrb[0].mxu0 %v3343
    %v3393 = vpop.f32.mrb[0].mxu0
    %v3394 = vadd.f32 %v3314, %v3393
    %v3395 = vpop.f32.mrb[0].mxu0
    %v3396 = vpop.f32.mrb[0].mxu0
    %v3397 = vadd.f32 %v3314, %v3396
    %v3398 = vpop.f32.mrb[0].mxu0
    %3399 = vmatprep.mubr.bf16.mxu0 0
    %3400 = vmatmul.mubr.bf16.gmra.mrb[0].mxu0 %v3346
    %v3401 = vpop.f32.mrb[0].mxu0
    %v3402 = vadd.f32 %v3314, %v3401
    %v3403 = vpop.f32.mrb[0].mxu0
    %v3404 = vpop.f32.mrb[0].mxu0
    %v3405 = vadd.f32 %v3314, %v3404
    %v3406 = vpop.f32.mrb[0].mxu0
    %3407 = vmatprep.mubr.bf16.mxu0 0
    %3408 = vmatmul.mubr.bf16.gmra.mrb[0].mxu0 %v3349
    %v3409 = vpop.f32.mrb[0].mxu0
    %v3410 = vadd.f32 %v3314, %v3409
    %v3411 = vpop.f32.mrb[0].mxu0
    %v3412 = vpop.f32.mrb[0].mxu0
    %v3413 = vadd.f32 %v3314, %v3412
    %v3414 = vpop.f32.mrb[0].mxu0
    %3415 = vdwg.mxu0
    %v3416 = vmax.f32 %v3386, 0.0
    %v3417 = vmax.f32 %v3389, 0.0
    %v3418 = vmax.f32 %v3394, 0.0
    %v3419 = vmax.f32 %v3397, 0.0
    %v3420 = vmax.f32 %v3402, 0.0
    %v3421 = vmax.f32 %v3405, 0.0
    %v3422 = vmax.f32 %v3410, 0.0
    %v3423 = vmax.f32 %v3413, 0.0
    %v3424 = vlaneseq
    %v3425 = vshrl.u32 %v3424, 7
    %v3426 = vsub.s32 2, %v3425
    %v3427 = vrot.slane %v3189, %v3426
    %v3428 = vmul.f32 %v3416, %v3427
    %v3429 = vmul.f32 %v3417, %v3427
    %v3430 = vmul.f32 %v3418, %v3427
    %v3431 = vmul.f32 %v3419, %v3427
    %v3432 = vmul.f32 %v3420, %v3427
    %v3433 = vmul.f32 %v3421, %v3427
    %v3434 = vmul.f32 %v3422, %v3427
    %v3435 = vmul.f32 %v3423, %v3427
    %v3436 = vlaneseq
    %v3437 = vshrl.u32 %v3436, 7
    %v3438 = vsub.s32 3, %v3437
    %v3439 = vrot.slane %v3189, %v3438
    %v3440 = vadd.f32 %v3428, %v3439
    %v3441 = vadd.f32 %v3429, %v3439
    %v3442 = vadd.f32 %v3430, %v3439
    %v3443 = vadd.f32 %v3431, %v3439
    %v3444 = vadd.f32 %v3432, %v3439
    %v3445 = vadd.f32 %v3433, %v3439
    %v3446 = vadd.f32 %v3434, %v3439
    %v3447 = vadd.f32 %v3435, %v3439
    %v3448 = vpack.c.bf16 %v3441, %v3440
    %v3449 = vpack.c.bf16 %v3443, %v3442
    %v3450 = vpack.c.bf16 %v3445, %v3444
    %v3451 = vpack.c.bf16 %v3447, %v3446
    %3452 = vmatprep.subr.bf16.mxu0 0
    %3453 = vmatpush1.bf16.msra.mxu0 %v3448
    %3454 = vmatprep.subr.bf16.mxu0 0
    %3455 = vmatpush1.bf16.msra.mxu0 %v3449
    %3456 = vmatprep.subr.bf16.mxu0 0
    %3457 = vmatpush1.bf16.msra.mxu0 %v3450
    %3458 = vmatprep.subr.bf16.mxu0 0
    %3459 = vmatpush1.bf16.msra.mxu0 %v3451
    %3460 = vmatprep.subr.bf16.mxu0 0
    %3461 = vmatpush1.bf16.msra.mxu0 0
    %3462 = vmatprep.subr.bf16.mxu0 0
    %3463 = vmatpush1.bf16.msra.mxu0 0
    %3464 = vmatprep.subr.bf16.mxu0 0
    %3465 = vmatpush1.bf16.msra.mxu0 0
    %3466 = vmatprep.subr.bf16.mxu0 0
    %3467 = vmatpush1.bf16.msra.mxu0 0
    %3468 = vmatprep.subr.bf16.mxu0 0
    %3469 = vmatpush1.bf16.msra.mxu0 0
    %3470 = vmatprep.subr.bf16.mxu0 0
    %3471 = vmatpush1.bf16.msra.mxu0 0
    %3472 = vmatprep.subr.bf16.mxu0 0
    %3473 = vmatpush1.bf16.msra.mxu0 0
    %3474 = vmatprep.subr.bf16.mxu0 0
    %3475 = vmatpush1.bf16.msra.mxu0 0
    %3476 = vmatprep.subr.bf16.mxu0 0
    %3477 = vmatpush1.bf16.msra.mxu0 0
    %3478 = vmatprep.subr.bf16.mxu0 0
    %3479 = vmatpush1.bf16.msra.mxu0 0
    %3480 = vmatprep.subr.bf16.mxu0 0
    %3481 = vmatpush1.bf16.msra.mxu0 0
    %3482 = vmatprep.subr.bf16.mxu0 0
    %3483 = vmatpush1.bf16.msra.mxu0 0
    %3484 = vmatprep.mubr.bf16.mxu0 0
    %3485 = vmatmul.mubr.bf16.gmra.mrb[0].mxu0 %v555
    %v3486 = vpop.f32.mrb[0].mxu0
    %v3487 = vadd.f32 0.0, %v3486
    %v3488 = vpop.f32.mrb[0].mxu0
    %v3489 = vpop.f32.mrb[0].mxu0
    %v3490 = vpop.f32.mrb[0].mxu0
    %3491 = vdwg.mxu0
    %v3492 = vpack.c.bf16 %v3487, %v3487
    %v3493 = vld [vmem:[%s8 + $0xc0] sm:$0xf]
    %v3494 = vld [vmem:[%s8 + $0xc4] sm:$0xf]
    %v3495 = vld [vmem:[%s8 + $0xc8] sm:$0xf]
    %v3496 = vld [vmem:[%s8 + $0xcc] sm:$0xf]
    %v3497 = vld [vmem:[%s8 + $0xd0] sm:$0xf]
    %v3498 = vld [vmem:[%s8 + $0xd4] sm:$0xf]
    %v3499 = vld [vmem:[%s8 + $0xd8] sm:$0xf]
    %v3500 = vld [vmem:[%s8 + $0xdc] sm:$0xf]
    %v3509 = vunpack.c.l.b16 %v3493
    %v3510 = vunpack.c.l.b16 %v3494
    %v3511 = vunpack.c.l.b16 %v3495
    %v3512 = vunpack.c.l.b16 %v3496
    %v3513 = vunpack.c.l.b16 %v3497
    %v3514 = vunpack.c.l.b16 %v3498
    %v3515 = vunpack.c.l.b16 %v3499
    %v3516 = vunpack.c.l.b16 %v3500
    %v3517 = vpack.c.b16 %v3510, %v3509
    %v3518 = vpack.c.b16 %v3512, %v3511
    %v3519 = vpack.c.b16 %v3514, %v3513
    %v3520 = vpack.c.b16 %v3516, %v3515
    %v3526 = vsel %vm158, %v3492, 0
    %3528 = vmatprep.subr.bf16.mxu0 0
    %3529 = vmatpush1.bf16.msra.mxu0 %v3517
    %3530 = vmatprep.subr.bf16.mxu0 0
    %3531 = vmatpush1.bf16.msra.mxu0 %v3518
    %3532 = vmatprep.subr.bf16.mxu0 0
    %3533 = vmatpush1.bf16.msra.mxu0 %v3519
    %3534 = vmatprep.subr.bf16.mxu0 0
    %3535 = vmatpush1.bf16.msra.mxu0 %v3520
    %3536 = vmatprep.subr.bf16.mxu0 0
    %3537 = vmatpush1.bf16.msra.mxu0 0
    %3538 = vmatprep.subr.bf16.mxu0 0
    %3539 = vmatpush1.bf16.msra.mxu0 0
    %3540 = vmatprep.subr.bf16.mxu0 0
    %3541 = vmatpush1.bf16.msra.mxu0 0
    %3542 = vmatprep.subr.bf16.mxu0 0
    %3543 = vmatpush1.bf16.msra.mxu0 0
    %3544 = vmatprep.subr.bf16.mxu0 0
    %3545 = vmatpush1.bf16.msra.mxu0 0
    %3546 = vmatprep.subr.bf16.mxu0 0
    %3547 = vmatpush1.bf16.msra.mxu0 0
    %3548 = vmatprep.subr.bf16.mxu0 0
    %3549 = vmatpush1.bf16.msra.mxu0 0
    %3550 = vmatprep.subr.bf16.mxu0 0
    %3551 = vmatpush1.bf16.msra.mxu0 0
    %3552 = vmatprep.subr.bf16.mxu0 0
    %3553 = vmatpush1.bf16.msra.mxu0 0
    %3554 = vmatprep.subr.bf16.mxu0 0
    %3555 = vmatpush1.bf16.msra.mxu0 0
    %3556 = vmatprep.subr.bf16.mxu0 0
    %3557 = vmatpush1.bf16.msra.mxu0 0
    %3558 = vmatprep.subr.bf16.mxu0 0
    %3559 = vmatpush1.bf16.msra.mxu0 0
    %3560 = vmatprep.mubr.bf16.mxu0 0
    %3561 = vmatmul.mubr.bf16.gmra.mrb[0].mxu0 %v3526
    %v3562 = vpop.f32.mrb[0].mxu0
    %v3563 = vadd.f32 0.0, %v3562
    %v3564 = vpop.f32.mrb[0].mxu0
    %v3565 = vpop.f32.mrb[0].mxu0
    %v3566 = vpop.f32.mrb[0].mxu0
    %3567 = vdwg.mxu0
    %v3568 = vadd.f32 %v3085, %v3563
    %3569 = vmatprep.subr.bf16.mxu0 0
    %3570 = vmatpush1.bf16.msra.mxu0 %v3448
    %3571 = vmatprep.subr.bf16.mxu0 0
    %3572 = vmatpush1.bf16.msra.mxu0 %v3449
    %3573 = vmatprep.subr.bf16.mxu0 0
    %3574 = vmatpush1.bf16.msra.mxu0 %v3450
    %3575 = vmatprep.subr.bf16.mxu0 0
    %3576 = vmatpush1.bf16.msra.mxu0 %v3451
    %3577 = vmatprep.subr.bf16.mxu0 0
    %3578 = vmatpush1.bf16.msra.mxu0 0
    %3579 = vmatprep.subr.bf16.mxu0 0
    %3580 = vmatpush1.bf16.msra.mxu0 0
    %3581 = vmatprep.subr.bf16.mxu0 0
    %3582 = vmatpush1.bf16.msra.mxu0 0
    %3583 = vmatprep.subr.bf16.mxu0 0
    %3584 = vmatpush1.bf16.msra.mxu0 0
    %3585 = vmatprep.subr.bf16.mxu0 0
    %3586 = vmatpush1.bf16.msra.mxu0 0
    %3587 = vmatprep.subr.bf16.mxu0 0
    %3588 = vmatpush1.bf16.msra.mxu0 0
    %3589 = vmatprep.subr.bf16.mxu0 0
    %3590 = vmatpush1.bf16.msra.mxu0 0
    %3591 = vmatprep.subr.bf16.mxu0 0
    %3592 = vmatpush1.bf16.msra.mxu0 0
    %3593 = vmatprep.subr.bf16.mxu0 0
    %3594 = vmatpush1.bf16.msra.mxu0 0
    %3595 = vmatprep.subr.bf16.mxu0 0
    %3596 = vmatpush1.bf16.msra.mxu0 0
    %3597 = vmatprep.subr.bf16.mxu0 0
    %3598 = vmatpush1.bf16.msra.mxu0 0
    %3599 = vmatprep.subr.bf16.mxu0 0
    %3600 = vmatpush1.bf16.msra.mxu0 0
    %3601 = vmatprep.mubr.bf16.mxu0 0
    %3602 = vmatmul.mubr.bf16.gmra.mrb[0].mxu0 %v160
    %v3603 = vpop.f32.mrb[0].mxu0
    %v3604 = vadd.f32 0.0, %v3603
    %v3605 = vpop.f32.mrb[0].mxu0
    %v3606 = vpop.f32.mrb[0].mxu0
    %v3607 = vadd.f32 0.0, %v3606
    %v3608 = vpop.f32.mrb[0].mxu0
    %3609 = vmatprep.mubr.bf16.mxu0 0
    %3610 = vmatmul.mubr.bf16.gmra.mrb[0].mxu0 %v163
    %v3611 = vpop.f32.mrb[0].mxu0
    %v3612 = vadd.f32 0.0, %v3611
    %v3613 = vpop.f32.mrb[0].mxu0
    %v3614 = vpop.f32.mrb[0].mxu0
    %v3615 = vadd.f32 0.0, %v3614
    %v3616 = vpop.f32.mrb[0].mxu0
    %3617 = vmatprep.mubr.bf16.mxu0 0
    %3618 = vmatmul.mubr.bf16.gmra.mrb[0].mxu0 %v166
    %v3619 = vpop.f32.mrb[0].mxu0
    %v3620 = vadd.f32 0.0, %v3619
    %v3621 = vpop.f32.mrb[0].mxu0
    %v3622 = vpop.f32.mrb[0].mxu0
    %v3623 = vadd.f32 0.0, %v3622
    %v3624 = vpop.f32.mrb[0].mxu0
    %3625 = vmatprep.mubr.bf16.mxu0 0
    %3626 = vmatmul.mubr.bf16.gmra.mrb[0].mxu0 %v169
    %v3627 = vpop.f32.mrb[0].mxu0
    %v3628 = vadd.f32 0.0, %v3627
    %v3629 = vpop.f32.mrb[0].mxu0
    %v3630 = vpop.f32.mrb[0].mxu0
    %v3631 = vadd.f32 0.0, %v3630
    %v3632 = vpop.f32.mrb[0].mxu0
    %3633 = vdwg.mxu0
    %s3634 = sld [smem:[#allocation2 + $0x7]]
    %s3635 = sadd.f32 %s3634, 1.0
    %v3636 = vstv %s3635
    %v3637 = vmul.f32 %v3636, %v3440
    %v3638 = vmul.f32 %v3636, %v3441
    %v3639 = vmul.f32 %v3636, %v3442
    %v3640 = vmul.f32 %v3636, %v3443
    %v3641 = vmul.f32 %v3636, %v3444
    %v3642 = vmul.f32 %v3636, %v3445
    %v3643 = vmul.f32 %v3636, %v3446
    %v3644 = vmul.f32 %v3636, %v3447
    %v3645 = vadd.f32 %v3637, %v3604
    %v3646 = vadd.f32 %v3638, %v3607
    %v3647 = vadd.f32 %v3639, %v3612
    %v3648 = vadd.f32 %v3640, %v3615
    %v3649 = vadd.f32 %v3641, %v3620
    %v3650 = vadd.f32 %v3642, %v3623
    %v3651 = vadd.f32 %v3643, %v3628
    %v3652 = vadd.f32 %v3644, %v3631
    %s3653 = scalar_lea.vmem %s5, 192
    %v3654 = vld [vmem:[%s3653] sm:$0xf]
    %v3655 = vld [vmem:[%s3653 + $0x4] sm:$0xf]
    %v3656 = vld [vmem:[%s3653 + $0x8] sm:$0xf]
    %v3657 = vld [vmem:[%s3653 + $0xc] sm:$0xf]
    %v3658 = vld [vmem:[%s3653 + $0x10] sm:$0xf]
    %v3659 = vld [vmem:[%s3653 + $0x14] sm:$0xf]
    %v3660 = vld [vmem:[%s3653 + $0x18] sm:$0xf]
    %v3661 = vld [vmem:[%s3653 + $0x1c] sm:$0xf]
    %s3662 = scalar_lea.vmem %s6, 224
    %v3663 = vld [vmem:[%s3662] sm:$0xf]
    %v3664 = vld [vmem:[%s3662 + $0x4] sm:$0xf]
    %v3665 = vld [vmem:[%s3662 + $0x8] sm:$0xf]
    %v3666 = vld [vmem:[%s3662 + $0xc] sm:$0xf]
    %v3667 = vld [vmem:[%s3662 + $0x10] sm:$0xf]
    %v3668 = vld [vmem:[%s3662 + $0x14] sm:$0xf]
    %v3669 = vld [vmem:[%s3662 + $0x18] sm:$0xf]
    %v3670 = vld [vmem:[%s3662 + $0x1c] sm:$0xf]
    %s3671 = scalar_lea.vmem [#allocation9], 28
    %v3672 = vld [vmem:[%s3671] sm:$0xf]
    %v3673 = vpack.c.bf16 %v3646, %v3645
    %v3674 = vpack.c.bf16 %v3648, %v3647
    %v3675 = vpack.c.bf16 %v3650, %v3649
    %v3676 = vpack.c.bf16 %v3652, %v3651
    %v3677 = vlaneseq
    %v3678 = vshrl.u32 %v3677, 7
    %v3679 = vsub.s32 0, %v3678
    %v3680 = vrot.slane %v3672, %v3679
    %v3689 = vunpack.c.l.b16 %v3654
    %v3690 = vunpack.c.l.b16 %v3655
    %v3691 = vunpack.c.l.b16 %v3656
    %v3692 = vunpack.c.l.b16 %v3657
    %v3693 = vunpack.c.l.b16 %v3658
    %v3694 = vunpack.c.l.b16 %v3659
    %v3695 = vunpack.c.l.b16 %v3660
    %v3696 = vunpack.c.l.b16 %v3661
    %v3697 = vpack.c.b16 %v3690, %v3689
    %v3698 = vpack.c.b16 %v3692, %v3691
    %v3699 = vpack.c.b16 %v3694, %v3693
    %v3700 = vpack.c.b16 %v3696, %v3695
    %v3706 = vsel %vm158, %v3673, 0
    %v3709 = vsel %vm158, %v3674, 0
    %v3712 = vsel %vm158, %v3675, 0
    %v3715 = vsel %vm158, %v3676, 0
    %3717 = vmatprep.subr.bf16.mxu0 0
    %3718 = vmatpush1.bf16.msra.mxu0 %v3697
    %3719 = vmatprep.subr.bf16.mxu0 0
    %3720 = vmatpush1.bf16.msra.mxu0 %v3698
    %3721 = vmatprep.subr.bf16.mxu0 0
    %3722 = vmatpush1.bf16.msra.mxu0 %v3699
    %3723 = vmatprep.subr.bf16.mxu0 0
    %3724 = vmatpush1.bf16.msra.mxu0 %v3700
    %3725 = vmatprep.subr.bf16.mxu0 0
    %3726 = vmatpush1.bf16.msra.mxu0 0
    %3727 = vmatprep.subr.bf16.mxu0 0
    %3728 = vmatpush1.bf16.msra.mxu0 0
    %3729 = vmatprep.subr.bf16.mxu0 0
    %3730 = vmatpush1.bf16.msra.mxu0 0
    %3731 = vmatprep.subr.bf16.mxu0 0
    %3732 = vmatpush1.bf16.msra.mxu0 0
    %3733 = vmatprep.subr.bf16.mxu0 0
    %3734 = vmatpush1.bf16.msra.mxu0 0
    %3735 = vmatprep.subr.bf16.mxu0 0
    %3736 = vmatpush1.bf16.msra.mxu0 0
    %3737 = vmatprep.subr.bf16.mxu0 0
    %3738 = vmatpush1.bf16.msra.mxu0 0
    %3739 = vmatprep.subr.bf16.mxu0 0
    %3740 = vmatpush1.bf16.msra.mxu0 0
    %3741 = vmatprep.subr.bf16.mxu0 0
    %3742 = vmatpush1.bf16.msra.mxu0 0
    %3743 = vmatprep.subr.bf16.mxu0 0
    %3744 = vmatpush1.bf16.msra.mxu0 0
    %3745 = vmatprep.subr.bf16.mxu0 0
    %3746 = vmatpush1.bf16.msra.mxu0 0
    %3747 = vmatprep.subr.bf16.mxu0 0
    %3748 = vmatpush1.bf16.msra.mxu0 0
    %3749 = vmatprep.mubr.bf16.mxu0 0
    %3750 = vmatmul.mubr.bf16.gmra.mrb[0].mxu0 %v3706
    %v3751 = vpop.f32.mrb[0].mxu0
    %v3752 = vadd.f32 %v3680, %v3751
    %v3753 = vpop.f32.mrb[0].mxu0
    %v3754 = vpop.f32.mrb[0].mxu0
    %v3755 = vadd.f32 %v3680, %v3754
    %v3756 = vpop.f32.mrb[0].mxu0
    %3757 = vmatprep.mubr.bf16.mxu0 0
    %3758 = vmatmul.mubr.bf16.gmra.mrb[0].mxu0 %v3709
    %v3759 = vpop.f32.mrb[0].mxu0
    %v3760 = vadd.f32 %v3680, %v3759
    %v3761 = vpop.f32.mrb[0].mxu0
    %v3762 = vpop.f32.mrb[0].mxu0
    %v3763 = vadd.f32 %v3680, %v3762
    %v3764 = vpop.f32.mrb[0].mxu0
    %3765 = vmatprep.mubr.bf16.mxu0 0
    %3766 = vmatmul.mubr.bf16.gmra.mrb[0].mxu0 %v3712
    %v3767 = vpop.f32.mrb[0].mxu0
    %v3768 = vadd.f32 %v3680, %v3767
    %v3769 = vpop.f32.mrb[0].mxu0
    %v3770 = vpop.f32.mrb[0].mxu0
    %v3771 = vadd.f32 %v3680, %v3770
    %v3772 = vpop.f32.mrb[0].mxu0
    %3773 = vmatprep.mubr.bf16.mxu0 0
    %3774 = vmatmul.mubr.bf16.gmra.mrb[0].mxu0 %v3715
    %v3775 = vpop.f32.mrb[0].mxu0
    %v3776 = vadd.f32 %v3680, %v3775
    %v3777 = vpop.f32.mrb[0].mxu0
    %v3778 = vpop.f32.mrb[0].mxu0
    %v3779 = vadd.f32 %v3680, %v3778
    %v3780 = vpop.f32.mrb[0].mxu0
    %3781 = vdwg.mxu0
    %v3782 = vmax.f32 %v3752, 0.0
    %v3783 = vmax.f32 %v3755, 0.0
    %v3784 = vmax.f32 %v3760, 0.0
    %v3785 = vmax.f32 %v3763, 0.0
    %v3786 = vmax.f32 %v3768, 0.0
    %v3787 = vmax.f32 %v3771, 0.0
    %v3788 = vmax.f32 %v3776, 0.0
    %v3789 = vmax.f32 %v3779, 0.0
    %v3790 = vpack.c.bf16 %v3783, %v3782
    %v3791 = vpack.c.bf16 %v3785, %v3784
    %v3792 = vpack.c.bf16 %v3787, %v3786
    %v3793 = vpack.c.bf16 %v3789, %v3788
    %v3794 = vlaneseq
    %v3795 = vshrl.u32 %v3794, 7
    %v3796 = vsub.s32 1, %v3795
    %v3797 = vrot.slane %v3672, %v3796
    %v3806 = vunpack.c.l.b16 %v3663
    %v3807 = vunpack.c.l.b16 %v3664
    %v3808 = vunpack.c.l.b16 %v3665
    %v3809 = vunpack.c.l.b16 %v3666
    %v3810 = vunpack.c.l.b16 %v3667
    %v3811 = vunpack.c.l.b16 %v3668
    %v3812 = vunpack.c.l.b16 %v3669
    %v3813 = vunpack.c.l.b16 %v3670
    %v3814 = vpack.c.b16 %v3807, %v3806
    %v3815 = vpack.c.b16 %v3809, %v3808
    %v3816 = vpack.c.b16 %v3811, %v3810
    %v3817 = vpack.c.b16 %v3813, %v3812
    %v3823 = vsel %vm158, %v3790, 0
    %v3826 = vsel %vm158, %v3791, 0
    %v3829 = vsel %vm158, %v3792, 0
    %v3832 = vsel %vm158, %v3793, 0
    %3834 = vmatprep.subr.bf16.mxu0 0
    %3835 = vmatpush1.bf16.msra.mxu0 %v3814
    %3836 = vmatprep.subr.bf16.mxu0 0
    %3837 = vmatpush1.bf16.msra.mxu0 %v3815
    %3838 = vmatprep.subr.bf16.mxu0 0
    %3839 = vmatpush1.bf16.msra.mxu0 %v3816
    %3840 = vmatprep.subr.bf16.mxu0 0
    %3841 = vmatpush1.bf16.msra.mxu0 %v3817
    %3842 = vmatprep.subr.bf16.mxu0 0
    %3843 = vmatpush1.bf16.msra.mxu0 0
    %3844 = vmatprep.subr.bf16.mxu0 0
    %3845 = vmatpush1.bf16.msra.mxu0 0
    %3846 = vmatprep.subr.bf16.mxu0 0
    %3847 = vmatpush1.bf16.msra.mxu0 0
    %3848 = vmatprep.subr.bf16.mxu0 0
    %3849 = vmatpush1.bf16.msra.mxu0 0
    %3850 = vmatprep.subr.bf16.mxu0 0
    %3851 = vmatpush1.bf16.msra.mxu0 0
    %3852 = vmatprep.subr.bf16.mxu0 0
    %3853 = vmatpush1.bf16.msra.mxu0 0
    %3854 = vmatprep.subr.bf16.mxu0 0
    %3855 = vmatpush1.bf16.msra.mxu0 0
    %3856 = vmatprep.subr.bf16.mxu0 0
    %3857 = vmatpush1.bf16.msra.mxu0 0
    %3858 = vmatprep.subr.bf16.mxu0 0
    %3859 = vmatpush1.bf16.msra.mxu0 0
    %3860 = vmatprep.subr.bf16.mxu0 0
    %3861 = vmatpush1.bf16.msra.mxu0 0
    %3862 = vmatprep.subr.bf16.mxu0 0
    %3863 = vmatpush1.bf16.msra.mxu0 0
    %3864 = vmatprep.subr.bf16.mxu0 0
    %3865 = vmatpush1.bf16.msra.mxu0 0
    %3866 = vmatprep.mubr.bf16.mxu0 0
    %3867 = vmatmul.mubr.bf16.gmra.mrb[0].mxu0 %v3823
    %v3868 = vpop.f32.mrb[0].mxu0
    %v3869 = vadd.f32 %v3797, %v3868
    %v3870 = vpop.f32.mrb[0].mxu0
    %v3871 = vpop.f32.mrb[0].mxu0
    %v3872 = vadd.f32 %v3797, %v3871
    %v3873 = vpop.f32.mrb[0].mxu0
    %3874 = vmatprep.mubr.bf16.mxu0 0
    %3875 = vmatmul.mubr.bf16.gmra.mrb[0].mxu0 %v3826
    %v3876 = vpop.f32.mrb[0].mxu0
    %v3877 = vadd.f32 %v3797, %v3876
    %v3878 = vpop.f32.mrb[0].mxu0
    %v3879 = vpop.f32.mrb[0].mxu0
    %v3880 = vadd.f32 %v3797, %v3879
    %v3881 = vpop.f32.mrb[0].mxu0
    %3882 = vmatprep.mubr.bf16.mxu0 0
    %3883 = vmatmul.mubr.bf16.gmra.mrb[0].mxu0 %v3829
    %v3884 = vpop.f32.mrb[0].mxu0
    %v3885 = vadd.f32 %v3797, %v3884
    %v3886 = vpop.f32.mrb[0].mxu0
    %v3887 = vpop.f32.mrb[0].mxu0
    %v3888 = vadd.f32 %v3797, %v3887
    %v3889 = vpop.f32.mrb[0].mxu0
    %3890 = vmatprep.mubr.bf16.mxu0 0
    %3891 = vmatmul.mubr.bf16.gmra.mrb[0].mxu0 %v3832
    %v3892 = vpop.f32.mrb[0].mxu0
    %v3893 = vadd.f32 %v3797, %v3892
    %v3894 = vpop.f32.mrb[0].mxu0
    %v3895 = vpop.f32.mrb[0].mxu0
    %v3896 = vadd.f32 %v3797, %v3895
    %v3897 = vpop.f32.mrb[0].mxu0
    %3898 = vdwg.mxu0
    %v3899 = vmax.f32 %v3869, 0.0
    %v3900 = vmax.f32 %v3872, 0.0
    %v3901 = vmax.f32 %v3877, 0.0
    %v3902 = vmax.f32 %v3880, 0.0
    %v3903 = vmax.f32 %v3885, 0.0
    %v3904 = vmax.f32 %v3888, 0.0
    %v3905 = vmax.f32 %v3893, 0.0
    %v3906 = vmax.f32 %v3896, 0.0
    %v3907 = vlaneseq
    %v3908 = vshrl.u32 %v3907, 7
    %v3909 = vsub.s32 2, %v3908
    %v3910 = vrot.slane %v3672, %v3909
    %v3911 = vmul.f32 %v3899, %v3910
    %v3912 = vmul.f32 %v3900, %v3910
    %v3913 = vmul.f32 %v3901, %v3910
    %v3914 = vmul.f32 %v3902, %v3910
    %v3915 = vmul.f32 %v3903, %v3910
    %v3916 = vmul.f32 %v3904, %v3910
    %v3917 = vmul.f32 %v3905, %v3910
    %v3918 = vmul.f32 %v3906, %v3910
    %v3919 = vlaneseq
    %v3920 = vshrl.u32 %v3919, 7
    %v3921 = vsub.s32 3, %v3920
    %v3922 = vrot.slane %v3672, %v3921
    %v3923 = vadd.f32 %v3911, %v3922
    %v3924 = vadd.f32 %v3912, %v3922
    %v3925 = vadd.f32 %v3913, %v3922
    %v3926 = vadd.f32 %v3914, %v3922
    %v3927 = vadd.f32 %v3915, %v3922
    %v3928 = vadd.f32 %v3916, %v3922
    %v3929 = vadd.f32 %v3917, %v3922
    %v3930 = vadd.f32 %v3918, %v3922
    %v3931 = vpack.c.bf16 %v3924, %v3923
    %v3932 = vpack.c.bf16 %v3926, %v3925
    %v3933 = vpack.c.bf16 %v3928, %v3927
    %v3934 = vpack.c.bf16 %v3930, %v3929
    %3935 = vmatprep.subr.bf16.mxu0 0
    %3936 = vmatpush1.bf16.msra.mxu0 %v3931
    %3937 = vmatprep.subr.bf16.mxu0 0
    %3938 = vmatpush1.bf16.msra.mxu0 %v3932
    %3939 = vmatprep.subr.bf16.mxu0 0
    %3940 = vmatpush1.bf16.msra.mxu0 %v3933
    %3941 = vmatprep.subr.bf16.mxu0 0
    %3942 = vmatpush1.bf16.msra.mxu0 %v3934
    %3943 = vmatprep.subr.bf16.mxu0 0
    %3944 = vmatpush1.bf16.msra.mxu0 0
    %3945 = vmatprep.subr.bf16.mxu0 0
    %3946 = vmatpush1.bf16.msra.mxu0 0
    %3947 = vmatprep.subr.bf16.mxu0 0
    %3948 = vmatpush1.bf16.msra.mxu0 0
    %3949 = vmatprep.subr.bf16.mxu0 0
    %3950 = vmatpush1.bf16.msra.mxu0 0
    %3951 = vmatprep.subr.bf16.mxu0 0
    %3952 = vmatpush1.bf16.msra.mxu0 0
    %3953 = vmatprep.subr.bf16.mxu0 0
    %3954 = vmatpush1.bf16.msra.mxu0 0
    %3955 = vmatprep.subr.bf16.mxu0 0
    %3956 = vmatpush1.bf16.msra.mxu0 0
    %3957 = vmatprep.subr.bf16.mxu0 0
    %3958 = vmatpush1.bf16.msra.mxu0 0
    %3959 = vmatprep.subr.bf16.mxu0 0
    %3960 = vmatpush1.bf16.msra.mxu0 0
    %3961 = vmatprep.subr.bf16.mxu0 0
    %3962 = vmatpush1.bf16.msra.mxu0 0
    %3963 = vmatprep.subr.bf16.mxu0 0
    %3964 = vmatpush1.bf16.msra.mxu0 0
    %3965 = vmatprep.subr.bf16.mxu0 0
    %3966 = vmatpush1.bf16.msra.mxu0 0
    %3967 = vmatprep.mubr.bf16.mxu0 0
    %3968 = vmatmul.mubr.bf16.gmra.mrb[0].mxu0 %v555
    %v3969 = vpop.f32.mrb[0].mxu0
    %v3970 = vadd.f32 0.0, %v3969
    %v3971 = vpop.f32.mrb[0].mxu0
    %v3972 = vpop.f32.mrb[0].mxu0
    %v3973 = vpop.f32.mrb[0].mxu0
    %3974 = vdwg.mxu0
    %v3975 = vpack.c.bf16 %v3970, %v3970
    %v3976 = vld [vmem:[%s8 + $0xe0] sm:$0xf]
    %v3977 = vld [vmem:[%s8 + $0xe4] sm:$0xf]
    %v3978 = vld [vmem:[%s8 + $0xe8] sm:$0xf]
    %v3979 = vld [vmem:[%s8 + $0xec] sm:$0xf]
    %v3980 = vld [vmem:[%s8 + $0xf0] sm:$0xf]
    %v3981 = vld [vmem:[%s8 + $0xf4] sm:$0xf]
    %v3982 = vld [vmem:[%s8 + $0xf8] sm:$0xf]
    %v3983 = vld [vmem:[%s8 + $0xfc] sm:$0xf]
    %v3992 = vunpack.c.l.b16 %v3976
    %v3993 = vunpack.c.l.b16 %v3977
    %v3994 = vunpack.c.l.b16 %v3978
    %v3995 = vunpack.c.l.b16 %v3979
    %v3996 = vunpack.c.l.b16 %v3980
    %v3997 = vunpack.c.l.b16 %v3981
    %v3998 = vunpack.c.l.b16 %v3982
    %v3999 = vunpack.c.l.b16 %v3983
    %v4000 = vpack.c.b16 %v3993, %v3992
    %v4001 = vpack.c.b16 %v3995, %v3994
    %v4002 = vpack.c.b16 %v3997, %v3996
    %v4003 = vpack.c.b16 %v3999, %v3998
    %v4009 = vsel %vm158, %v3975, 0
    %4011 = vmatprep.subr.bf16.mxu0 0
    %4012 = vmatpush1.bf16.msra.mxu0 %v4000
    %4013 = vmatprep.subr.bf16.mxu0 0
    %4014 = vmatpush1.bf16.msra.mxu0 %v4001
    %4015 = vmatprep.subr.bf16.mxu0 0
    %4016 = vmatpush1.bf16.msra.mxu0 %v4002
    %4017 = vmatprep.subr.bf16.mxu0 0
    %4018 = vmatpush1.bf16.msra.mxu0 %v4003
    %4019 = vmatprep.subr.bf16.mxu0 0
    %4020 = vmatpush1.bf16.msra.mxu0 0
    %4021 = vmatprep.subr.bf16.mxu0 0
    %4022 = vmatpush1.bf16.msra.mxu0 0
    %4023 = vmatprep.subr.bf16.mxu0 0
    %4024 = vmatpush1.bf16.msra.mxu0 0
    %4025 = vmatprep.subr.bf16.mxu0 0
    %4026 = vmatpush1.bf16.msra.mxu0 0
    %4027 = vmatprep.subr.bf16.mxu0 0
    %4028 = vmatpush1.bf16.msra.mxu0 0
    %4029 = vmatprep.subr.bf16.mxu0 0
    %4030 = vmatpush1.bf16.msra.mxu0 0
    %4031 = vmatprep.subr.bf16.mxu0 0
    %4032 = vmatpush1.bf16.msra.mxu0 0
    %4033 = vmatprep.subr.bf16.mxu0 0
    %4034 = vmatpush1.bf16.msra.mxu0 0
    %4035 = vmatprep.subr.bf16.mxu0 0
    %4036 = vmatpush1.bf16.msra.mxu0 0
    %4037 = vmatprep.subr.bf16.mxu0 0
    %4038 = vmatpush1.bf16.msra.mxu0 0
    %4039 = vmatprep.subr.bf16.mxu0 0
    %4040 = vmatpush1.bf16.msra.mxu0 0
    %4041 = vmatprep.subr.bf16.mxu0 0
    %4042 = vmatpush1.bf16.msra.mxu0 0
    %4043 = vmatprep.mubr.bf16.mxu0 0
    %4044 = vmatmul.mubr.bf16.gmra.mrb[0].mxu0 %v4009
    %v4045 = vpop.f32.mrb[0].mxu0
    %v4046 = vadd.f32 0.0, %v4045
    %v4047 = vpop.f32.mrb[0].mxu0
    %v4048 = vpop.f32.mrb[0].mxu0
    %v4049 = vpop.f32.mrb[0].mxu0
    %4050 = vdwg.mxu0
    %v4051 = vadd.f32 %v3568, %v4046
    %v4052 = vld [vmem:[#allocation10] sm:$0x1]
    %v4054 = vlaneseq
    %v4055 = vshrl.u32 %v4054, 7
    %v4056 = vsub.s32 0, %v4055
    %v4057 = vrot.slane %v4052, %v4056
    %v4059 = vadd.f32 %v4051, %v4057
    %v4060 = vmax.f32 %v4059, 0.0
    %v4061 = vpack.c.bf16 %v4060, %v4060
    %v4062 = vld [vmem:[%s10] sm:$0xf]
    %v4063 = vld [vmem:[%s10 + $0x4] sm:$0xf]
    %v4064 = vld [vmem:[%s10 + $0x8] sm:$0xf]
    %v4065 = vld [vmem:[%s10 + $0xc] sm:$0xf]
    %v4066 = vld [vmem:[%s10 + $0x10] sm:$0xf]
    %v4067 = vld [vmem:[%s10 + $0x14] sm:$0xf]
    %v4068 = vld [vmem:[%s10 + $0x18] sm:$0xf]
    %v4069 = vld [vmem:[%s10 + $0x1c] sm:$0xf]
    %v4070 = vld [vmem:[#allocation12] sm:$0x1]
    %v4072 = vlaneseq
    %v4073 = vshrl.u32 %v4072, 7
    %v4074 = vsub.s32 0, %v4073
    %v4075 = vrot.slane %v4070, %v4074
    %v4085 = vunpack.c.l.b16 %v4062
    %v4086 = vunpack.c.l.b16 %v4063
    %v4087 = vunpack.c.l.b16 %v4064
    %v4088 = vunpack.c.l.b16 %v4065
    %v4089 = vunpack.c.l.b16 %v4066
    %v4090 = vunpack.c.l.b16 %v4067
    %v4091 = vunpack.c.l.b16 %v4068
    %v4092 = vunpack.c.l.b16 %v4069
    %v4093 = vpack.c.b16 %v4086, %v4085
    %v4094 = vpack.c.b16 %v4088, %v4087
    %v4095 = vpack.c.b16 %v4090, %v4089
    %v4096 = vpack.c.b16 %v4092, %v4091
    %v4102 = vsel %vm158, %v4061, 0
    %4104 = vmatprep.subr.bf16.mxu0 0
    %4105 = vmatpush1.bf16.msra.mxu0 %v4093
    %4106 = vmatprep.subr.bf16.mxu0 0
    %4107 = vmatpush1.bf16.msra.mxu0 %v4094
    %4108 = vmatprep.subr.bf16.mxu0 0
    %4109 = vmatpush1.bf16.msra.mxu0 %v4095
    %4110 = vmatprep.subr.bf16.mxu0 0
    %4111 = vmatpush1.bf16.msra.mxu0 %v4096
    %4112 = vmatprep.subr.bf16.mxu0 0
    %4113 = vmatpush1.bf16.msra.mxu0 0
    %4114 = vmatprep.subr.bf16.mxu0 0
    %4115 = vmatpush1.bf16.msra.mxu0 0
    %4116 = vmatprep.subr.bf16.mxu0 0
    %4117 = vmatpush1.bf16.msra.mxu0 0
    %4118 = vmatprep.subr.bf16.mxu0 0
    %4119 = vmatpush1.bf16.msra.mxu0 0
    %4120 = vmatprep.subr.bf16.mxu0 0
    %4121 = vmatpush1.bf16.msra.mxu0 0
    %4122 = vmatprep.subr.bf16.mxu0 0
    %4123 = vmatpush1.bf16.msra.mxu0 0
    %4124 = vmatprep.subr.bf16.mxu0 0
    %4125 = vmatpush1.bf16.msra.mxu0 0
    %4126 = vmatprep.subr.bf16.mxu0 0
    %4127 = vmatpush1.bf16.msra.mxu0 0
    %4128 = vmatprep.subr.bf16.mxu0 0
    %4129 = vmatpush1.bf16.msra.mxu0 0
    %4130 = vmatprep.subr.bf16.mxu0 0
    %4131 = vmatpush1.bf16.msra.mxu0 0
    %4132 = vmatprep.subr.bf16.mxu0 0
    %4133 = vmatpush1.bf16.msra.mxu0 0
    %4134 = vmatprep.subr.bf16.mxu0 0
    %4135 = vmatpush1.bf16.msra.mxu0 0
    %4136 = vmatprep.mubr.bf16.mxu0 0
    %4137 = vmatmul.mubr.bf16.gmra.mrb[0].mxu0 %v4102
    %v4138 = vpop.f32.mrb[0].mxu0
    %v4139 = vadd.f32 %v4075, %v4138
    %v4140 = vpop.f32.mrb[0].mxu0
    %v4141 = vpop.f32.mrb[0].mxu0
    %v4142 = vpop.f32.mrb[0].mxu0
    %4143 = vdwg.mxu0
    %vm4144 = vcmask 19456
    %v4145 = vsel %vm4144, %v4139, -inf
    %4146 = vmax.xlane.f32.xlu0 %v4145
    %v4147 = vpop.xlane.xlu0 %4146
    %v4148 = vsub.f32 %v4139, %v4147
    %v4149 = vmul.f32 %v4148, 1.442695
    %v4150 = vpow.pop %v4149
    %v4151 = vsel %vm4144, %v4150, 0.0
    %4152 = vadd.xlane.f32.xlu0 %v4151
    %v4153 = vpop.xlane.xlu0 %4152
    %v4154 = vlog2.pop %v4153
    %v4155 = vmul.f32 %v4154, 0.6931472
    %v4156 = vsub.f32 %v4148, %v4155
    %4157 = vst.msk [vmem:[#allocation13] sm:$0xf] %vm4144, %v4156
    // Predicated region
    $region74: #{gin_with_jk_forward.1} parent=1 // pred_check
      _
    $region75: #{gin_with_jk_forward.1} parent=1 // pred_check_branch
      %4159 = sbr.rel (0) target = $region77
    $region76: #{gin_with_jk_forward.1} parent=1 // pred_region
      %s4161 = ssub.s32 64, 64
      %4162 = vsyncadd [#allocation4], %s4161
      %s4164 = sshll.u32 [#allocation13], 4
      %s4165 = int_to_ptr.vmem [resolvable:$true] %s4164
      %4167 = dma.vmem_to_hbm [thread:$0]  %s4165, 64, %s12, [#allocation4]
    $region77: #{gin_with_jk_forward.1} parent=1 // pred_fallthru
      _
    // Predicated region
    $region78: #{gin_with_jk_forward.1} parent=1 // pred_check
      _
    $region79: #{gin_with_jk_forward.1} parent=1 // pred_check_branch
      %4169 = sbr.rel (0) target = $region81
    $region80: #{gin_with_jk_forward.1} parent=1 // pred_region
      %4170 = dma.done [#allocation4], 64
    $region81: #{gin_with_jk_forward.1} parent=1 // pred_fallthru
      _
    %4171 = vsyncpa [#allocation3], 1
    %4172 = vsyncpa [#allocation8], 1
    %4173 = vsyncpa [#allocation11], 1
    %4174 = vsyncpa [#allocation4], 1
    %4175 = vsyncpa [#allocation5], 1

</llo_original>
